<compile_context>
chip_gen: v7x
topology: tpu7x:2x2x1
jax: 0.10.0
libtpu: 0.0.40
codegen_flags: <defaults>
</compile_context>

<pallas_src>
import functools

import jax
import jax.numpy as jnp
from jax.experimental import pallas as pl
from jax.experimental.pallas import tpu as pltpu

_EPS = 1e-5      # PyTorch BatchNorm1d default eps
_LANE = 128      # TPU lane width


def _round_up(x, m):
    return (x + m - 1) // m * m


def _binarize(w):
    # BinaryNet Binarize with the 0 -> +1 tie-break (NOT jnp.sign, which maps 0 -> 0).
    return jnp.where(w >= 0, 1.0, -1.0).astype(jnp.float32)


# --------------------------------------------------------------------------- kernel


def _fused_mlp_kernel(num_classes,
                      x_ref,
                      w1_ref, w2_ref, w3_ref, w4_ref,
                      aff_ref, b4_ref,
                      out_ref):
    """One batch tile through the whole binarized MLP.

    x_ref  : (TB, K1p) bf16  real-valued pixels (first-layer input is NOT binarized),
                             pre-cast to bf16 in the wrapper.
    w*_ref : (in, out) bf16  pre-binarized (+/-1) transposed weights
    aff_ref: (6, H)    f32   rows = [a1, c1, a2, c2, a3, c3] folded bias+BN+sign coeffs
    w4_ref : (H, Cp)   bf16, b4_ref: (1, Cp) f32   (Cp = 128, classes zero-padded)
    out_ref: (TB, Cp)  f32   log-probabilities (pad lanes are junk; wrapper slices)
    """
    f32 = jnp.float32
    bf16 = jnp.bfloat16

    aff = aff_ref[...]                           # (6, H) f32, loaded once
    a1, c1 = aff[0:1, :], aff[1:2, :]
    a2, c2 = aff[2:3, :], aff[3:4, :]
    a3, c3 = aff[4:5, :], aff[5:6, :]

    # ---- fc1: real (bf16) input @ binarized weights; fused bias+BN+hardtanh+sign ----
    acc1 = jnp.dot(x_ref[...], w1_ref[...], preferred_element_type=f32)
    h1 = jnp.where(acc1 * a1 + c1 >= 0.0, 1.0, -1.0).astype(bf16)

    # ---- fc2 ----
    acc2 = jnp.dot(h1, w2_ref[...], preferred_element_type=f32)
    h2 = jnp.where(acc2 * a2 + c2 >= 0.0, 1.0, -1.0).astype(bf16)

    # ---- fc3 (Dropout(0.5) is identity in eval) ----
    acc3 = jnp.dot(h2, w3_ref[...], preferred_element_type=f32)
    h3 = jnp.where(acc3 * a3 + c3 >= 0.0, 1.0, -1.0).astype(bf16)

    # ---- fc4 + masked log-softmax over the padded class lanes ----
    logits = jnp.dot(h3, w4_ref[...], preferred_element_type=f32) + b4_ref[...]
    lane = jax.lax.broadcasted_iota(jnp.int32, logits.shape, dimension=1)
    valid = lane < num_classes
    masked = jnp.where(valid, logits, jnp.float32(-1e30))
    m = jnp.max(masked, axis=-1, keepdims=True)
    e = jnp.where(valid, jnp.exp(masked - m), 0.0)           # exp on the EUP slot
    denom = jnp.sum(e, axis=-1, keepdims=True)
    out_ref[...] = masked - m - jnp.log(denom)


# --------------------------------------------------------------------------- wrapper


def prepare_params(raw, *, num_classes=10):
    """Pre-binarize weights (+/-1 bf16, stored (in, out)) and fold bias + eval-BN +
    hardtanh + sign into per-feature affine coefficients, packed as one (6, H) block."""

    def fold(prefix):
        w = raw[prefix + "_w"].astype(jnp.float32)           # (out, in) torch layout
        b = raw[prefix + "_b"].astype(jnp.float32)
        g = raw[prefix + "_gamma"].astype(jnp.float32)
        beta = raw[prefix + "_beta"].astype(jnp.float32)
        mean = raw[prefix + "_mean"].astype(jnp.float32)
        var = raw[prefix + "_var"].astype(jnp.float32)
        a = g * jax.lax.rsqrt(var + _EPS)                    # f32 rsqrt
        c = a * (b - mean) + beta
        wb = _binarize(w).T.astype(jnp.bfloat16)             # (in, out), exact +/-1
        return wb, a, c

    params = {}
    w1, a1, c1 = fold("fc1")
    # Pad the first-layer contraction dim 784 -> multiple of 128 with zero rows
    # (the wrapper zero-pads the matching input columns, so the pad contributes 0).
    k1 = w1.shape[0]
    k1p = _round_up(k1, _LANE)
    params["w1"] = jnp.pad(w1, ((0, k1p - k1), (0, 0)))

    w2, a2, c2 = fold("fc2")
    w3, a3, c3 = fold("fc3")
    params["w2"], params["w3"] = w2, w3
    # Pack the six per-feature affine vectors into a single (6, H) block: one input,
    # one DMA, one 8-sublane pad instead of six separate (1, H) blocks.
    params["affine"] = jnp.stack([a1, c1, a2, c2, a3, c3], axis=0).astype(jnp.float32)

    w4 = _binarize(raw["fc4_w"].astype(jnp.float32)).T.astype(jnp.bfloat16)  # (H, C)
    b4 = raw["fc4_b"].astype(jnp.float32).reshape(1, -1)
    cp = _round_up(num_classes, _LANE)
    params["w4"] = jnp.pad(w4, ((0, 0), (0, cp - num_classes)))
    params["b4"] = jnp.pad(b4, ((0, 0), (0, cp - num_classes)))
    return params


def _vmem_limit_bytes():
    """Raise the scoped VMEM limit per generation (default is only 16/32 MiB)."""
    try:
        info = pltpu.get_tpu_info()
        cap = getattr(info, "vmem_capacity_bytes", None)
        if cap:
            return int(cap * 7 // 8)           # leave compiler headroom
    except Exception:
        pass
    return 56 * 1024 * 1024                    # safe on v5e/v6e (128 MiB) and v7x (64 MiB)


def _resident_spec(shape):
    """Constant-index (fetched-once) block: single-buffered so VMEM is not doubled."""
    try:
        return pl.BlockSpec(shape, lambda i: (0, 0), pipeline_mode=pl.Buffered(1))
    except TypeError:   # older jax without pipeline_mode kwarg
        return pl.BlockSpec(shape, lambda i: (0, 0))


def net_forward(x, params, *, num_classes=10, batch_tile=1024):
    """Eval-mode forward of Net.  x: (B, 784) or (B, 1, 28, 28)."""
    x = x.reshape(x.shape[0], -1).astype(jnp.float32)
    b, k = x.shape
    w1, w2, w3, w4 = params["w1"], params["w2"], params["w3"], params["w4"]
    k1p = w1.shape[0]
    hid = w2.shape[0]
    cp = w4.shape[1]

    # Batch tile: as large as batch_tile allows (amortizes ~0.35us per-step pipeline
    # overhead) but always >= 2 grid steps so the "parallel" axis can actually shard
    # across v7x's two TensorCores instead of leaving one idle.
    b8 = _round_up(b, 8)
    tb = min(batch_tile, b8)
    if b8 // tb < 2 and b8 >= 16:
        tb = _round_up((b8 + 1) // 2, 8)
    bp = _round_up(b, tb)

    # Pre-cast pixels to bf16 in the wrapper: halves per-tile input DMA and removes a
    # (TB, K1p) VPU cast per grid step.  Pad rows/cols are zeros (contribute nothing).
    x = jnp.pad(x, ((0, bp - b), (0, k1p - k))).astype(jnp.bfloat16)

    flops = 2 * bp * (k1p * hid + 2 * hid * hid + hid * cp)
    bytes_accessed = (x.size * 2 + w1.size * 2 + w2.size * 2 + w3.size * 2 +
                      w4.size * 2 + params["affine"].size * 4 +
                      params["b4"].size * 4 + bp * cp * 4)
    cost = pl.CostEstimate(flops=flops,
                           transcendentals=bp * (cp + 1),
                           bytes_accessed=bytes_accessed)

    out = pl.pallas_call(
        functools.partial(_fused_mlp_kernel, num_classes),
        out_shape=jax.ShapeDtypeStruct((bp, cp), jnp.float32),
        grid_spec=pltpu.PrefetchScalarGridSpec(
            num_scalar_prefetch=0,
            grid=(bp // tb,),
            in_specs=[
                pl.BlockSpec((tb, k1p), lambda i: (i, 0)),   # x batch tile (pipelined)
                _resident_spec((k1p, hid)),                  # fc1 weights
                _resident_spec((hid, hid)),                  # fc2 weights
                _resident_spec((hid, hid)),                  # fc3 weights
                _resident_spec((hid, cp)),                   # fc4 weights
                _resident_spec((6, hid)),                    # packed BN/bias/sign affines
                _resident_spec((1, cp)),                     # fc4 bias
            ],
            out_specs=pl.BlockSpec((tb, cp), lambda i: (i, 0)),
        ),
        compiler_params=pltpu.CompilerParams(
            dimension_semantics=("parallel",),
            vmem_limit_bytes=_vmem_limit_bytes()),
        cost_estimate=cost,
    )(x, w1, w2, w3, w4, params["affine"], params["b4"])
    return out[:b, :num_classes]


# --------------------------------------------------------------------------- reference


def reference_forward(x, raw):
    """Pure-JAX eval-mode reference with the original (unfused) BinaryNet math."""

    def bin_linear(h, w, b, binarize_input):
        wb = jnp.where(w >= 0, 1.0, -1.0)
        hb = jnp.where(h >= 0, 1.0, -1.0) if binarize_input else h
        return hb.astype(jnp.float32) @ wb.T + b

    def bn_hardtanh(y, g, beta, mean, var):
        z = (y - mean) / jnp.sqrt(var + _EPS) * g + beta
        return jnp.clip(z, -1.0, 1.0)

    h = x.reshape(x.shape[0], -1).astype(jnp.float32)
    h = bn_hardtanh(bin_linear(h, raw["fc1_w"], raw["fc1_b"], False),
                    raw["fc1_gamma"], raw["fc1_beta"], raw["fc1_mean"], raw["fc1_var"])
    h = bn_hardtanh(bin_linear(h, raw["fc2_w"], raw["fc2_b"], True),
                    raw["fc2_gamma"], raw["fc2_beta"], raw["fc2_mean"], raw["fc2_var"])
    h = bn_hardtanh(bin_linear(h, raw["fc3_w"], raw["fc3_b"], True),
                    raw["fc3_gamma"], raw["fc3_beta"], raw["fc3_mean"], raw["fc3_var"])
    # Dropout(0.5) is identity in eval.
    logits = bin_linear(h, raw["fc4_w"], raw["fc4_b"], True)
    return jax.nn.log_softmax(logits, axis=-1)


# --------------------------------------------------------------------------- demo


if __name__ == "__main__":
    key = jax.random.PRNGKey(0)
    B, IN, H, C = 256, 784, 512, 10    # small stand-in for the real 784 / 6144 / 10 net
    ks = list(jax.random.split(key, 21))
    ki = iter(ks)

    raw = {}
    for name, (o, i) in {"fc1": (H, IN), "fc2": (H, H), "fc3": (H, H)}.items():
        raw[name + "_w"] = 0.05 * jax.random.normal(next(ki), (o, i), jnp.float32)
        raw[name + "_b"] = 0.1 * jax.random.normal(next(ki), (o,), jnp.float32)
        raw[name + "_gamma"] = 1.0 + 0.2 * jax.random.normal(next(ki), (o,), jnp.float32)
        raw[name + "_beta"] = 0.1 * jax.random.normal(next(ki), (o,), jnp.float32)
        raw[name + "_mean"] = 0.5 * jax.random.normal(next(ki), (o,), jnp.float32)
        raw[name + "_var"] = jax.random.uniform(next(ki), (o,), jnp.float32, 0.5, 1.5)
    raw["fc4_w"] = 0.05 * jax.random.normal(next(ki), (C, H), jnp.float32)
    raw["fc4_b"] = 0.1 * jax.random.normal(next(ki), (C,), jnp.float32)

    # "Pixels" quantized to multiples of 1/8 so the bf16 cast and MXU accumulation are
    # exact and the comparison against the f32 reference is deterministic.
    x = jax.random.randint(next(ki), (B, 1, 28, 28), -16, 17).astype(jnp.float32) / 8.0

    params = prepare_params(raw, num_classes=C)
    out = jax.block_until_ready(jax.jit(net_forward)(x, params))

    assert out.shape == (B, C), out.shape
    assert bool(jnp.all(jnp.isfinite(out)))
    # log-softmax rows must normalize to 1
    row_sum = jnp.sum(jnp.exp(out), axis=-1)
    assert bool(jnp.all(jnp.abs(row_sum - 1.0) < 1e-3)), "log-softmax not normalized"

    ref = reference_forward(x, raw)
    close = jnp.abs(out - ref) < (1e-3 + 1e-3 * jnp.abs(ref))
    frac = float(jnp.mean(close.astype(jnp.float32)))
    # A few entries may differ when a BatchNorm pre-activation lands within float
    # rounding of the sign threshold (fused-affine vs unfused ulp differences).
    assert frac > 0.95, f"only {frac:.4f} of outputs match the unfused reference"

    print("KERNEL_OK")
</pallas_src>

<mosaic_0001>
module attributes {stable_mosaic.version = 11 : i64} {
  func.func @_fused_mlp_kernel(%arg0: i32, %arg1: memref<128x896xbf16, #tpu.memory_space<vmem>>, %arg2: memref<896x512xbf16, #tpu.memory_space<vmem>>, %arg3: memref<512x512xbf16, #tpu.memory_space<vmem>>, %arg4: memref<512x512xbf16, #tpu.memory_space<vmem>>, %arg5: memref<512x128xbf16, #tpu.memory_space<vmem>>, %arg6: memref<6x512xf32, #tpu.memory_space<vmem>>, %arg7: memref<1x128xf32, #tpu.memory_space<vmem>>, %arg8: memref<128x128xf32, #tpu.memory_space<vmem>>) attributes {dimension_semantics = [#tpu.dimension_semantics<parallel>], iteration_bounds = array<i64: 2>, scalar_prefetch = 0 : i64, scratch_operands = 0 : i64, tpu.core_type = #tpu.core_type<tc>, window_params = [{transform_indices = @transform_0, window_bounds = array<i64: 128, 896>}, {pipeline_mode = #tpu.pipeline_mode<synchronous>, transform_indices = @transform_1, window_bounds = array<i64: 896, 512>}, {pipeline_mode = #tpu.pipeline_mode<synchronous>, transform_indices = @transform_2, window_bounds = array<i64: 512, 512>}, {pipeline_mode = #tpu.pipeline_mode<synchronous>, transform_indices = @transform_3, window_bounds = array<i64: 512, 512>}, {pipeline_mode = #tpu.pipeline_mode<synchronous>, transform_indices = @transform_4, window_bounds = array<i64: 512, 128>}, {pipeline_mode = #tpu.pipeline_mode<synchronous>, transform_indices = @transform_5, window_bounds = array<i64: 6, 512>}, {pipeline_mode = #tpu.pipeline_mode<synchronous>, transform_indices = @transform_6, window_bounds = array<i64: 1, 128>}, {transform_indices = @transform_7, window_bounds = array<i64: 128, 128>}]} {
    %c0 = arith.constant 0 : index
    %c0_0 = arith.constant 0 : index
    %0 = vector.load %arg6[%c0, %c0_0] : memref<6x512xf32, #tpu.memory_space<vmem>>, vector<6x512xf32>
    %1 = vector.extract_strided_slice %0 {offsets = [0, 0], sizes = [1, 512], strides = [1, 1]} : vector<6x512xf32> to vector<1x512xf32>
    %2 = vector.extract_strided_slice %0 {offsets = [1, 0], sizes = [1, 512], strides = [1, 1]} : vector<6x512xf32> to vector<1x512xf32>
    %3 = vector.extract_strided_slice %0 {offsets = [2, 0], sizes = [1, 512], strides = [1, 1]} : vector<6x512xf32> to vector<1x512xf32>
    %4 = vector.extract_strided_slice %0 {offsets = [3, 0], sizes = [1, 512], strides = [1, 1]} : vector<6x512xf32> to vector<1x512xf32>
    %5 = vector.extract_strided_slice %0 {offsets = [4, 0], sizes = [1, 512], strides = [1, 1]} : vector<6x512xf32> to vector<1x512xf32>
    %6 = vector.extract_strided_slice %0 {offsets = [5, 0], sizes = [1, 512], strides = [1, 1]} : vector<6x512xf32> to vector<1x512xf32>
    %c0_1 = arith.constant 0 : index
    %c0_2 = arith.constant 0 : index
    %7 = vector.load %arg1[%c0_1, %c0_2] : memref<128x896xbf16, #tpu.memory_space<vmem>>, vector<128x896xbf16>
    %c0_3 = arith.constant 0 : index
    %c0_4 = arith.constant 0 : index
    %8 = vector.load %arg2[%c0_3, %c0_4] : memref<896x512xbf16, #tpu.memory_space<vmem>>, vector<896x512xbf16>
    %cst = arith.constant dense<0.000000e+00> : vector<128x512xf32>
    %9 = tpu.matmul %7, %8, %cst {dimension_numbers = #tpu.dot_dimension_numbers<[1], [0], [0], [1], [0, 0, 1, 1], [], []>} : vector<128x896xbf16>, vector<896x512xbf16>, vector<128x512xf32> -> vector<128x512xf32>
    %10 = vector.broadcast %1 : vector<1x512xf32> to vector<128x512xf32>
    %11 = arith.mulf %9, %10 : vector<128x512xf32>
    %12 = vector.broadcast %2 : vector<1x512xf32> to vector<128x512xf32>
    %13 = arith.addf %11, %12 : vector<128x512xf32>
    %cst_5 = arith.constant 0.000000e+00 : f32
    %14 = vector.broadcast %cst_5 : f32 to vector<128x512xf32>
    %15 = arith.cmpf oge, %13, %14 : vector<128x512xf32>
    %cst_6 = arith.constant 1.000000e+00 : f32
    %cst_7 = arith.constant -1.000000e+00 : f32
    %16 = vector.broadcast %cst_6 : f32 to vector<128x512xf32>
    %17 = vector.broadcast %cst_7 : f32 to vector<128x512xf32>
    %18 = arith.select %15, %16, %17 : vector<128x512xi1>, vector<128x512xf32>
    %19 = arith.truncf %18 : vector<128x512xf32> to vector<128x512xbf16>
    %c0_8 = arith.constant 0 : index
    %c0_9 = arith.constant 0 : index
    %20 = vector.load %arg3[%c0_8, %c0_9] : memref<512x512xbf16, #tpu.memory_space<vmem>>, vector<512x512xbf16>
    %cst_10 = arith.constant dense<0.000000e+00> : vector<128x512xf32>
    %21 = tpu.matmul %19, %20, %cst_10 {dimension_numbers = #tpu.dot_dimension_numbers<[1], [0], [0], [1], [0, 0, 1, 1], [], []>} : vector<128x512xbf16>, vector<512x512xbf16>, vector<128x512xf32> -> vector<128x512xf32>
    %22 = vector.broadcast %3 : vector<1x512xf32> to vector<128x512xf32>
    %23 = arith.mulf %21, %22 : vector<128x512xf32>
    %24 = vector.broadcast %4 : vector<1x512xf32> to vector<128x512xf32>
    %25 = arith.addf %23, %24 : vector<128x512xf32>
    %cst_11 = arith.constant 0.000000e+00 : f32
    %26 = vector.broadcast %cst_11 : f32 to vector<128x512xf32>
    %27 = arith.cmpf oge, %25, %26 : vector<128x512xf32>
    %cst_12 = arith.constant 1.000000e+00 : f32
    %cst_13 = arith.constant -1.000000e+00 : f32
    %28 = vector.broadcast %cst_12 : f32 to vector<128x512xf32>
    %29 = vector.broadcast %cst_13 : f32 to vector<128x512xf32>
    %30 = arith.select %27, %28, %29 : vector<128x512xi1>, vector<128x512xf32>
    %31 = arith.truncf %30 : vector<128x512xf32> to vector<128x512xbf16>
    %c0_14 = arith.constant 0 : index
    %c0_15 = arith.constant 0 : index
    %32 = vector.load %arg4[%c0_14, %c0_15] : memref<512x512xbf16, #tpu.memory_space<vmem>>, vector<512x512xbf16>
    %cst_16 = arith.constant dense<0.000000e+00> : vector<128x512xf32>
    %33 = tpu.matmul %31, %32, %cst_16 {dimension_numbers = #tpu.dot_dimension_numbers<[1], [0], [0], [1], [0, 0, 1, 1], [], []>} : vector<128x512xbf16>, vector<512x512xbf16>, vector<128x512xf32> -> vector<128x512xf32>
    %34 = vector.broadcast %5 : vector<1x512xf32> to vector<128x512xf32>
    %35 = arith.mulf %33, %34 : vector<128x512xf32>
    %36 = vector.broadcast %6 : vector<1x512xf32> to vector<128x512xf32>
    %37 = arith.addf %35, %36 : vector<128x512xf32>
    %cst_17 = arith.constant 0.000000e+00 : f32
    %38 = vector.broadcast %cst_17 : f32 to vector<128x512xf32>
    %39 = arith.cmpf oge, %37, %38 : vector<128x512xf32>
    %cst_18 = arith.constant 1.000000e+00 : f32
    %cst_19 = arith.constant -1.000000e+00 : f32
    %40 = vector.broadcast %cst_18 : f32 to vector<128x512xf32>
    %41 = vector.broadcast %cst_19 : f32 to vector<128x512xf32>
    %42 = arith.select %39, %40, %41 : vector<128x512xi1>, vector<128x512xf32>
    %43 = arith.truncf %42 : vector<128x512xf32> to vector<128x512xbf16>
    %c0_20 = arith.constant 0 : index
    %c0_21 = arith.constant 0 : index
    %44 = vector.load %arg5[%c0_20, %c0_21] : memref<512x128xbf16, #tpu.memory_space<vmem>>, vector<512x128xbf16>
    %cst_22 = arith.constant dense<0.000000e+00> : vector<128x128xf32>
    %45 = tpu.matmul %43, %44, %cst_22 {dimension_numbers = #tpu.dot_dimension_numbers<[1], [0], [0], [1], [0, 0, 1, 1], [], []>} : vector<128x512xbf16>, vector<512x128xbf16>, vector<128x128xf32> -> vector<128x128xf32>
    %c0_23 = arith.constant 0 : index
    %c0_24 = arith.constant 0 : index
    %46 = vector.load %arg7[%c0_23, %c0_24] : memref<1x128xf32, #tpu.memory_space<vmem>>, vector<1x128xf32>
    %47 = vector.broadcast %46 : vector<1x128xf32> to vector<128x128xf32>
    %48 = arith.addf %45, %47 : vector<128x128xf32>
    %49 = tpu.iota {dimensions = array<i32: 1>} : vector<128x128xi32>
    %c10_i32 = arith.constant 10 : i32
    %50 = vector.broadcast %c10_i32 : i32 to vector<128x128xi32>
    %51 = arith.cmpi slt, %49, %50 : vector<128x128xi32>
    %cst_25 = arith.constant -1.000000e+30 : f32
    %52 = vector.broadcast %cst_25 : f32 to vector<128x128xf32>
    %53 = arith.select %51, %48, %52 : vector<128x128xi1>, vector<128x128xf32>
    %cst_26 = arith.constant dense<0xFF800000> : vector<128xf32>
    %54 = vector.multi_reduction <maximumf>, %53, %cst_26 [1] : vector<128x128xf32> to vector<128xf32>
    %55 = vector.shape_cast %54 : vector<128xf32> to vector<128x1xf32>
    %56 = vector.broadcast %55 : vector<128x1xf32> to vector<128x128xf32>
    %57 = arith.subf %53, %56 : vector<128x128xf32>
    %58 = math.exp %57 : vector<128x128xf32>
    %cst_27 = arith.constant 0.000000e+00 : f32
    %59 = vector.broadcast %cst_27 : f32 to vector<128x128xf32>
    %60 = arith.select %51, %58, %59 : vector<128x128xi1>, vector<128x128xf32>
    %cst_28 = arith.constant dense<0.000000e+00> : vector<128xf32>
    %61 = vector.multi_reduction <add>, %60, %cst_28 [1] : vector<128x128xf32> to vector<128xf32>
    %62 = vector.shape_cast %61 : vector<128xf32> to vector<128x1xf32>
    %63 = vector.broadcast %55 : vector<128x1xf32> to vector<128x128xf32>
    %64 = arith.subf %53, %63 : vector<128x128xf32>
    %65 = math.log %62 : vector<128x1xf32>
    %66 = vector.broadcast %65 : vector<128x1xf32> to vector<128x128xf32>
    %67 = arith.subf %64, %66 : vector<128x128xf32>
    %c0_29 = arith.constant 0 : index
    %c0_30 = arith.constant 0 : index
    %68 = vector.load %arg8[%c0_29, %c0_30] : memref<128x128xf32, #tpu.memory_space<vmem>>, vector<128x128xf32>
    tpu.vector_store %arg8[%c0_29, %c0_30], %67 {strides = array<i32>} : memref<128x128xf32, #tpu.memory_space<vmem>>, vector<128x128xf32>,
    return
  }
  func.func @transform_0(%arg0: i32) -> (i32, i32) {
    %c0_i32 = arith.constant 0 : i32
    %c0_i32_0 = arith.constant 0 : i32
    return %arg0, %c0_i32 : i32, i32
  }
  func.func @transform_1(%arg0: i32) -> (i32, i32) {
    %c0_i32 = arith.constant 0 : i32
    %c0_i32_0 = arith.constant 0 : i32
    %c0_i32_1 = arith.constant 0 : i32
    return %c0_i32, %c0_i32_0 : i32, i32
  }
  func.func @transform_2(%arg0: i32) -> (i32, i32) {
    %c0_i32 = arith.constant 0 : i32
    %c0_i32_0 = arith.constant 0 : i32
    %c0_i32_1 = arith.constant 0 : i32
    return %c0_i32, %c0_i32_0 : i32, i32
  }
  func.func @transform_3(%arg0: i32) -> (i32, i32) {
    %c0_i32 = arith.constant 0 : i32
    %c0_i32_0 = arith.constant 0 : i32
    %c0_i32_1 = arith.constant 0 : i32
    return %c0_i32, %c0_i32_0 : i32, i32
  }
  func.func @transform_4(%arg0: i32) -> (i32, i32) {
    %c0_i32 = arith.constant 0 : i32
    %c0_i32_0 = arith.constant 0 : i32
    %c0_i32_1 = arith.constant 0 : i32
    return %c0_i32, %c0_i32_0 : i32, i32
  }
  func.func @transform_5(%arg0: i32) -> (i32, i32) {
    %c0_i32 = arith.constant 0 : i32
    %c0_i32_0 = arith.constant 0 : i32
    %c0_i32_1 = arith.constant 0 : i32
    return %c0_i32, %c0_i32_0 : i32, i32
  }
  func.func @transform_6(%arg0: i32) -> (i32, i32) {
    %c0_i32 = arith.constant 0 : i32
    %c0_i32_0 = arith.constant 0 : i32
    %c0_i32_1 = arith.constant 0 : i32
    return %c0_i32, %c0_i32_0 : i32, i32
  }
  func.func @transform_7(%arg0: i32) -> (i32, i32) {
    %c0_i32 = arith.constant 0 : i32
    %c0_i32_0 = arith.constant 0 : i32
    return %arg0, %c0_i32 : i32, i32
  }
}

</mosaic_0001>

<llo_original>
// kernel: net_forward.1
$region0: #{net_forward.1}
  #allocation0 [shape = 'u32[]', space=smem, size = 0x4, offset = 0x4, fixed_abs, tag = 'smem constant byte address 0x4 - core index']
  #allocation1 [shape = 'u32[144,128]{1,0:T(1,128)}', space=vmem, size = 0x12000, scoped, tag = 'internal scratch']
  %s0 = inlined_call_operand.vmem [shape: bf16[256,896], index: 0, kind: input, shape index: {}]
  %s1 = inlined_call_operand.vmem [shape: bf16[896,512], index: 1, kind: input, shape index: {}]
  %s2 = inlined_call_operand.vmem [shape: bf16[512,512], index: 2, kind: input, shape index: {}]
  %s3 = inlined_call_operand.vmem [shape: bf16[512,512], index: 3, kind: input, shape index: {}]
  %s4 = inlined_call_operand.vmem [shape: bf16[512,128], index: 4, kind: input, shape index: {}]
  %s5 = inlined_call_operand.vmem [shape: f32[6,512], index: 5, kind: input, shape index: {}]
  %s6 = inlined_call_operand.vmem [shape: f32[1,128], index: 6, kind: input, shape index: {}]
  %s7 = inlined_call_operand.vmem [shape: f32[256,128], index: 7, kind: output, shape index: {}]
  %s8 = sld [smem:[#allocation0]]
  $region61: #{net_forward.1} parent=0
    _
  %s10 = ssub.s32 1, %s8
  %s11 = scalar_select 0, %s10, %s8
  loop: start=0, step=1, limit=4
  $region2: #{net_forward.1} parent=0 // loop_pre_header
    _
  $region3: #{net_forward.1} parent=0 // loop_header
    %s13 = sphi 0, %s17
    %p14 = scmp.ge.s32.totalorder %s13, 4
    %s23 = sphi 0, %s25
    %s26 = sphi 0, %s23
    %s27 = sphi 0, %s26
    %s43 = sphi 0, %s27
    %s47 = sphi 0, %s47
    %s49 = sphi 0, %s47
    %s50 = sphi 0, %s49
    %s64 = sphi 0, %s50
    %s68 = sphi 0, %s68
    %s70 = sphi 0, %s68
    %s71 = sphi 0, %s70
    %s85 = sphi 0, %s71
    %s89 = sphi 0, %s89
    %s91 = sphi 0, %s89
    %s92 = sphi 0, %s91
    %s106 = sphi 0, %s92
    %s110 = sphi 0, %s110
    %s112 = sphi 0, %s110
    %s113 = sphi 0, %s112
    %s127 = sphi 0, %s113
    %s131 = sphi 0, %s131
    %s133 = sphi 0, %s131
    %s134 = sphi 0, %s133
    %s148 = sphi 0, %s134
    %s152 = sphi 0, %s152
    %s154 = sphi 0, %s152
    %s155 = sphi 0, %s154
    %s169 = sphi 0, %s155
    %s175 = sphi 0, %s177
    %s178 = sphi 0, %s175
    %s179 = sphi 0, %s178
    %s195 = sphi 0, %s179
  $region4: #{net_forward.1} parent=0 // loop_header_branch
    %16 = sbr.rel (%p14) target = $region8
  $region5: #{net_forward.1} parent=0 // loop_body
    %s18 = ssub.s32 %s13, 1
    %s19 = ssub.s32 %s13, 2
    %s20 = sadd.s32 %s13, 1
    %s21 = ssub.s32 %s13, %s20
    %p22 = scmp.eq.s32.totalorder %s21, 0
    %s24 = sadd.s32 %s23, 1
    %s25 = scalar_select %p22, %s23, %s24
    %p28 = pneg %p22
    %p29 = scmp.eq.s32.totalorder %s13, 1
    %p30 = por %p28, %p29
    %p31 = scmp.ne.s32.totalorder %s23, %s26
    %p32 = scmp.eq.s32.totalorder %s13, 0
    %p33 = por %p31, %p32
    %p34 = scmp.ne.s32.totalorder %s23, %s26
    %p35 = scmp.eq.s32.totalorder %s18, 1
    %p36 = por %p34, %p35
    %p37 = scmp.ne.s32.totalorder %s26, %s27
    %p38 = scmp.eq.s32.totalorder %s18, 0
    %p39 = por %p37, %p38
    %p40 = scmp.ne.s32.totalorder %s26, %s27
    %p41 = scmp.eq.s32.totalorder %s19, 1
    %p42 = por %p40, %p41
    %p44 = scmp.ne.s32.totalorder %s27, %s43
    %p45 = scmp.eq.s32.totalorder %s19, 0
    %p46 = por %p44, %p45
    %s48 = sadd.s32 %s47, 1
    %p51 = scmp.eq.s32.totalorder %s13, 1
    %p52 = scmp.ne.s32.totalorder %s47, %s49
    %p53 = scmp.eq.s32.totalorder %s13, 0
    %p54 = por %p52, %p53
    %p55 = scmp.ne.s32.totalorder %s47, %s49
    %p56 = scmp.eq.s32.totalorder %s18, 1
    %p57 = por %p55, %p56
    %p58 = scmp.ne.s32.totalorder %s49, %s50
    %p59 = scmp.eq.s32.totalorder %s18, 0
    %p60 = por %p58, %p59
    %p61 = scmp.ne.s32.totalorder %s49, %s50
    %p62 = scmp.eq.s32.totalorder %s19, 1
    %p63 = por %p61, %p62
    %p65 = scmp.ne.s32.totalorder %s50, %s64
    %p66 = scmp.eq.s32.totalorder %s19, 0
    %p67 = por %p65, %p66
    %s69 = sadd.s32 %s68, 1
    %p72 = scmp.eq.s32.totalorder %s13, 1
    %p73 = scmp.ne.s32.totalorder %s68, %s70
    %p74 = scmp.eq.s32.totalorder %s13, 0
    %p75 = por %p73, %p74
    %p76 = scmp.ne.s32.totalorder %s68, %s70
    %p77 = scmp.eq.s32.totalorder %s18, 1
    %p78 = por %p76, %p77
    %p79 = scmp.ne.s32.totalorder %s70, %s71
    %p80 = scmp.eq.s32.totalorder %s18, 0
    %p81 = por %p79, %p80
    %p82 = scmp.ne.s32.totalorder %s70, %s71
    %p83 = scmp.eq.s32.totalorder %s19, 1
    %p84 = por %p82, %p83
    %p86 = scmp.ne.s32.totalorder %s71, %s85
    %p87 = scmp.eq.s32.totalorder %s19, 0
    %p88 = por %p86, %p87
    %s90 = sadd.s32 %s89, 1
    %p93 = scmp.eq.s32.totalorder %s13, 1
    %p94 = scmp.ne.s32.totalorder %s89, %s91
    %p95 = scmp.eq.s32.totalorder %s13, 0
    %p96 = por %p94, %p95
    %p97 = scmp.ne.s32.totalorder %s89, %s91
    %p98 = scmp.eq.s32.totalorder %s18, 1
    %p99 = por %p97, %p98
    %p100 = scmp.ne.s32.totalorder %s91, %s92
    %p101 = scmp.eq.s32.totalorder %s18, 0
    %p102 = por %p100, %p101
    %p103 = scmp.ne.s32.totalorder %s91, %s92
    %p104 = scmp.eq.s32.totalorder %s19, 1
    %p105 = por %p103, %p104
    %p107 = scmp.ne.s32.totalorder %s92, %s106
    %p108 = scmp.eq.s32.totalorder %s19, 0
    %p109 = por %p107, %p108
    %s111 = sadd.s32 %s110, 1
    %p114 = scmp.eq.s32.totalorder %s13, 1
    %p115 = scmp.ne.s32.totalorder %s110, %s112
    %p116 = scmp.eq.s32.totalorder %s13, 0
    %p117 = por %p115, %p116
    %p118 = scmp.ne.s32.totalorder %s110, %s112
    %p119 = scmp.eq.s32.totalorder %s18, 1
    %p120 = por %p118, %p119
    %p121 = scmp.ne.s32.totalorder %s112, %s113
    %p122 = scmp.eq.s32.totalorder %s18, 0
    %p123 = por %p121, %p122
    %p124 = scmp.ne.s32.totalorder %s112, %s113
    %p125 = scmp.eq.s32.totalorder %s19, 1
    %p126 = por %p124, %p125
    %p128 = scmp.ne.s32.totalorder %s113, %s127
    %p129 = scmp.eq.s32.totalorder %s19, 0
    %p130 = por %p128, %p129
    %s132 = sadd.s32 %s131, 1
    %p135 = scmp.eq.s32.totalorder %s13, 1
    %p136 = scmp.ne.s32.totalorder %s131, %s133
    %p137 = scmp.eq.s32.totalorder %s13, 0
    %p138 = por %p136, %p137
    %p139 = scmp.ne.s32.totalorder %s131, %s133
    %p140 = scmp.eq.s32.totalorder %s18, 1
    %p141 = por %p139, %p140
    %p142 = scmp.ne.s32.totalorder %s133, %s134
    %p143 = scmp.eq.s32.totalorder %s18, 0
    %p144 = por %p142, %p143
    %p145 = scmp.ne.s32.totalorder %s133, %s134
    %p146 = scmp.eq.s32.totalorder %s19, 1
    %p147 = por %p145, %p146
    %p149 = scmp.ne.s32.totalorder %s134, %s148
    %p150 = scmp.eq.s32.totalorder %s19, 0
    %p151 = por %p149, %p150
    %s153 = sadd.s32 %s152, 1
    %p156 = scmp.eq.s32.totalorder %s13, 1
    %p157 = scmp.ne.s32.totalorder %s152, %s154
    %p158 = scmp.eq.s32.totalorder %s13, 0
    %p159 = por %p157, %p158
    %p160 = scmp.ne.s32.totalorder %s152, %s154
    %p161 = scmp.eq.s32.totalorder %s18, 1
    %p162 = por %p160, %p161
    %p163 = scmp.ne.s32.totalorder %s154, %s155
    %p164 = scmp.eq.s32.totalorder %s18, 0
    %p165 = por %p163, %p164
    %p166 = scmp.ne.s32.totalorder %s154, %s155
    %p167 = scmp.eq.s32.totalorder %s19, 1
    %p168 = por %p166, %p167
    %p170 = scmp.ne.s32.totalorder %s155, %s169
    %p171 = scmp.eq.s32.totalorder %s19, 0
    %p172 = por %p170, %p171
    %s173 = ssub.s32 %s13, %s20
    %p174 = scmp.eq.s32.totalorder %s173, 0
    %s176 = sadd.s32 %s175, 1
    %s177 = scalar_select %p174, %s175, %s176
    %p180 = pneg %p174
    %p181 = scmp.eq.s32.totalorder %s13, 1
    %p182 = por %p180, %p181
    %p183 = scmp.ne.s32.totalorder %s175, %s178
    %p184 = scmp.eq.s32.totalorder %s13, 0
    %p185 = por %p183, %p184
    %p186 = scmp.ne.s32.totalorder %s175, %s178
    %p187 = scmp.eq.s32.totalorder %s18, 1
    %p188 = por %p186, %p187
    %p189 = scmp.ne.s32.totalorder %s178, %s179
    %p190 = scmp.eq.s32.totalorder %s18, 0
    %p191 = por %p189, %p190
    %p192 = scmp.ne.s32.totalorder %s178, %s179
    %p193 = scmp.eq.s32.totalorder %s19, 1
    %p194 = por %p192, %p193
    %p196 = scmp.ne.s32.totalorder %s179, %s195
    %p197 = scmp.eq.s32.totalorder %s19, 0
    %p198 = por %p196, %p197
    %p199 = scmp.le.s32.totalorder 1, %s13
    %p200 = scmp.lt.s32.totalorder %s13, 3
    %p201 = pnand %p199, %p200
    %p202 = pneg %p201
    // Predicated region
    $region9: #{net_forward.1} parent=5 // pred_check
      _
    $region10: #{net_forward.1} parent=5 // pred_check_branch
      %204 = sbr.rel (%p201) target = $region12
    $region11: #{net_forward.1} parent=5 // pred_region
      %s205 = ssub.s32 %s13, 1
      // Predicated region
      $region13: #{net_forward.1} parent=11 // pred_check
        %p206 = pneg %p60
      $region14: #{net_forward.1} parent=11 // pred_check_branch
        %208 = sbr.rel (%p206) target = $region16
      $region15: #{net_forward.1} parent=11 // pred_region
        _
      $region16: #{net_forward.1} parent=11 // pred_fallthru
        _
      // Predicated region
      $region17: #{net_forward.1} parent=11 // pred_check
        %p209 = pneg %p81
      $region18: #{net_forward.1} parent=11 // pred_check_branch
        %211 = sbr.rel (%p209) target = $region20
      $region19: #{net_forward.1} parent=11 // pred_region
        _
      $region20: #{net_forward.1} parent=11 // pred_fallthru
        _
      // Predicated region
      $region21: #{net_forward.1} parent=11 // pred_check
        %p212 = pneg %p102
      $region22: #{net_forward.1} parent=11 // pred_check_branch
        %214 = sbr.rel (%p212) target = $region24
      $region23: #{net_forward.1} parent=11 // pred_region
        _
      $region24: #{net_forward.1} parent=11 // pred_fallthru
        _
      // Predicated region
      $region25: #{net_forward.1} parent=11 // pred_check
        %p215 = pneg %p123
      $region26: #{net_forward.1} parent=11 // pred_check_branch
        %217 = sbr.rel (%p215) target = $region28
      $region27: #{net_forward.1} parent=11 // pred_region
        _
      $region28: #{net_forward.1} parent=11 // pred_fallthru
        _
      // Predicated region
      $region29: #{net_forward.1} parent=11 // pred_check
        %p218 = pneg %p144
      $region30: #{net_forward.1} parent=11 // pred_check_branch
        %220 = sbr.rel (%p218) target = $region32
      $region31: #{net_forward.1} parent=11 // pred_region
        _
      $region32: #{net_forward.1} parent=11 // pred_fallthru
        _
      // Predicated region
      $region33: #{net_forward.1} parent=11 // pred_check
        %p221 = pneg %p165
      $region34: #{net_forward.1} parent=11 // pred_check_branch
        %223 = sbr.rel (%p221) target = $region36
      $region35: #{net_forward.1} parent=11 // pred_region
        _
      $region36: #{net_forward.1} parent=11 // pred_fallthru
        _
    $region12: #{net_forward.1} parent=5 // pred_fallthru
      _
    %p224 = scmp.lt.s32.totalorder %s13, 2
    // Predicated region
    $region37: #{net_forward.1} parent=5 // pred_check
      %p225 = pneg %p224
    $region38: #{net_forward.1} parent=5 // pred_check_branch
      %227 = sbr.rel (%p225) target = $region40
    $region39: #{net_forward.1} parent=5 // pred_region
      // Predicated region
      $region41: #{net_forward.1} parent=39 // pred_check
        %p228 = pneg %p33
      $region42: #{net_forward.1} parent=39 // pred_check_branch
        %230 = sbr.rel (%p228) target = $region44
      $region43: #{net_forward.1} parent=39 // pred_region
        %s231 = smul.u32 16, %s13
        %p232 = scmp.lt.s32.totalorder %s231, 31
        %s233 = scalar_select %p232, %s231, 31
        %s234 = smul.addr %s233, 7
        %s235 = smul.addr %s234, 4
        %s236 = scalar_lea.vmem %s0, %s235
        %s237 = smul.u32 16, %s13
      $region44: #{net_forward.1} parent=39 // pred_fallthru
        _
    $region40: #{net_forward.1} parent=5 // pred_fallthru
      _
    %p238 = scmp.le.s32.totalorder 1, %s13
    %p239 = scmp.lt.s32.totalorder %s13, 3
    %p240 = pnand %p238, %p239
    %p241 = pneg %p240
    // Predicated region
    $region45: #{net_forward.1} parent=5 // pred_check
      _
    $region46: #{net_forward.1} parent=5 // pred_check_branch
      %243 = sbr.rel (%p240) target = $region48
    $region47: #{net_forward.1} parent=5 // pred_region
      %s244 = ssub.s32 %s13, 1
      %s245 = smul.u32 16, %s18
      %p246 = scmp.lt.s32.totalorder %s245, 31
      %s247 = scalar_select %p246, %s245, 31
      %s248 = smul.addr %s247, 7
      %s249 = smul.addr %s248, 4
      %s250 = scalar_lea.vmem %s0, %s249
      %p251 = pneg %p39
      %p252 = pneg %p36
      %p253 = pneg %p60
      %p254 = pneg %p57
      %p255 = pneg %p81
      %p256 = pneg %p78
      %p257 = pneg %p102
      %p258 = pneg %p99
      %p259 = pneg %p123
      %p260 = pneg %p120
      %p261 = pneg %p144
      %p262 = pneg %p141
      %p263 = pneg %p165
      %p264 = pneg %p162
      %p265 = pneg %p191
      %p266 = pneg %p188
      %s267 = smul.u32 16, %s18
      %p268 = scmp.lt.s32.totalorder %s267, 31
      %s269 = scalar_select %p268, %s267, 31
      %s270 = smul.addr %s269, 8
      %s271 = scalar_lea.vmem %s7, %s270
      %s272 = smul.u32 16, %s18
      %p273 = scmp.lt.s32.totalorder %s272, 31
      %s274 = scalar_select %p273, %s272, 31
      %s275 = smul.addr %s274, 7
      %s276 = smul.addr %s275, 4
      %s277 = scalar_lea.vmem %s0, %s276
      %s278 = smul.u32 16, %s18
      %s279 = smul.u32 16, %s18
      %p280 = scmp.lt.s32.totalorder %s279, 31
      %s281 = scalar_select %p280, %s279, 31
      %s282 = smul.addr %s281, 8
      %s283 = scalar_lea.vmem %s7, %s282
      %s284 = smul.u32 16, %s18
      %v286 = vld [vmem:[%s5] sm:$0x3f]
      %v287 = vld [vmem:[%s5 + $0x8] sm:$0x3f]
      %v288 = vld [vmem:[%s5 + $0x10] sm:$0x3f]
      %v289 = vld [vmem:[%s5 + $0x18] sm:$0x3f]
      %v290 = vld [vmem:[%s277] sm:$0xff]
      %v291 = vld [vmem:[%s277 + $0x8] sm:$0xff]
      %v292 = vld [vmem:[%s277 + $0x10] sm:$0xff]
      %v293 = vld [vmem:[%s277 + $0x18] sm:$0xf]
      %v294 = vld [vmem:[%s277 + $0x1c] sm:$0xff]
      %v295 = vld [vmem:[%s277 + $0x24] sm:$0xff]
      %v296 = vld [vmem:[%s277 + $0x2c] sm:$0xff]
      %v297 = vld [vmem:[%s277 + $0x34] sm:$0xf]
      %v298 = vld [vmem:[%s277 + $0x38] sm:$0xff]
      %v299 = vld [vmem:[%s277 + $0x40] sm:$0xff]
      %v300 = vld [vmem:[%s277 + $0x48] sm:$0xff]
      %v301 = vld [vmem:[%s277 + $0x50] sm:$0xf]
      %v302 = vld [vmem:[%s277 + $0x54] sm:$0xff]
      %v303 = vld [vmem:[%s277 + $0x5c] sm:$0xff]
      %v304 = vld [vmem:[%s277 + $0x64] sm:$0xff]
      %v305 = vld [vmem:[%s277 + $0x6c] sm:$0xf]
      %v306 = vld [vmem:[%s277 + $0x70] sm:$0xff]
      %v307 = vld [vmem:[%s277 + $0x78] sm:$0xff]
      %v308 = vld [vmem:[%s277 + $0x80] sm:$0xff]
      %v309 = vld [vmem:[%s277 + $0x88] sm:$0xf]
      %v310 = vld [vmem:[%s277 + $0x8c] sm:$0xff]
      %v311 = vld [vmem:[%s277 + $0x94] sm:$0xff]
      %v312 = vld [vmem:[%s277 + $0x9c] sm:$0xff]
      %v313 = vld [vmem:[%s277 + $0xa4] sm:$0xf]
      %v314 = vld [vmem:[%s277 + $0xa8] sm:$0xff]
      %v315 = vld [vmem:[%s277 + $0xb0] sm:$0xff]
      %v316 = vld [vmem:[%s277 + $0xb8] sm:$0xff]
      %v317 = vld [vmem:[%s277 + $0xc0] sm:$0xf]
      %v318 = vld [vmem:[%s277 + $0xc4] sm:$0xff]
      %v319 = vld [vmem:[%s277 + $0xcc] sm:$0xff]
      %v320 = vld [vmem:[%s277 + $0xd4] sm:$0xff]
      %v321 = vld [vmem:[%s277 + $0xdc] sm:$0xf]
      %v322 = vld [vmem:[%s277 + $0xe0] sm:$0xff]
      %v323 = vld [vmem:[%s277 + $0xe8] sm:$0xff]
      %v324 = vld [vmem:[%s277 + $0xf0] sm:$0xff]
      %v325 = vld [vmem:[%s277 + $0xf8] sm:$0xf]
      %v326 = vld [vmem:[%s277 + $0xfc] sm:$0xff]
      %v327 = vld [vmem:[%s277 + $0x104] sm:$0xff]
      %v328 = vld [vmem:[%s277 + $0x10c] sm:$0xff]
      %v329 = vld [vmem:[%s277 + $0x114] sm:$0xf]
      %v330 = vld [vmem:[%s277 + $0x118] sm:$0xff]
      %v331 = vld [vmem:[%s277 + $0x120] sm:$0xff]
      %v332 = vld [vmem:[%s277 + $0x128] sm:$0xff]
      %v333 = vld [vmem:[%s277 + $0x130] sm:$0xf]
      %v334 = vld [vmem:[%s277 + $0x134] sm:$0xff]
      %v335 = vld [vmem:[%s277 + $0x13c] sm:$0xff]
      %v336 = vld [vmem:[%s277 + $0x144] sm:$0xff]
      %v337 = vld [vmem:[%s277 + $0x14c] sm:$0xf]
      %v338 = vld [vmem:[%s277 + $0x150] sm:$0xff]
      %v339 = vld [vmem:[%s277 + $0x158] sm:$0xff]
      %v340 = vld [vmem:[%s277 + $0x160] sm:$0xff]
      %v341 = vld [vmem:[%s277 + $0x168] sm:$0xf]
      %v342 = vld [vmem:[%s277 + $0x16c] sm:$0xff]
      %v343 = vld [vmem:[%s277 + $0x174] sm:$0xff]
      %v344 = vld [vmem:[%s277 + $0x17c] sm:$0xff]
      %v345 = vld [vmem:[%s277 + $0x184] sm:$0xf]
      %v346 = vld [vmem:[%s277 + $0x188] sm:$0xff]
      %v347 = vld [vmem:[%s277 + $0x190] sm:$0xff]
      %v348 = vld [vmem:[%s277 + $0x198] sm:$0xff]
      %v349 = vld [vmem:[%s277 + $0x1a0] sm:$0xf]
      %v350 = vld [vmem:[%s277 + $0x1a4] sm:$0xff]
      %v351 = vld [vmem:[%s277 + $0x1ac] sm:$0xff]
      %v352 = vld [vmem:[%s277 + $0x1b4] sm:$0xff]
      %v353 = vld [vmem:[%s277 + $0x1bc] sm:$0xf]
      %v354 = vld [vmem:[%s1] sm:$0xff]
      %v355 = vld [vmem:[%s1 + $0x8] sm:$0xff]
      %v356 = vld [vmem:[%s1 + $0x10] sm:$0xff]
      %v357 = vld [vmem:[%s1 + $0x18] sm:$0xff]
      %v358 = vld [vmem:[%s1 + $0x20] sm:$0xff]
      %v359 = vld [vmem:[%s1 + $0x28] sm:$0xff]
      %v360 = vld [vmem:[%s1 + $0x30] sm:$0xff]
      %v361 = vld [vmem:[%s1 + $0x38] sm:$0xff]
      %v362 = vld [vmem:[%s1 + $0x40] sm:$0xff]
      %v363 = vld [vmem:[%s1 + $0x48] sm:$0xff]
      %v364 = vld [vmem:[%s1 + $0x50] sm:$0xff]
      %v365 = vld [vmem:[%s1 + $0x58] sm:$0xff]
      %v366 = vld [vmem:[%s1 + $0x60] sm:$0xff]
      %v367 = vld [vmem:[%s1 + $0x68] sm:$0xff]
      %v368 = vld [vmem:[%s1 + $0x70] sm:$0xff]
      %v369 = vld [vmem:[%s1 + $0x78] sm:$0xff]
      %v370 = vld [vmem:[%s1 + $0x80] sm:$0xff]
      %v371 = vld [vmem:[%s1 + $0x88] sm:$0xff]
      %v372 = vld [vmem:[%s1 + $0x90] sm:$0xff]
      %v373 = vld [vmem:[%s1 + $0x98] sm:$0xff]
      %v374 = vld [vmem:[%s1 + $0xa0] sm:$0xff]
      %v375 = vld [vmem:[%s1 + $0xa8] sm:$0xff]
      %v376 = vld [vmem:[%s1 + $0xb0] sm:$0xff]
      %v377 = vld [vmem:[%s1 + $0xb8] sm:$0xff]
      %v378 = vld [vmem:[%s1 + $0xc0] sm:$0xff]
      %v379 = vld [vmem:[%s1 + $0xc8] sm:$0xff]
      %v380 = vld [vmem:[%s1 + $0xd0] sm:$0xff]
      %v381 = vld [vmem:[%s1 + $0xd8] sm:$0xff]
      %v382 = vld [vmem:[%s1 + $0xe0] sm:$0xff]
      %v383 = vld [vmem:[%s1 + $0xe8] sm:$0xff]
      %v384 = vld [vmem:[%s1 + $0xf0] sm:$0xff]
      %v385 = vld [vmem:[%s1 + $0xf8] sm:$0xff]
      %v386 = vld [vmem:[%s1 + $0x100] sm:$0xff]
      %v387 = vld [vmem:[%s1 + $0x108] sm:$0xff]
      %v388 = vld [vmem:[%s1 + $0x110] sm:$0xff]
      %v389 = vld [vmem:[%s1 + $0x118] sm:$0xff]
      %v390 = vld [vmem:[%s1 + $0x120] sm:$0xff]
      %v391 = vld [vmem:[%s1 + $0x128] sm:$0xff]
      %v392 = vld [vmem:[%s1 + $0x130] sm:$0xff]
      %v393 = vld [vmem:[%s1 + $0x138] sm:$0xff]
      %v394 = vld [vmem:[%s1 + $0x140] sm:$0xff]
      %v395 = vld [vmem:[%s1 + $0x148] sm:$0xff]
      %v396 = vld [vmem:[%s1 + $0x150] sm:$0xff]
      %v397 = vld [vmem:[%s1 + $0x158] sm:$0xff]
      %v398 = vld [vmem:[%s1 + $0x160] sm:$0xff]
      %v399 = vld [vmem:[%s1 + $0x168] sm:$0xff]
      %v400 = vld [vmem:[%s1 + $0x170] sm:$0xff]
      %v401 = vld [vmem:[%s1 + $0x178] sm:$0xff]
      %v402 = vld [vmem:[%s1 + $0x180] sm:$0xff]
      %v403 = vld [vmem:[%s1 + $0x188] sm:$0xff]
      %v404 = vld [vmem:[%s1 + $0x190] sm:$0xff]
      %v405 = vld [vmem:[%s1 + $0x198] sm:$0xff]
      %v406 = vld [vmem:[%s1 + $0x1a0] sm:$0xff]
      %v407 = vld [vmem:[%s1 + $0x1a8] sm:$0xff]
      %v408 = vld [vmem:[%s1 + $0x1b0] sm:$0xff]
      %v409 = vld [vmem:[%s1 + $0x1b8] sm:$0xff]
      %v410 = vld [vmem:[%s1 + $0x1c0] sm:$0xff]
      %v411 = vld [vmem:[%s1 + $0x1c8] sm:$0xff]
      %v412 = vld [vmem:[%s1 + $0x1d0] sm:$0xff]
      %v413 = vld [vmem:[%s1 + $0x1d8] sm:$0xff]
      %v414 = vld [vmem:[%s1 + $0x1e0] sm:$0xff]
      %v415 = vld [vmem:[%s1 + $0x1e8] sm:$0xff]
      %v416 = vld [vmem:[%s1 + $0x1f0] sm:$0xff]
      %v417 = vld [vmem:[%s1 + $0x1f8] sm:$0xff]
      %v418 = vld [vmem:[%s1 + $0x200] sm:$0xff]
      %v419 = vld [vmem:[%s1 + $0x208] sm:$0xff]
      %v420 = vld [vmem:[%s1 + $0x210] sm:$0xff]
      %v421 = vld [vmem:[%s1 + $0x218] sm:$0xff]
      %v422 = vld [vmem:[%s1 + $0x220] sm:$0xff]
      %v423 = vld [vmem:[%s1 + $0x228] sm:$0xff]
      %v424 = vld [vmem:[%s1 + $0x230] sm:$0xff]
      %v425 = vld [vmem:[%s1 + $0x238] sm:$0xff]
      %v426 = vld [vmem:[%s1 + $0x240] sm:$0xff]
      %v427 = vld [vmem:[%s1 + $0x248] sm:$0xff]
      %v428 = vld [vmem:[%s1 + $0x250] sm:$0xff]
      %v429 = vld [vmem:[%s1 + $0x258] sm:$0xff]
      %v430 = vld [vmem:[%s1 + $0x260] sm:$0xff]
      %v431 = vld [vmem:[%s1 + $0x268] sm:$0xff]
      %v432 = vld [vmem:[%s1 + $0x270] sm:$0xff]
      %v433 = vld [vmem:[%s1 + $0x278] sm:$0xff]
      %v434 = vld [vmem:[%s1 + $0x280] sm:$0xff]
      %v435 = vld [vmem:[%s1 + $0x288] sm:$0xff]
      %v436 = vld [vmem:[%s1 + $0x290] sm:$0xff]
      %v437 = vld [vmem:[%s1 + $0x298] sm:$0xff]
      %v438 = vld [vmem:[%s1 + $0x2a0] sm:$0xff]
      %v439 = vld [vmem:[%s1 + $0x2a8] sm:$0xff]
      %v440 = vld [vmem:[%s1 + $0x2b0] sm:$0xff]
      %v441 = vld [vmem:[%s1 + $0x2b8] sm:$0xff]
      %v442 = vld [vmem:[%s1 + $0x2c0] sm:$0xff]
      %v443 = vld [vmem:[%s1 + $0x2c8] sm:$0xff]
      %v444 = vld [vmem:[%s1 + $0x2d0] sm:$0xff]
      %v445 = vld [vmem:[%s1 + $0x2d8] sm:$0xff]
      %v446 = vld [vmem:[%s1 + $0x2e0] sm:$0xff]
      %v447 = vld [vmem:[%s1 + $0x2e8] sm:$0xff]
      %v448 = vld [vmem:[%s1 + $0x2f0] sm:$0xff]
      %v449 = vld [vmem:[%s1 + $0x2f8] sm:$0xff]
      %v450 = vld [vmem:[%s1 + $0x300] sm:$0xff]
      %v451 = vld [vmem:[%s1 + $0x308] sm:$0xff]
      %v452 = vld [vmem:[%s1 + $0x310] sm:$0xff]
      %v453 = vld [vmem:[%s1 + $0x318] sm:$0xff]
      %v454 = vld [vmem:[%s1 + $0x320] sm:$0xff]
      %v455 = vld [vmem:[%s1 + $0x328] sm:$0xff]
      %v456 = vld [vmem:[%s1 + $0x330] sm:$0xff]
      %v457 = vld [vmem:[%s1 + $0x338] sm:$0xff]
      %v458 = vld [vmem:[%s1 + $0x340] sm:$0xff]
      %v459 = vld [vmem:[%s1 + $0x348] sm:$0xff]
      %v460 = vld [vmem:[%s1 + $0x350] sm:$0xff]
      %v461 = vld [vmem:[%s1 + $0x358] sm:$0xff]
      %v462 = vld [vmem:[%s1 + $0x360] sm:$0xff]
      %v463 = vld [vmem:[%s1 + $0x368] sm:$0xff]
      %v464 = vld [vmem:[%s1 + $0x370] sm:$0xff]
      %v465 = vld [vmem:[%s1 + $0x378] sm:$0xff]
      %v466 = vld [vmem:[%s1 + $0x380] sm:$0xff]
      %v467 = vld [vmem:[%s1 + $0x388] sm:$0xff]
      %v468 = vld [vmem:[%s1 + $0x390] sm:$0xff]
      %v469 = vld [vmem:[%s1 + $0x398] sm:$0xff]
      %v470 = vld [vmem:[%s1 + $0x3a0] sm:$0xff]
      %v471 = vld [vmem:[%s1 + $0x3a8] sm:$0xff]
      %v472 = vld [vmem:[%s1 + $0x3b0] sm:$0xff]
      %v473 = vld [vmem:[%s1 + $0x3b8] sm:$0xff]
      %v474 = vld [vmem:[%s1 + $0x3c0] sm:$0xff]
      %v475 = vld [vmem:[%s1 + $0x3c8] sm:$0xff]
      %v476 = vld [vmem:[%s1 + $0x3d0] sm:$0xff]
      %v477 = vld [vmem:[%s1 + $0x3d8] sm:$0xff]
      %v478 = vld [vmem:[%s1 + $0x3e0] sm:$0xff]
      %v479 = vld [vmem:[%s1 + $0x3e8] sm:$0xff]
      %v480 = vld [vmem:[%s1 + $0x3f0] sm:$0xff]
      %v481 = vld [vmem:[%s1 + $0x3f8] sm:$0xff]
      %v482 = vld [vmem:[%s1 + $0x400] sm:$0xff]
      %v483 = vld [vmem:[%s1 + $0x408] sm:$0xff]
      %v484 = vld [vmem:[%s1 + $0x410] sm:$0xff]
      %v485 = vld [vmem:[%s1 + $0x418] sm:$0xff]
      %v486 = vld [vmem:[%s1 + $0x420] sm:$0xff]
      %v487 = vld [vmem:[%s1 + $0x428] sm:$0xff]
      %v488 = vld [vmem:[%s1 + $0x430] sm:$0xff]
      %v489 = vld [vmem:[%s1 + $0x438] sm:$0xff]
      %v490 = vld [vmem:[%s1 + $0x440] sm:$0xff]
      %v491 = vld [vmem:[%s1 + $0x448] sm:$0xff]
      %v492 = vld [vmem:[%s1 + $0x450] sm:$0xff]
      %v493 = vld [vmem:[%s1 + $0x458] sm:$0xff]
      %v494 = vld [vmem:[%s1 + $0x460] sm:$0xff]
      %v495 = vld [vmem:[%s1 + $0x468] sm:$0xff]
      %v496 = vld [vmem:[%s1 + $0x470] sm:$0xff]
      %v497 = vld [vmem:[%s1 + $0x478] sm:$0xff]
      %v498 = vld [vmem:[%s1 + $0x480] sm:$0xff]
      %v499 = vld [vmem:[%s1 + $0x488] sm:$0xff]
      %v500 = vld [vmem:[%s1 + $0x490] sm:$0xff]
      %v501 = vld [vmem:[%s1 + $0x498] sm:$0xff]
      %v502 = vld [vmem:[%s1 + $0x4a0] sm:$0xff]
      %v503 = vld [vmem:[%s1 + $0x4a8] sm:$0xff]
      %v504 = vld [vmem:[%s1 + $0x4b0] sm:$0xff]
      %v505 = vld [vmem:[%s1 + $0x4b8] sm:$0xff]
      %v506 = vld [vmem:[%s1 + $0x4c0] sm:$0xff]
      %v507 = vld [vmem:[%s1 + $0x4c8] sm:$0xff]
      %v508 = vld [vmem:[%s1 + $0x4d0] sm:$0xff]
      %v509 = vld [vmem:[%s1 + $0x4d8] sm:$0xff]
      %v510 = vld [vmem:[%s1 + $0x4e0] sm:$0xff]
      %v511 = vld [vmem:[%s1 + $0x4e8] sm:$0xff]
      %v512 = vld [vmem:[%s1 + $0x4f0] sm:$0xff]
      %v513 = vld [vmem:[%s1 + $0x4f8] sm:$0xff]
      %v514 = vld [vmem:[%s1 + $0x500] sm:$0xff]
      %v515 = vld [vmem:[%s1 + $0x508] sm:$0xff]
      %v516 = vld [vmem:[%s1 + $0x510] sm:$0xff]
      %v517 = vld [vmem:[%s1 + $0x518] sm:$0xff]
      %v518 = vld [vmem:[%s1 + $0x520] sm:$0xff]
      %v519 = vld [vmem:[%s1 + $0x528] sm:$0xff]
      %v520 = vld [vmem:[%s1 + $0x530] sm:$0xff]
      %v521 = vld [vmem:[%s1 + $0x538] sm:$0xff]
      %v522 = vld [vmem:[%s1 + $0x540] sm:$0xff]
      %v523 = vld [vmem:[%s1 + $0x548] sm:$0xff]
      %v524 = vld [vmem:[%s1 + $0x550] sm:$0xff]
      %v525 = vld [vmem:[%s1 + $0x558] sm:$0xff]
      %v526 = vld [vmem:[%s1 + $0x560] sm:$0xff]
      %v527 = vld [vmem:[%s1 + $0x568] sm:$0xff]
      %v528 = vld [vmem:[%s1 + $0x570] sm:$0xff]
      %v529 = vld [vmem:[%s1 + $0x578] sm:$0xff]
      %v530 = vld [vmem:[%s1 + $0x580] sm:$0xff]
      %v531 = vld [vmem:[%s1 + $0x588] sm:$0xff]
      %v532 = vld [vmem:[%s1 + $0x590] sm:$0xff]
      %v533 = vld [vmem:[%s1 + $0x598] sm:$0xff]
      %v534 = vld [vmem:[%s1 + $0x5a0] sm:$0xff]
      %v535 = vld [vmem:[%s1 + $0x5a8] sm:$0xff]
      %v536 = vld [vmem:[%s1 + $0x5b0] sm:$0xff]
      %v537 = vld [vmem:[%s1 + $0x5b8] sm:$0xff]
      %v538 = vld [vmem:[%s1 + $0x5c0] sm:$0xff]
      %v539 = vld [vmem:[%s1 + $0x5c8] sm:$0xff]
      %v540 = vld [vmem:[%s1 + $0x5d0] sm:$0xff]
      %v541 = vld [vmem:[%s1 + $0x5d8] sm:$0xff]
      %v542 = vld [vmem:[%s1 + $0x5e0] sm:$0xff]
      %v543 = vld [vmem:[%s1 + $0x5e8] sm:$0xff]
      %v544 = vld [vmem:[%s1 + $0x5f0] sm:$0xff]
      %v545 = vld [vmem:[%s1 + $0x5f8] sm:$0xff]
      %v546 = vld [vmem:[%s1 + $0x600] sm:$0xff]
      %v547 = vld [vmem:[%s1 + $0x608] sm:$0xff]
      %v548 = vld [vmem:[%s1 + $0x610] sm:$0xff]
      %v549 = vld [vmem:[%s1 + $0x618] sm:$0xff]
      %v550 = vld [vmem:[%s1 + $0x620] sm:$0xff]
      %v551 = vld [vmem:[%s1 + $0x628] sm:$0xff]
      %v552 = vld [vmem:[%s1 + $0x630] sm:$0xff]
      %v553 = vld [vmem:[%s1 + $0x638] sm:$0xff]
      %v554 = vld [vmem:[%s1 + $0x640] sm:$0xff]
      %v555 = vld [vmem:[%s1 + $0x648] sm:$0xff]
      %v556 = vld [vmem:[%s1 + $0x650] sm:$0xff]
      %v557 = vld [vmem:[%s1 + $0x658] sm:$0xff]
      %v558 = vld [vmem:[%s1 + $0x660] sm:$0xff]
      %v559 = vld [vmem:[%s1 + $0x668] sm:$0xff]
      %v560 = vld [vmem:[%s1 + $0x670] sm:$0xff]
      %v561 = vld [vmem:[%s1 + $0x678] sm:$0xff]
      %v562 = vld [vmem:[%s1 + $0x680] sm:$0xff]
      %v563 = vld [vmem:[%s1 + $0x688] sm:$0xff]
      %v564 = vld [vmem:[%s1 + $0x690] sm:$0xff]
      %v565 = vld [vmem:[%s1 + $0x698] sm:$0xff]
      %v566 = vld [vmem:[%s1 + $0x6a0] sm:$0xff]
      %v567 = vld [vmem:[%s1 + $0x6a8] sm:$0xff]
      %v568 = vld [vmem:[%s1 + $0x6b0] sm:$0xff]
      %v569 = vld [vmem:[%s1 + $0x6b8] sm:$0xff]
      %v570 = vld [vmem:[%s1 + $0x6c0] sm:$0xff]
      %v571 = vld [vmem:[%s1 + $0x6c8] sm:$0xff]
      %v572 = vld [vmem:[%s1 + $0x6d0] sm:$0xff]
      %v573 = vld [vmem:[%s1 + $0x6d8] sm:$0xff]
      %v574 = vld [vmem:[%s1 + $0x6e0] sm:$0xff]
      %v575 = vld [vmem:[%s1 + $0x6e8] sm:$0xff]
      %v576 = vld [vmem:[%s1 + $0x6f0] sm:$0xff]
      %v577 = vld [vmem:[%s1 + $0x6f8] sm:$0xff]
      %v642 = vunpack.c.l.b16 %v290
      %v643 = vunpack.c.h.b16 %v290
      %v644 = vunpack.c.l.b16 %v291
      %v645 = vunpack.c.h.b16 %v291
      %v646 = vunpack.c.l.b16 %v292
      %v647 = vunpack.c.h.b16 %v292
      %v648 = vunpack.c.l.b16 %v293
      %v649 = vunpack.c.l.b16 %v294
      %v650 = vunpack.c.h.b16 %v294
      %v651 = vunpack.c.l.b16 %v295
      %v652 = vunpack.c.h.b16 %v295
      %v653 = vunpack.c.l.b16 %v296
      %v654 = vunpack.c.h.b16 %v296
      %v655 = vunpack.c.l.b16 %v297
      %v656 = vunpack.c.l.b16 %v298
      %v657 = vunpack.c.h.b16 %v298
      %v658 = vunpack.c.l.b16 %v299
      %v659 = vunpack.c.h.b16 %v299
      %v660 = vunpack.c.l.b16 %v300
      %v661 = vunpack.c.h.b16 %v300
      %v662 = vunpack.c.l.b16 %v301
      %v663 = vunpack.c.l.b16 %v302
      %v664 = vunpack.c.h.b16 %v302
      %v665 = vunpack.c.l.b16 %v303
      %v666 = vunpack.c.h.b16 %v303
      %v667 = vunpack.c.l.b16 %v304
      %v668 = vunpack.c.h.b16 %v304
      %v669 = vunpack.c.l.b16 %v305
      %v670 = vunpack.c.l.b16 %v306
      %v671 = vunpack.c.h.b16 %v306
      %v672 = vunpack.c.l.b16 %v307
      %v673 = vunpack.c.h.b16 %v307
      %v674 = vunpack.c.l.b16 %v308
      %v675 = vunpack.c.h.b16 %v308
      %v676 = vunpack.c.l.b16 %v309
      %v677 = vunpack.c.l.b16 %v310
      %v678 = vunpack.c.h.b16 %v310
      %v679 = vunpack.c.l.b16 %v311
      %v680 = vunpack.c.h.b16 %v311
      %v681 = vunpack.c.l.b16 %v312
      %v682 = vunpack.c.h.b16 %v312
      %v683 = vunpack.c.l.b16 %v313
      %v684 = vunpack.c.l.b16 %v314
      %v685 = vunpack.c.h.b16 %v314
      %v686 = vunpack.c.l.b16 %v315
      %v687 = vunpack.c.h.b16 %v315
      %v688 = vunpack.c.l.b16 %v316
      %v689 = vunpack.c.h.b16 %v316
      %v690 = vunpack.c.l.b16 %v317
      %v691 = vunpack.c.l.b16 %v318
      %v692 = vunpack.c.h.b16 %v318
      %v693 = vunpack.c.l.b16 %v319
      %v694 = vunpack.c.h.b16 %v319
      %v695 = vunpack.c.l.b16 %v320
      %v696 = vunpack.c.h.b16 %v320
      %v697 = vunpack.c.l.b16 %v321
      %v698 = vunpack.c.l.b16 %v322
      %v699 = vunpack.c.h.b16 %v322
      %v700 = vunpack.c.l.b16 %v323
      %v701 = vunpack.c.h.b16 %v323
      %v702 = vunpack.c.l.b16 %v324
      %v703 = vunpack.c.h.b16 %v324
      %v704 = vunpack.c.l.b16 %v325
      %v705 = vunpack.c.l.b16 %v326
      %v706 = vunpack.c.h.b16 %v326
      %v707 = vunpack.c.l.b16 %v327
      %v708 = vunpack.c.h.b16 %v327
      %v709 = vunpack.c.l.b16 %v328
      %v710 = vunpack.c.h.b16 %v328
      %v711 = vunpack.c.l.b16 %v329
      %v712 = vunpack.c.l.b16 %v330
      %v713 = vunpack.c.h.b16 %v330
      %v714 = vunpack.c.l.b16 %v331
      %v715 = vunpack.c.h.b16 %v331
      %v716 = vunpack.c.l.b16 %v332
      %v717 = vunpack.c.h.b16 %v332
      %v718 = vunpack.c.l.b16 %v333
      %v719 = vunpack.c.l.b16 %v334
      %v720 = vunpack.c.h.b16 %v334
      %v721 = vunpack.c.l.b16 %v335
      %v722 = vunpack.c.h.b16 %v335
      %v723 = vunpack.c.l.b16 %v336
      %v724 = vunpack.c.h.b16 %v336
      %v725 = vunpack.c.l.b16 %v337
      %v726 = vunpack.c.l.b16 %v338
      %v727 = vunpack.c.h.b16 %v338
      %v728 = vunpack.c.l.b16 %v339
      %v729 = vunpack.c.h.b16 %v339
      %v730 = vunpack.c.l.b16 %v340
      %v731 = vunpack.c.h.b16 %v340
      %v732 = vunpack.c.l.b16 %v341
      %v733 = vunpack.c.l.b16 %v342
      %v734 = vunpack.c.h.b16 %v342
      %v735 = vunpack.c.l.b16 %v343
      %v736 = vunpack.c.h.b16 %v343
      %v737 = vunpack.c.l.b16 %v344
      %v738 = vunpack.c.h.b16 %v344
      %v739 = vunpack.c.l.b16 %v345
      %v740 = vunpack.c.l.b16 %v346
      %v741 = vunpack.c.h.b16 %v346
      %v742 = vunpack.c.l.b16 %v347
      %v743 = vunpack.c.h.b16 %v347
      %v744 = vunpack.c.l.b16 %v348
      %v745 = vunpack.c.h.b16 %v348
      %v746 = vunpack.c.l.b16 %v349
      %v747 = vunpack.c.l.b16 %v350
      %v748 = vunpack.c.h.b16 %v350
      %v749 = vunpack.c.l.b16 %v351
      %v750 = vunpack.c.h.b16 %v351
      %v751 = vunpack.c.l.b16 %v352
      %v752 = vunpack.c.h.b16 %v352
      %v753 = vunpack.c.l.b16 %v353
      %v754 = vpack.c.b16 %v649, %v642
      %v755 = vpack.c.b16 %v650, %v643
      %v756 = vpack.c.b16 %v651, %v644
      %v757 = vpack.c.b16 %v652, %v645
      %v758 = vpack.c.b16 %v653, %v646
      %v759 = vpack.c.b16 %v654, %v647
      %v760 = vpack.c.b16 %v655, %v648
      %v761 = vpack.c.b16 %v663, %v656
      %v762 = vpack.c.b16 %v664, %v657
      %v763 = vpack.c.b16 %v665, %v658
      %v764 = vpack.c.b16 %v666, %v659
      %v765 = vpack.c.b16 %v667, %v660
      %v766 = vpack.c.b16 %v668, %v661
      %v767 = vpack.c.b16 %v669, %v662
      %v768 = vpack.c.b16 %v677, %v670
      %v769 = vpack.c.b16 %v678, %v671
      %v770 = vpack.c.b16 %v679, %v672
      %v771 = vpack.c.b16 %v680, %v673
      %v772 = vpack.c.b16 %v681, %v674
      %v773 = vpack.c.b16 %v682, %v675
      %v774 = vpack.c.b16 %v683, %v676
      %v775 = vpack.c.b16 %v691, %v684
      %v776 = vpack.c.b16 %v692, %v685
      %v777 = vpack.c.b16 %v693, %v686
      %v778 = vpack.c.b16 %v694, %v687
      %v779 = vpack.c.b16 %v695, %v688
      %v780 = vpack.c.b16 %v696, %v689
      %v781 = vpack.c.b16 %v697, %v690
      %v782 = vpack.c.b16 %v705, %v698
      %v783 = vpack.c.b16 %v706, %v699
      %v784 = vpack.c.b16 %v707, %v700
      %v785 = vpack.c.b16 %v708, %v701
      %v786 = vpack.c.b16 %v709, %v702
      %v787 = vpack.c.b16 %v710, %v703
      %v788 = vpack.c.b16 %v711, %v704
      %v789 = vpack.c.b16 %v719, %v712
      %v790 = vpack.c.b16 %v720, %v713
      %v791 = vpack.c.b16 %v721, %v714
      %v792 = vpack.c.b16 %v722, %v715
      %v793 = vpack.c.b16 %v723, %v716
      %v794 = vpack.c.b16 %v724, %v717
      %v795 = vpack.c.b16 %v725, %v718
      %v796 = vpack.c.b16 %v733, %v726
      %v797 = vpack.c.b16 %v734, %v727
      %v798 = vpack.c.b16 %v735, %v728
      %v799 = vpack.c.b16 %v736, %v729
      %v800 = vpack.c.b16 %v737, %v730
      %v801 = vpack.c.b16 %v738, %v731
      %v802 = vpack.c.b16 %v739, %v732
      %v803 = vpack.c.b16 %v747, %v740
      %v804 = vpack.c.b16 %v748, %v741
      %v805 = vpack.c.b16 %v749, %v742
      %v806 = vpack.c.b16 %v750, %v743
      %v807 = vpack.c.b16 %v751, %v744
      %v808 = vpack.c.b16 %v752, %v745
      %v809 = vpack.c.b16 %v753, %v746
      %v1090 = vunpack.c.l.b16 %v354
      %v1091 = vunpack.c.h.b16 %v354
      %v1092 = vunpack.c.l.b16 %v355
      %v1093 = vunpack.c.h.b16 %v355
      %v1094 = vunpack.c.l.b16 %v356
      %v1095 = vunpack.c.h.b16 %v356
      %v1096 = vunpack.c.l.b16 %v357
      %v1097 = vunpack.c.h.b16 %v357
      %v1098 = vunpack.c.l.b16 %v358
      %v1099 = vunpack.c.h.b16 %v358
      %v1100 = vunpack.c.l.b16 %v359
      %v1101 = vunpack.c.h.b16 %v359
      %v1102 = vunpack.c.l.b16 %v360
      %v1103 = vunpack.c.h.b16 %v360
      %v1104 = vunpack.c.l.b16 %v361
      %v1105 = vunpack.c.h.b16 %v361
      %v1106 = vunpack.c.l.b16 %v362
      %v1107 = vunpack.c.h.b16 %v362
      %v1108 = vunpack.c.l.b16 %v363
      %v1109 = vunpack.c.h.b16 %v363
      %v1110 = vunpack.c.l.b16 %v364
      %v1111 = vunpack.c.h.b16 %v364
      %v1112 = vunpack.c.l.b16 %v365
      %v1113 = vunpack.c.h.b16 %v365
      %v1114 = vunpack.c.l.b16 %v366
      %v1115 = vunpack.c.h.b16 %v366
      %v1116 = vunpack.c.l.b16 %v367
      %v1117 = vunpack.c.h.b16 %v367
      %v1118 = vunpack.c.l.b16 %v368
      %v1119 = vunpack.c.h.b16 %v368
      %v1120 = vunpack.c.l.b16 %v369
      %v1121 = vunpack.c.h.b16 %v369
      %v1122 = vunpack.c.l.b16 %v370
      %v1123 = vunpack.c.h.b16 %v370
      %v1124 = vunpack.c.l.b16 %v371
      %v1125 = vunpack.c.h.b16 %v371
      %v1126 = vunpack.c.l.b16 %v372
      %v1127 = vunpack.c.h.b16 %v372
      %v1128 = vunpack.c.l.b16 %v373
      %v1129 = vunpack.c.h.b16 %v373
      %v1130 = vunpack.c.l.b16 %v374
      %v1131 = vunpack.c.h.b16 %v374
      %v1132 = vunpack.c.l.b16 %v375
      %v1133 = vunpack.c.h.b16 %v375
      %v1134 = vunpack.c.l.b16 %v376
      %v1135 = vunpack.c.h.b16 %v376
      %v1136 = vunpack.c.l.b16 %v377
      %v1137 = vunpack.c.h.b16 %v377
      %v1138 = vunpack.c.l.b16 %v378
      %v1139 = vunpack.c.h.b16 %v378
      %v1140 = vunpack.c.l.b16 %v379
      %v1141 = vunpack.c.h.b16 %v379
      %v1142 = vunpack.c.l.b16 %v380
      %v1143 = vunpack.c.h.b16 %v380
      %v1144 = vunpack.c.l.b16 %v381
      %v1145 = vunpack.c.h.b16 %v381
      %v1146 = vunpack.c.l.b16 %v382
      %v1147 = vunpack.c.h.b16 %v382
      %v1148 = vunpack.c.l.b16 %v383
      %v1149 = vunpack.c.h.b16 %v383
      %v1150 = vunpack.c.l.b16 %v384
      %v1151 = vunpack.c.h.b16 %v384
      %v1152 = vunpack.c.l.b16 %v385
      %v1153 = vunpack.c.h.b16 %v385
      %v1154 = vunpack.c.l.b16 %v386
      %v1155 = vunpack.c.h.b16 %v386
      %v1156 = vunpack.c.l.b16 %v387
      %v1157 = vunpack.c.h.b16 %v387
      %v1158 = vunpack.c.l.b16 %v388
      %v1159 = vunpack.c.h.b16 %v388
      %v1160 = vunpack.c.l.b16 %v389
      %v1161 = vunpack.c.h.b16 %v389
      %v1162 = vunpack.c.l.b16 %v390
      %v1163 = vunpack.c.h.b16 %v390
      %v1164 = vunpack.c.l.b16 %v391
      %v1165 = vunpack.c.h.b16 %v391
      %v1166 = vunpack.c.l.b16 %v392
      %v1167 = vunpack.c.h.b16 %v392
      %v1168 = vunpack.c.l.b16 %v393
      %v1169 = vunpack.c.h.b16 %v393
      %v1170 = vunpack.c.l.b16 %v394
      %v1171 = vunpack.c.h.b16 %v394
      %v1172 = vunpack.c.l.b16 %v395
      %v1173 = vunpack.c.h.b16 %v395
      %v1174 = vunpack.c.l.b16 %v396
      %v1175 = vunpack.c.h.b16 %v396
      %v1176 = vunpack.c.l.b16 %v397
      %v1177 = vunpack.c.h.b16 %v397
      %v1178 = vunpack.c.l.b16 %v398
      %v1179 = vunpack.c.h.b16 %v398
      %v1180 = vunpack.c.l.b16 %v399
      %v1181 = vunpack.c.h.b16 %v399
      %v1182 = vunpack.c.l.b16 %v400
      %v1183 = vunpack.c.h.b16 %v400
      %v1184 = vunpack.c.l.b16 %v401
      %v1185 = vunpack.c.h.b16 %v401
      %v1186 = vunpack.c.l.b16 %v402
      %v1187 = vunpack.c.h.b16 %v402
      %v1188 = vunpack.c.l.b16 %v403
      %v1189 = vunpack.c.h.b16 %v403
      %v1190 = vunpack.c.l.b16 %v404
      %v1191 = vunpack.c.h.b16 %v404
      %v1192 = vunpack.c.l.b16 %v405
      %v1193 = vunpack.c.h.b16 %v405
      %v1194 = vunpack.c.l.b16 %v406
      %v1195 = vunpack.c.h.b16 %v406
      %v1196 = vunpack.c.l.b16 %v407
      %v1197 = vunpack.c.h.b16 %v407
      %v1198 = vunpack.c.l.b16 %v408
      %v1199 = vunpack.c.h.b16 %v408
      %v1200 = vunpack.c.l.b16 %v409
      %v1201 = vunpack.c.h.b16 %v409
      %v1202 = vunpack.c.l.b16 %v410
      %v1203 = vunpack.c.h.b16 %v410
      %v1204 = vunpack.c.l.b16 %v411
      %v1205 = vunpack.c.h.b16 %v411
      %v1206 = vunpack.c.l.b16 %v412
      %v1207 = vunpack.c.h.b16 %v412
      %v1208 = vunpack.c.l.b16 %v413
      %v1209 = vunpack.c.h.b16 %v413
      %v1210 = vunpack.c.l.b16 %v414
      %v1211 = vunpack.c.h.b16 %v414
      %v1212 = vunpack.c.l.b16 %v415
      %v1213 = vunpack.c.h.b16 %v415
      %v1214 = vunpack.c.l.b16 %v416
      %v1215 = vunpack.c.h.b16 %v416
      %v1216 = vunpack.c.l.b16 %v417
      %v1217 = vunpack.c.h.b16 %v417
      %v1218 = vunpack.c.l.b16 %v418
      %v1219 = vunpack.c.h.b16 %v418
      %v1220 = vunpack.c.l.b16 %v419
      %v1221 = vunpack.c.h.b16 %v419
      %v1222 = vunpack.c.l.b16 %v420
      %v1223 = vunpack.c.h.b16 %v420
      %v1224 = vunpack.c.l.b16 %v421
      %v1225 = vunpack.c.h.b16 %v421
      %v1226 = vunpack.c.l.b16 %v422
      %v1227 = vunpack.c.h.b16 %v422
      %v1228 = vunpack.c.l.b16 %v423
      %v1229 = vunpack.c.h.b16 %v423
      %v1230 = vunpack.c.l.b16 %v424
      %v1231 = vunpack.c.h.b16 %v424
      %v1232 = vunpack.c.l.b16 %v425
      %v1233 = vunpack.c.h.b16 %v425
      %v1234 = vunpack.c.l.b16 %v426
      %v1235 = vunpack.c.h.b16 %v426
      %v1236 = vunpack.c.l.b16 %v427
      %v1237 = vunpack.c.h.b16 %v427
      %v1238 = vunpack.c.l.b16 %v428
      %v1239 = vunpack.c.h.b16 %v428
      %v1240 = vunpack.c.l.b16 %v429
      %v1241 = vunpack.c.h.b16 %v429
      %v1242 = vunpack.c.l.b16 %v430
      %v1243 = vunpack.c.h.b16 %v430
      %v1244 = vunpack.c.l.b16 %v431
      %v1245 = vunpack.c.h.b16 %v431
      %v1246 = vunpack.c.l.b16 %v432
      %v1247 = vunpack.c.h.b16 %v432
      %v1248 = vunpack.c.l.b16 %v433
      %v1249 = vunpack.c.h.b16 %v433
      %v1250 = vunpack.c.l.b16 %v434
      %v1251 = vunpack.c.h.b16 %v434
      %v1252 = vunpack.c.l.b16 %v435
      %v1253 = vunpack.c.h.b16 %v435
      %v1254 = vunpack.c.l.b16 %v436
      %v1255 = vunpack.c.h.b16 %v436
      %v1256 = vunpack.c.l.b16 %v437
      %v1257 = vunpack.c.h.b16 %v437
      %v1258 = vunpack.c.l.b16 %v438
      %v1259 = vunpack.c.h.b16 %v438
      %v1260 = vunpack.c.l.b16 %v439
      %v1261 = vunpack.c.h.b16 %v439
      %v1262 = vunpack.c.l.b16 %v440
      %v1263 = vunpack.c.h.b16 %v440
      %v1264 = vunpack.c.l.b16 %v441
      %v1265 = vunpack.c.h.b16 %v441
      %v1266 = vunpack.c.l.b16 %v442
      %v1267 = vunpack.c.h.b16 %v442
      %v1268 = vunpack.c.l.b16 %v443
      %v1269 = vunpack.c.h.b16 %v443
      %v1270 = vunpack.c.l.b16 %v444
      %v1271 = vunpack.c.h.b16 %v444
      %v1272 = vunpack.c.l.b16 %v445
      %v1273 = vunpack.c.h.b16 %v445
      %v1274 = vunpack.c.l.b16 %v446
      %v1275 = vunpack.c.h.b16 %v446
      %v1276 = vunpack.c.l.b16 %v447
      %v1277 = vunpack.c.h.b16 %v447
      %v1278 = vunpack.c.l.b16 %v448
      %v1279 = vunpack.c.h.b16 %v448
      %v1280 = vunpack.c.l.b16 %v449
      %v1281 = vunpack.c.h.b16 %v449
      %v1282 = vunpack.c.l.b16 %v450
      %v1283 = vunpack.c.h.b16 %v450
      %v1284 = vunpack.c.l.b16 %v451
      %v1285 = vunpack.c.h.b16 %v451
      %v1286 = vunpack.c.l.b16 %v452
      %v1287 = vunpack.c.h.b16 %v452
      %v1288 = vunpack.c.l.b16 %v453
      %v1289 = vunpack.c.h.b16 %v453
      %v1290 = vunpack.c.l.b16 %v454
      %v1291 = vunpack.c.h.b16 %v454
      %v1292 = vunpack.c.l.b16 %v455
      %v1293 = vunpack.c.h.b16 %v455
      %v1294 = vunpack.c.l.b16 %v456
      %v1295 = vunpack.c.h.b16 %v456
      %v1296 = vunpack.c.l.b16 %v457
      %v1297 = vunpack.c.h.b16 %v457
      %v1298 = vunpack.c.l.b16 %v458
      %v1299 = vunpack.c.h.b16 %v458
      %v1300 = vunpack.c.l.b16 %v459
      %v1301 = vunpack.c.h.b16 %v459
      %v1302 = vunpack.c.l.b16 %v460
      %v1303 = vunpack.c.h.b16 %v460
      %v1304 = vunpack.c.l.b16 %v461
      %v1305 = vunpack.c.h.b16 %v461
      %v1306 = vunpack.c.l.b16 %v462
      %v1307 = vunpack.c.h.b16 %v462
      %v1308 = vunpack.c.l.b16 %v463
      %v1309 = vunpack.c.h.b16 %v463
      %v1310 = vunpack.c.l.b16 %v464
      %v1311 = vunpack.c.h.b16 %v464
      %v1312 = vunpack.c.l.b16 %v465
      %v1313 = vunpack.c.h.b16 %v465
      %v1314 = vunpack.c.l.b16 %v466
      %v1315 = vunpack.c.h.b16 %v466
      %v1316 = vunpack.c.l.b16 %v467
      %v1317 = vunpack.c.h.b16 %v467
      %v1318 = vunpack.c.l.b16 %v468
      %v1319 = vunpack.c.h.b16 %v468
      %v1320 = vunpack.c.l.b16 %v469
      %v1321 = vunpack.c.h.b16 %v469
      %v1322 = vunpack.c.l.b16 %v470
      %v1323 = vunpack.c.h.b16 %v470
      %v1324 = vunpack.c.l.b16 %v471
      %v1325 = vunpack.c.h.b16 %v471
      %v1326 = vunpack.c.l.b16 %v472
      %v1327 = vunpack.c.h.b16 %v472
      %v1328 = vunpack.c.l.b16 %v473
      %v1329 = vunpack.c.h.b16 %v473
      %v1330 = vunpack.c.l.b16 %v474
      %v1331 = vunpack.c.h.b16 %v474
      %v1332 = vunpack.c.l.b16 %v475
      %v1333 = vunpack.c.h.b16 %v475
      %v1334 = vunpack.c.l.b16 %v476
      %v1335 = vunpack.c.h.b16 %v476
      %v1336 = vunpack.c.l.b16 %v477
      %v1337 = vunpack.c.h.b16 %v477
      %v1338 = vunpack.c.l.b16 %v478
      %v1339 = vunpack.c.h.b16 %v478
      %v1340 = vunpack.c.l.b16 %v479
      %v1341 = vunpack.c.h.b16 %v479
      %v1342 = vunpack.c.l.b16 %v480
      %v1343 = vunpack.c.h.b16 %v480
      %v1344 = vunpack.c.l.b16 %v481
      %v1345 = vunpack.c.h.b16 %v481
      %v1346 = vunpack.c.l.b16 %v482
      %v1347 = vunpack.c.h.b16 %v482
      %v1348 = vunpack.c.l.b16 %v483
      %v1349 = vunpack.c.h.b16 %v483
      %v1350 = vunpack.c.l.b16 %v484
      %v1351 = vunpack.c.h.b16 %v484
      %v1352 = vunpack.c.l.b16 %v485
      %v1353 = vunpack.c.h.b16 %v485
      %v1354 = vunpack.c.l.b16 %v486
      %v1355 = vunpack.c.h.b16 %v486
      %v1356 = vunpack.c.l.b16 %v487
      %v1357 = vunpack.c.h.b16 %v487
      %v1358 = vunpack.c.l.b16 %v488
      %v1359 = vunpack.c.h.b16 %v488
      %v1360 = vunpack.c.l.b16 %v489
      %v1361 = vunpack.c.h.b16 %v489
      %v1362 = vunpack.c.l.b16 %v490
      %v1363 = vunpack.c.h.b16 %v490
      %v1364 = vunpack.c.l.b16 %v491
      %v1365 = vunpack.c.h.b16 %v491
      %v1366 = vunpack.c.l.b16 %v492
      %v1367 = vunpack.c.h.b16 %v492
      %v1368 = vunpack.c.l.b16 %v493
      %v1369 = vunpack.c.h.b16 %v493
      %v1370 = vunpack.c.l.b16 %v494
      %v1371 = vunpack.c.h.b16 %v494
      %v1372 = vunpack.c.l.b16 %v495
      %v1373 = vunpack.c.h.b16 %v495
      %v1374 = vunpack.c.l.b16 %v496
      %v1375 = vunpack.c.h.b16 %v496
      %v1376 = vunpack.c.l.b16 %v497
      %v1377 = vunpack.c.h.b16 %v497
      %v1378 = vunpack.c.l.b16 %v498
      %v1379 = vunpack.c.h.b16 %v498
      %v1380 = vunpack.c.l.b16 %v499
      %v1381 = vunpack.c.h.b16 %v499
      %v1382 = vunpack.c.l.b16 %v500
      %v1383 = vunpack.c.h.b16 %v500
      %v1384 = vunpack.c.l.b16 %v501
      %v1385 = vunpack.c.h.b16 %v501
      %v1386 = vunpack.c.l.b16 %v502
      %v1387 = vunpack.c.h.b16 %v502
      %v1388 = vunpack.c.l.b16 %v503
      %v1389 = vunpack.c.h.b16 %v503
      %v1390 = vunpack.c.l.b16 %v504
      %v1391 = vunpack.c.h.b16 %v504
      %v1392 = vunpack.c.l.b16 %v505
      %v1393 = vunpack.c.h.b16 %v505
      %v1394 = vunpack.c.l.b16 %v506
      %v1395 = vunpack.c.h.b16 %v506
      %v1396 = vunpack.c.l.b16 %v507
      %v1397 = vunpack.c.h.b16 %v507
      %v1398 = vunpack.c.l.b16 %v508
      %v1399 = vunpack.c.h.b16 %v508
      %v1400 = vunpack.c.l.b16 %v509
      %v1401 = vunpack.c.h.b16 %v509
      %v1402 = vunpack.c.l.b16 %v510
      %v1403 = vunpack.c.h.b16 %v510
      %v1404 = vunpack.c.l.b16 %v511
      %v1405 = vunpack.c.h.b16 %v511
      %v1406 = vunpack.c.l.b16 %v512
      %v1407 = vunpack.c.h.b16 %v512
      %v1408 = vunpack.c.l.b16 %v513
      %v1409 = vunpack.c.h.b16 %v513
      %v1410 = vunpack.c.l.b16 %v514
      %v1411 = vunpack.c.h.b16 %v514
      %v1412 = vunpack.c.l.b16 %v515
      %v1413 = vunpack.c.h.b16 %v515
      %v1414 = vunpack.c.l.b16 %v516
      %v1415 = vunpack.c.h.b16 %v516
      %v1416 = vunpack.c.l.b16 %v517
      %v1417 = vunpack.c.h.b16 %v517
      %v1418 = vunpack.c.l.b16 %v518
      %v1419 = vunpack.c.h.b16 %v518
      %v1420 = vunpack.c.l.b16 %v519
      %v1421 = vunpack.c.h.b16 %v519
      %v1422 = vunpack.c.l.b16 %v520
      %v1423 = vunpack.c.h.b16 %v520
      %v1424 = vunpack.c.l.b16 %v521
      %v1425 = vunpack.c.h.b16 %v521
      %v1426 = vunpack.c.l.b16 %v522
      %v1427 = vunpack.c.h.b16 %v522
      %v1428 = vunpack.c.l.b16 %v523
      %v1429 = vunpack.c.h.b16 %v523
      %v1430 = vunpack.c.l.b16 %v524
      %v1431 = vunpack.c.h.b16 %v524
      %v1432 = vunpack.c.l.b16 %v525
      %v1433 = vunpack.c.h.b16 %v525
      %v1434 = vunpack.c.l.b16 %v526
      %v1435 = vunpack.c.h.b16 %v526
      %v1436 = vunpack.c.l.b16 %v527
      %v1437 = vunpack.c.h.b16 %v527
      %v1438 = vunpack.c.l.b16 %v528
      %v1439 = vunpack.c.h.b16 %v528
      %v1440 = vunpack.c.l.b16 %v529
      %v1441 = vunpack.c.h.b16 %v529
      %v1442 = vunpack.c.l.b16 %v530
      %v1443 = vunpack.c.h.b16 %v530
      %v1444 = vunpack.c.l.b16 %v531
      %v1445 = vunpack.c.h.b16 %v531
      %v1446 = vunpack.c.l.b16 %v532
      %v1447 = vunpack.c.h.b16 %v532
      %v1448 = vunpack.c.l.b16 %v533
      %v1449 = vunpack.c.h.b16 %v533
      %v1450 = vunpack.c.l.b16 %v534
      %v1451 = vunpack.c.h.b16 %v534
      %v1452 = vunpack.c.l.b16 %v535
      %v1453 = vunpack.c.h.b16 %v535
      %v1454 = vunpack.c.l.b16 %v536
      %v1455 = vunpack.c.h.b16 %v536
      %v1456 = vunpack.c.l.b16 %v537
      %v1457 = vunpack.c.h.b16 %v537
      %v1458 = vunpack.c.l.b16 %v538
      %v1459 = vunpack.c.h.b16 %v538
      %v1460 = vunpack.c.l.b16 %v539
      %v1461 = vunpack.c.h.b16 %v539
      %v1462 = vunpack.c.l.b16 %v540
      %v1463 = vunpack.c.h.b16 %v540
      %v1464 = vunpack.c.l.b16 %v541
      %v1465 = vunpack.c.h.b16 %v541
      %v1466 = vunpack.c.l.b16 %v542
      %v1467 = vunpack.c.h.b16 %v542
      %v1468 = vunpack.c.l.b16 %v543
      %v1469 = vunpack.c.h.b16 %v543
      %v1470 = vunpack.c.l.b16 %v544
      %v1471 = vunpack.c.h.b16 %v544
      %v1472 = vunpack.c.l.b16 %v545
      %v1473 = vunpack.c.h.b16 %v545
      %v1474 = vunpack.c.l.b16 %v546
      %v1475 = vunpack.c.h.b16 %v546
      %v1476 = vunpack.c.l.b16 %v547
      %v1477 = vunpack.c.h.b16 %v547
      %v1478 = vunpack.c.l.b16 %v548
      %v1479 = vunpack.c.h.b16 %v548
      %v1480 = vunpack.c.l.b16 %v549
      %v1481 = vunpack.c.h.b16 %v549
      %v1482 = vunpack.c.l.b16 %v550
      %v1483 = vunpack.c.h.b16 %v550
      %v1484 = vunpack.c.l.b16 %v551
      %v1485 = vunpack.c.h.b16 %v551
      %v1486 = vunpack.c.l.b16 %v552
      %v1487 = vunpack.c.h.b16 %v552
      %v1488 = vunpack.c.l.b16 %v553
      %v1489 = vunpack.c.h.b16 %v553
      %v1490 = vunpack.c.l.b16 %v554
      %v1491 = vunpack.c.h.b16 %v554
      %v1492 = vunpack.c.l.b16 %v555
      %v1493 = vunpack.c.h.b16 %v555
      %v1494 = vunpack.c.l.b16 %v556
      %v1495 = vunpack.c.h.b16 %v556
      %v1496 = vunpack.c.l.b16 %v557
      %v1497 = vunpack.c.h.b16 %v557
      %v1498 = vunpack.c.l.b16 %v558
      %v1499 = vunpack.c.h.b16 %v558
      %v1500 = vunpack.c.l.b16 %v559
      %v1501 = vunpack.c.h.b16 %v559
      %v1502 = vunpack.c.l.b16 %v560
      %v1503 = vunpack.c.h.b16 %v560
      %v1504 = vunpack.c.l.b16 %v561
      %v1505 = vunpack.c.h.b16 %v561
      %v1506 = vunpack.c.l.b16 %v562
      %v1507 = vunpack.c.h.b16 %v562
      %v1508 = vunpack.c.l.b16 %v563
      %v1509 = vunpack.c.h.b16 %v563
      %v1510 = vunpack.c.l.b16 %v564
      %v1511 = vunpack.c.h.b16 %v564
      %v1512 = vunpack.c.l.b16 %v565
      %v1513 = vunpack.c.h.b16 %v565
      %v1514 = vunpack.c.l.b16 %v566
      %v1515 = vunpack.c.h.b16 %v566
      %v1516 = vunpack.c.l.b16 %v567
      %v1517 = vunpack.c.h.b16 %v567
      %v1518 = vunpack.c.l.b16 %v568
      %v1519 = vunpack.c.h.b16 %v568
      %v1520 = vunpack.c.l.b16 %v569
      %v1521 = vunpack.c.h.b16 %v569
      %v1522 = vunpack.c.l.b16 %v570
      %v1523 = vunpack.c.h.b16 %v570
      %v1524 = vunpack.c.l.b16 %v571
      %v1525 = vunpack.c.h.b16 %v571
      %v1526 = vunpack.c.l.b16 %v572
      %v1527 = vunpack.c.h.b16 %v572
      %v1528 = vunpack.c.l.b16 %v573
      %v1529 = vunpack.c.h.b16 %v573
      %v1530 = vunpack.c.l.b16 %v574
      %v1531 = vunpack.c.h.b16 %v574
      %v1532 = vunpack.c.l.b16 %v575
      %v1533 = vunpack.c.h.b16 %v575
      %v1534 = vunpack.c.l.b16 %v576
      %v1535 = vunpack.c.h.b16 %v576
      %v1536 = vunpack.c.l.b16 %v577
      %v1537 = vunpack.c.h.b16 %v577
      %v1538 = vpack.c.b16 %v1094, %v1090
      %v1539 = vpack.c.b16 %v1095, %v1091
      %v1540 = vpack.c.b16 %v1096, %v1092
      %v1541 = vpack.c.b16 %v1097, %v1093
      %v1542 = vpack.c.b16 %v1102, %v1098
      %v1543 = vpack.c.b16 %v1103, %v1099
      %v1544 = vpack.c.b16 %v1104, %v1100
      %v1545 = vpack.c.b16 %v1105, %v1101
      %v1546 = vpack.c.b16 %v1110, %v1106
      %v1547 = vpack.c.b16 %v1111, %v1107
      %v1548 = vpack.c.b16 %v1112, %v1108
      %v1549 = vpack.c.b16 %v1113, %v1109
      %v1550 = vpack.c.b16 %v1118, %v1114
      %v1551 = vpack.c.b16 %v1119, %v1115
      %v1552 = vpack.c.b16 %v1120, %v1116
      %v1553 = vpack.c.b16 %v1121, %v1117
      %v1554 = vpack.c.b16 %v1126, %v1122
      %v1555 = vpack.c.b16 %v1127, %v1123
      %v1556 = vpack.c.b16 %v1128, %v1124
      %v1557 = vpack.c.b16 %v1129, %v1125
      %v1558 = vpack.c.b16 %v1134, %v1130
      %v1559 = vpack.c.b16 %v1135, %v1131
      %v1560 = vpack.c.b16 %v1136, %v1132
      %v1561 = vpack.c.b16 %v1137, %v1133
      %v1562 = vpack.c.b16 %v1142, %v1138
      %v1563 = vpack.c.b16 %v1143, %v1139
      %v1564 = vpack.c.b16 %v1144, %v1140
      %v1565 = vpack.c.b16 %v1145, %v1141
      %v1566 = vpack.c.b16 %v1150, %v1146
      %v1567 = vpack.c.b16 %v1151, %v1147
      %v1568 = vpack.c.b16 %v1152, %v1148
      %v1569 = vpack.c.b16 %v1153, %v1149
      %v1570 = vpack.c.b16 %v1158, %v1154
      %v1571 = vpack.c.b16 %v1159, %v1155
      %v1572 = vpack.c.b16 %v1160, %v1156
      %v1573 = vpack.c.b16 %v1161, %v1157
      %v1574 = vpack.c.b16 %v1166, %v1162
      %v1575 = vpack.c.b16 %v1167, %v1163
      %v1576 = vpack.c.b16 %v1168, %v1164
      %v1577 = vpack.c.b16 %v1169, %v1165
      %v1578 = vpack.c.b16 %v1174, %v1170
      %v1579 = vpack.c.b16 %v1175, %v1171
      %v1580 = vpack.c.b16 %v1176, %v1172
      %v1581 = vpack.c.b16 %v1177, %v1173
      %v1582 = vpack.c.b16 %v1182, %v1178
      %v1583 = vpack.c.b16 %v1183, %v1179
      %v1584 = vpack.c.b16 %v1184, %v1180
      %v1585 = vpack.c.b16 %v1185, %v1181
      %v1586 = vpack.c.b16 %v1190, %v1186
      %v1587 = vpack.c.b16 %v1191, %v1187
      %v1588 = vpack.c.b16 %v1192, %v1188
      %v1589 = vpack.c.b16 %v1193, %v1189
      %v1590 = vpack.c.b16 %v1198, %v1194
      %v1591 = vpack.c.b16 %v1199, %v1195
      %v1592 = vpack.c.b16 %v1200, %v1196
      %v1593 = vpack.c.b16 %v1201, %v1197
      %v1594 = vpack.c.b16 %v1206, %v1202
      %v1595 = vpack.c.b16 %v1207, %v1203
      %v1596 = vpack.c.b16 %v1208, %v1204
      %v1597 = vpack.c.b16 %v1209, %v1205
      %v1598 = vpack.c.b16 %v1214, %v1210
      %v1599 = vpack.c.b16 %v1215, %v1211
      %v1600 = vpack.c.b16 %v1216, %v1212
      %v1601 = vpack.c.b16 %v1217, %v1213
      %v1602 = vpack.c.b16 %v1222, %v1218
      %v1603 = vpack.c.b16 %v1223, %v1219
      %v1604 = vpack.c.b16 %v1224, %v1220
      %v1605 = vpack.c.b16 %v1225, %v1221
      %v1606 = vpack.c.b16 %v1230, %v1226
      %v1607 = vpack.c.b16 %v1231, %v1227
      %v1608 = vpack.c.b16 %v1232, %v1228
      %v1609 = vpack.c.b16 %v1233, %v1229
      %v1610 = vpack.c.b16 %v1238, %v1234
      %v1611 = vpack.c.b16 %v1239, %v1235
      %v1612 = vpack.c.b16 %v1240, %v1236
      %v1613 = vpack.c.b16 %v1241, %v1237
      %v1614 = vpack.c.b16 %v1246, %v1242
      %v1615 = vpack.c.b16 %v1247, %v1243
      %v1616 = vpack.c.b16 %v1248, %v1244
      %v1617 = vpack.c.b16 %v1249, %v1245
      %v1618 = vpack.c.b16 %v1254, %v1250
      %v1619 = vpack.c.b16 %v1255, %v1251
      %v1620 = vpack.c.b16 %v1256, %v1252
      %v1621 = vpack.c.b16 %v1257, %v1253
      %v1622 = vpack.c.b16 %v1262, %v1258
      %v1623 = vpack.c.b16 %v1263, %v1259
      %v1624 = vpack.c.b16 %v1264, %v1260
      %v1625 = vpack.c.b16 %v1265, %v1261
      %v1626 = vpack.c.b16 %v1270, %v1266
      %v1627 = vpack.c.b16 %v1271, %v1267
      %v1628 = vpack.c.b16 %v1272, %v1268
      %v1629 = vpack.c.b16 %v1273, %v1269
      %v1630 = vpack.c.b16 %v1278, %v1274
      %v1631 = vpack.c.b16 %v1279, %v1275
      %v1632 = vpack.c.b16 %v1280, %v1276
      %v1633 = vpack.c.b16 %v1281, %v1277
      %v1634 = vpack.c.b16 %v1286, %v1282
      %v1635 = vpack.c.b16 %v1287, %v1283
      %v1636 = vpack.c.b16 %v1288, %v1284
      %v1637 = vpack.c.b16 %v1289, %v1285
      %v1638 = vpack.c.b16 %v1294, %v1290
      %v1639 = vpack.c.b16 %v1295, %v1291
      %v1640 = vpack.c.b16 %v1296, %v1292
      %v1641 = vpack.c.b16 %v1297, %v1293
      %v1642 = vpack.c.b16 %v1302, %v1298
      %v1643 = vpack.c.b16 %v1303, %v1299
      %v1644 = vpack.c.b16 %v1304, %v1300
      %v1645 = vpack.c.b16 %v1305, %v1301
      %v1646 = vpack.c.b16 %v1310, %v1306
      %v1647 = vpack.c.b16 %v1311, %v1307
      %v1648 = vpack.c.b16 %v1312, %v1308
      %v1649 = vpack.c.b16 %v1313, %v1309
      %v1650 = vpack.c.b16 %v1318, %v1314
      %v1651 = vpack.c.b16 %v1319, %v1315
      %v1652 = vpack.c.b16 %v1320, %v1316
      %v1653 = vpack.c.b16 %v1321, %v1317
      %v1654 = vpack.c.b16 %v1326, %v1322
      %v1655 = vpack.c.b16 %v1327, %v1323
      %v1656 = vpack.c.b16 %v1328, %v1324
      %v1657 = vpack.c.b16 %v1329, %v1325
      %v1658 = vpack.c.b16 %v1334, %v1330
      %v1659 = vpack.c.b16 %v1335, %v1331
      %v1660 = vpack.c.b16 %v1336, %v1332
      %v1661 = vpack.c.b16 %v1337, %v1333
      %v1662 = vpack.c.b16 %v1342, %v1338
      %v1663 = vpack.c.b16 %v1343, %v1339
      %v1664 = vpack.c.b16 %v1344, %v1340
      %v1665 = vpack.c.b16 %v1345, %v1341
      %v1666 = vpack.c.b16 %v1350, %v1346
      %v1667 = vpack.c.b16 %v1351, %v1347
      %v1668 = vpack.c.b16 %v1352, %v1348
      %v1669 = vpack.c.b16 %v1353, %v1349
      %v1670 = vpack.c.b16 %v1358, %v1354
      %v1671 = vpack.c.b16 %v1359, %v1355
      %v1672 = vpack.c.b16 %v1360, %v1356
      %v1673 = vpack.c.b16 %v1361, %v1357
      %v1674 = vpack.c.b16 %v1366, %v1362
      %v1675 = vpack.c.b16 %v1367, %v1363
      %v1676 = vpack.c.b16 %v1368, %v1364
      %v1677 = vpack.c.b16 %v1369, %v1365
      %v1678 = vpack.c.b16 %v1374, %v1370
      %v1679 = vpack.c.b16 %v1375, %v1371
      %v1680 = vpack.c.b16 %v1376, %v1372
      %v1681 = vpack.c.b16 %v1377, %v1373
      %v1682 = vpack.c.b16 %v1382, %v1378
      %v1683 = vpack.c.b16 %v1383, %v1379
      %v1684 = vpack.c.b16 %v1384, %v1380
      %v1685 = vpack.c.b16 %v1385, %v1381
      %v1686 = vpack.c.b16 %v1390, %v1386
      %v1687 = vpack.c.b16 %v1391, %v1387
      %v1688 = vpack.c.b16 %v1392, %v1388
      %v1689 = vpack.c.b16 %v1393, %v1389
      %v1690 = vpack.c.b16 %v1398, %v1394
      %v1691 = vpack.c.b16 %v1399, %v1395
      %v1692 = vpack.c.b16 %v1400, %v1396
      %v1693 = vpack.c.b16 %v1401, %v1397
      %v1694 = vpack.c.b16 %v1406, %v1402
      %v1695 = vpack.c.b16 %v1407, %v1403
      %v1696 = vpack.c.b16 %v1408, %v1404
      %v1697 = vpack.c.b16 %v1409, %v1405
      %v1698 = vpack.c.b16 %v1414, %v1410
      %v1699 = vpack.c.b16 %v1415, %v1411
      %v1700 = vpack.c.b16 %v1416, %v1412
      %v1701 = vpack.c.b16 %v1417, %v1413
      %v1702 = vpack.c.b16 %v1422, %v1418
      %v1703 = vpack.c.b16 %v1423, %v1419
      %v1704 = vpack.c.b16 %v1424, %v1420
      %v1705 = vpack.c.b16 %v1425, %v1421
      %v1706 = vpack.c.b16 %v1430, %v1426
      %v1707 = vpack.c.b16 %v1431, %v1427
      %v1708 = vpack.c.b16 %v1432, %v1428
      %v1709 = vpack.c.b16 %v1433, %v1429
      %v1710 = vpack.c.b16 %v1438, %v1434
      %v1711 = vpack.c.b16 %v1439, %v1435
      %v1712 = vpack.c.b16 %v1440, %v1436
      %v1713 = vpack.c.b16 %v1441, %v1437
      %v1714 = vpack.c.b16 %v1446, %v1442
      %v1715 = vpack.c.b16 %v1447, %v1443
      %v1716 = vpack.c.b16 %v1448, %v1444
      %v1717 = vpack.c.b16 %v1449, %v1445
      %v1718 = vpack.c.b16 %v1454, %v1450
      %v1719 = vpack.c.b16 %v1455, %v1451
      %v1720 = vpack.c.b16 %v1456, %v1452
      %v1721 = vpack.c.b16 %v1457, %v1453
      %v1722 = vpack.c.b16 %v1462, %v1458
      %v1723 = vpack.c.b16 %v1463, %v1459
      %v1724 = vpack.c.b16 %v1464, %v1460
      %v1725 = vpack.c.b16 %v1465, %v1461
      %v1726 = vpack.c.b16 %v1470, %v1466
      %v1727 = vpack.c.b16 %v1471, %v1467
      %v1728 = vpack.c.b16 %v1472, %v1468
      %v1729 = vpack.c.b16 %v1473, %v1469
      %v1730 = vpack.c.b16 %v1478, %v1474
      %v1731 = vpack.c.b16 %v1479, %v1475
      %v1732 = vpack.c.b16 %v1480, %v1476
      %v1733 = vpack.c.b16 %v1481, %v1477
      %v1734 = vpack.c.b16 %v1486, %v1482
      %v1735 = vpack.c.b16 %v1487, %v1483
      %v1736 = vpack.c.b16 %v1488, %v1484
      %v1737 = vpack.c.b16 %v1489, %v1485
      %v1738 = vpack.c.b16 %v1494, %v1490
      %v1739 = vpack.c.b16 %v1495, %v1491
      %v1740 = vpack.c.b16 %v1496, %v1492
      %v1741 = vpack.c.b16 %v1497, %v1493
      %v1742 = vpack.c.b16 %v1502, %v1498
      %v1743 = vpack.c.b16 %v1503, %v1499
      %v1744 = vpack.c.b16 %v1504, %v1500
      %v1745 = vpack.c.b16 %v1505, %v1501
      %v1746 = vpack.c.b16 %v1510, %v1506
      %v1747 = vpack.c.b16 %v1511, %v1507
      %v1748 = vpack.c.b16 %v1512, %v1508
      %v1749 = vpack.c.b16 %v1513, %v1509
      %v1750 = vpack.c.b16 %v1518, %v1514
      %v1751 = vpack.c.b16 %v1519, %v1515
      %v1752 = vpack.c.b16 %v1520, %v1516
      %v1753 = vpack.c.b16 %v1521, %v1517
      %v1754 = vpack.c.b16 %v1526, %v1522
      %v1755 = vpack.c.b16 %v1527, %v1523
      %v1756 = vpack.c.b16 %v1528, %v1524
      %v1757 = vpack.c.b16 %v1529, %v1525
      %v1758 = vpack.c.b16 %v1534, %v1530
      %v1759 = vpack.c.b16 %v1535, %v1531
      %v1760 = vpack.c.b16 %v1536, %v1532
      %v1761 = vpack.c.b16 %v1537, %v1533
      %1986 = vmatprep.subr.bf16.mxu0 %v1539
      %1987 = vmatpush1.bf16.msra.mxu0 %v1538
      %1988 = vmatprep.subr.bf16.mxu0 %v1543
      %1989 = vmatpush1.bf16.msra.mxu0 %v1542
      %1990 = vmatprep.subr.bf16.mxu0 %v1547
      %1991 = vmatpush1.bf16.msra.mxu0 %v1546
      %1992 = vmatprep.subr.bf16.mxu0 %v1551
      %1993 = vmatpush1.bf16.msra.mxu0 %v1550
      %1994 = vmatprep.subr.bf16.mxu0 %v1555
      %1995 = vmatpush1.bf16.msra.mxu0 %v1554
      %1996 = vmatprep.subr.bf16.mxu0 %v1559
      %1997 = vmatpush1.bf16.msra.mxu0 %v1558
      %1998 = vmatprep.subr.bf16.mxu0 %v1563
      %1999 = vmatpush1.bf16.msra.mxu0 %v1562
      %2000 = vmatprep.subr.bf16.mxu0 %v1567
      %2001 = vmatpush1.bf16.msra.mxu0 %v1566
      %2002 = vmatprep.subr.bf16.mxu0 %v1571
      %2003 = vmatpush1.bf16.msra.mxu0 %v1570
      %2004 = vmatprep.subr.bf16.mxu0 %v1575
      %2005 = vmatpush1.bf16.msra.mxu0 %v1574
      %2006 = vmatprep.subr.bf16.mxu0 %v1579
      %2007 = vmatpush1.bf16.msra.mxu0 %v1578
      %2008 = vmatprep.subr.bf16.mxu0 %v1583
      %2009 = vmatpush1.bf16.msra.mxu0 %v1582
      %2010 = vmatprep.subr.bf16.mxu0 %v1587
      %2011 = vmatpush1.bf16.msra.mxu0 %v1586
      %2012 = vmatprep.subr.bf16.mxu0 %v1591
      %2013 = vmatpush1.bf16.msra.mxu0 %v1590
      %2014 = vmatprep.subr.bf16.mxu0 %v1595
      %2015 = vmatpush1.bf16.msra.mxu0 %v1594
      %2016 = vmatprep.subr.bf16.mxu0 %v1599
      %2017 = vmatpush1.bf16.msra.mxu0 %v1598
      %2018 = vmatprep.mubr.bf16.mxu0 %v755
      %2019 = vmatmul.mubr.bf16.gmra.mrb[0].mxu0 %v754
      %v2020 = vpop.f32.mrb[0].mxu0
      %v2021 = vadd.f32 0.0, %v2020
      %v2022 = vpop.f32.mrb[0].mxu0
      %v2023 = vadd.f32 0.0, %v2022
      %v2024 = vpop.f32.mrb[0].mxu0
      %v2025 = vadd.f32 0.0, %v2024
      %v2026 = vpop.f32.mrb[0].mxu0
      %v2027 = vadd.f32 0.0, %v2026
      %2028 = vmatprep.mubr.bf16.mxu0 %v762
      %2029 = vmatmul.mubr.bf16.gmra.mrb[0].mxu0 %v761
      %v2030 = vpop.f32.mrb[0].mxu0
      %v2031 = vadd.f32 0.0, %v2030
      %v2032 = vpop.f32.mrb[0].mxu0
      %v2033 = vadd.f32 0.0, %v2032
      %v2034 = vpop.f32.mrb[0].mxu0
      %v2035 = vadd.f32 0.0, %v2034
      %v2036 = vpop.f32.mrb[0].mxu0
      %v2037 = vadd.f32 0.0, %v2036
      %2038 = vmatprep.mubr.bf16.mxu0 %v769
      %2039 = vmatmul.mubr.bf16.gmra.mrb[0].mxu0 %v768
      %v2040 = vpop.f32.mrb[0].mxu0
      %v2041 = vadd.f32 0.0, %v2040
      %v2042 = vpop.f32.mrb[0].mxu0
      %v2043 = vadd.f32 0.0, %v2042
      %v2044 = vpop.f32.mrb[0].mxu0
      %v2045 = vadd.f32 0.0, %v2044
      %v2046 = vpop.f32.mrb[0].mxu0
      %v2047 = vadd.f32 0.0, %v2046
      %2048 = vmatprep.mubr.bf16.mxu0 %v776
      %2049 = vmatmul.mubr.bf16.gmra.mrb[0].mxu0 %v775
      %v2050 = vpop.f32.mrb[0].mxu0
      %v2051 = vadd.f32 0.0, %v2050
      %v2052 = vpop.f32.mrb[0].mxu0
      %v2053 = vadd.f32 0.0, %v2052
      %v2054 = vpop.f32.mrb[0].mxu0
      %v2055 = vadd.f32 0.0, %v2054
      %v2056 = vpop.f32.mrb[0].mxu0
      %v2057 = vadd.f32 0.0, %v2056
      %2058 = vmatprep.mubr.bf16.mxu0 %v783
      %2059 = vmatmul.mubr.bf16.gmra.mrb[0].mxu0 %v782
      %v2060 = vpop.f32.mrb[0].mxu0
      %v2061 = vadd.f32 0.0, %v2060
      %v2062 = vpop.f32.mrb[0].mxu0
      %v2063 = vadd.f32 0.0, %v2062
      %v2064 = vpop.f32.mrb[0].mxu0
      %v2065 = vadd.f32 0.0, %v2064
      %v2066 = vpop.f32.mrb[0].mxu0
      %v2067 = vadd.f32 0.0, %v2066
      %2068 = vmatprep.mubr.bf16.mxu0 %v790
      %2069 = vmatmul.mubr.bf16.gmra.mrb[0].mxu0 %v789
      %v2070 = vpop.f32.mrb[0].mxu0
      %v2071 = vadd.f32 0.0, %v2070
      %v2072 = vpop.f32.mrb[0].mxu0
      %v2073 = vadd.f32 0.0, %v2072
      %v2074 = vpop.f32.mrb[0].mxu0
      %v2075 = vadd.f32 0.0, %v2074
      %v2076 = vpop.f32.mrb[0].mxu0
      %v2077 = vadd.f32 0.0, %v2076
      %2078 = vmatprep.mubr.bf16.mxu0 %v797
      %2079 = vmatmul.mubr.bf16.gmra.mrb[0].mxu0 %v796
      %v2080 = vpop.f32.mrb[0].mxu0
      %v2081 = vadd.f32 0.0, %v2080
      %v2082 = vpop.f32.mrb[0].mxu0
      %v2083 = vadd.f32 0.0, %v2082
      %v2084 = vpop.f32.mrb[0].mxu0
      %v2085 = vadd.f32 0.0, %v2084
      %v2086 = vpop.f32.mrb[0].mxu0
      %v2087 = vadd.f32 0.0, %v2086
      %2088 = vmatprep.mubr.bf16.mxu0 %v804
      %2089 = vmatmul.mubr.bf16.gmra.mrb[0].mxu0 %v803
      %v2090 = vpop.f32.mrb[0].mxu0
      %v2091 = vadd.f32 0.0, %v2090
      %v2092 = vpop.f32.mrb[0].mxu0
      %v2093 = vadd.f32 0.0, %v2092
      %v2094 = vpop.f32.mrb[0].mxu0
      %v2095 = vadd.f32 0.0, %v2094
      %v2096 = vpop.f32.mrb[0].mxu0
      %v2097 = vadd.f32 0.0, %v2096
      %2098 = vdwg.mxu0
      %2099 = vmatprep.subr.bf16.mxu0 %v1603
      %2100 = vmatpush1.bf16.msra.mxu0 %v1602
      %2101 = vmatprep.subr.bf16.mxu0 %v1607
      %2102 = vmatpush1.bf16.msra.mxu0 %v1606
      %2103 = vmatprep.subr.bf16.mxu0 %v1611
      %2104 = vmatpush1.bf16.msra.mxu0 %v1610
      %2105 = vmatprep.subr.bf16.mxu0 %v1615
      %2106 = vmatpush1.bf16.msra.mxu0 %v1614
      %2107 = vmatprep.subr.bf16.mxu0 %v1619
      %2108 = vmatpush1.bf16.msra.mxu0 %v1618
      %2109 = vmatprep.subr.bf16.mxu0 %v1623
      %2110 = vmatpush1.bf16.msra.mxu0 %v1622
      %2111 = vmatprep.subr.bf16.mxu0 %v1627
      %2112 = vmatpush1.bf16.msra.mxu0 %v1626
      %2113 = vmatprep.subr.bf16.mxu0 %v1631
      %2114 = vmatpush1.bf16.msra.mxu0 %v1630
      %2115 = vmatprep.subr.bf16.mxu0 %v1635
      %2116 = vmatpush1.bf16.msra.mxu0 %v1634
      %2117 = vmatprep.subr.bf16.mxu0 %v1639
      %2118 = vmatpush1.bf16.msra.mxu0 %v1638
      %2119 = vmatprep.subr.bf16.mxu0 %v1643
      %2120 = vmatpush1.bf16.msra.mxu0 %v1642
      %2121 = vmatprep.subr.bf16.mxu0 %v1647
      %2122 = vmatpush1.bf16.msra.mxu0 %v1646
      %2123 = vmatprep.subr.bf16.mxu0 %v1651
      %2124 = vmatpush1.bf16.msra.mxu0 %v1650
      %2125 = vmatprep.subr.bf16.mxu0 %v1655
      %2126 = vmatpush1.bf16.msra.mxu0 %v1654
      %2127 = vmatprep.subr.bf16.mxu0 %v1659
      %2128 = vmatpush1.bf16.msra.mxu0 %v1658
      %2129 = vmatprep.subr.bf16.mxu0 %v1663
      %2130 = vmatpush1.bf16.msra.mxu0 %v1662
      %2131 = vmatprep.mubr.bf16.mxu0 %v757
      %2132 = vmatmul.mubr.bf16.gmra.mrb[0].mxu0 %v756
      %v2133 = vpop.f32.mrb[0].mxu0
      %v2134 = vadd.f32 %v2021, %v2133
      %v2135 = vpop.f32.mrb[0].mxu0
      %v2136 = vadd.f32 %v2023, %v2135
      %v2137 = vpop.f32.mrb[0].mxu0
      %v2138 = vadd.f32 %v2025, %v2137
      %v2139 = vpop.f32.mrb[0].mxu0
      %v2140 = vadd.f32 %v2027, %v2139
      %2141 = vmatprep.mubr.bf16.mxu0 %v764
      %2142 = vmatmul.mubr.bf16.gmra.mrb[0].mxu0 %v763
      %v2143 = vpop.f32.mrb[0].mxu0
      %v2144 = vadd.f32 %v2031, %v2143
      %v2145 = vpop.f32.mrb[0].mxu0
      %v2146 = vadd.f32 %v2033, %v2145
      %v2147 = vpop.f32.mrb[0].mxu0
      %v2148 = vadd.f32 %v2035, %v2147
      %v2149 = vpop.f32.mrb[0].mxu0
      %v2150 = vadd.f32 %v2037, %v2149
      %2151 = vmatprep.mubr.bf16.mxu0 %v771
      %2152 = vmatmul.mubr.bf16.gmra.mrb[0].mxu0 %v770
      %v2153 = vpop.f32.mrb[0].mxu0
      %v2154 = vadd.f32 %v2041, %v2153
      %v2155 = vpop.f32.mrb[0].mxu0
      %v2156 = vadd.f32 %v2043, %v2155
      %v2157 = vpop.f32.mrb[0].mxu0
      %v2158 = vadd.f32 %v2045, %v2157
      %v2159 = vpop.f32.mrb[0].mxu0
      %v2160 = vadd.f32 %v2047, %v2159
      %2161 = vmatprep.mubr.bf16.mxu0 %v778
      %2162 = vmatmul.mubr.bf16.gmra.mrb[0].mxu0 %v777
      %v2163 = vpop.f32.mrb[0].mxu0
      %v2164 = vadd.f32 %v2051, %v2163
      %v2165 = vpop.f32.mrb[0].mxu0
      %v2166 = vadd.f32 %v2053, %v2165
      %v2167 = vpop.f32.mrb[0].mxu0
      %v2168 = vadd.f32 %v2055, %v2167
      %v2169 = vpop.f32.mrb[0].mxu0
      %v2170 = vadd.f32 %v2057, %v2169
      %2171 = vmatprep.mubr.bf16.mxu0 %v785
      %2172 = vmatmul.mubr.bf16.gmra.mrb[0].mxu0 %v784
      %v2173 = vpop.f32.mrb[0].mxu0
      %v2174 = vadd.f32 %v2061, %v2173
      %v2175 = vpop.f32.mrb[0].mxu0
      %v2176 = vadd.f32 %v2063, %v2175
      %v2177 = vpop.f32.mrb[0].mxu0
      %v2178 = vadd.f32 %v2065, %v2177
      %v2179 = vpop.f32.mrb[0].mxu0
      %v2180 = vadd.f32 %v2067, %v2179
      %2181 = vmatprep.mubr.bf16.mxu0 %v792
      %2182 = vmatmul.mubr.bf16.gmra.mrb[0].mxu0 %v791
      %v2183 = vpop.f32.mrb[0].mxu0
      %v2184 = vadd.f32 %v2071, %v2183
      %v2185 = vpop.f32.mrb[0].mxu0
      %v2186 = vadd.f32 %v2073, %v2185
      %v2187 = vpop.f32.mrb[0].mxu0
      %v2188 = vadd.f32 %v2075, %v2187
      %v2189 = vpop.f32.mrb[0].mxu0
      %v2190 = vadd.f32 %v2077, %v2189
      %2191 = vmatprep.mubr.bf16.mxu0 %v799
      %2192 = vmatmul.mubr.bf16.gmra.mrb[0].mxu0 %v798
      %v2193 = vpop.f32.mrb[0].mxu0
      %v2194 = vadd.f32 %v2081, %v2193
      %v2195 = vpop.f32.mrb[0].mxu0
      %v2196 = vadd.f32 %v2083, %v2195
      %v2197 = vpop.f32.mrb[0].mxu0
      %v2198 = vadd.f32 %v2085, %v2197
      %v2199 = vpop.f32.mrb[0].mxu0
      %v2200 = vadd.f32 %v2087, %v2199
      %2201 = vmatprep.mubr.bf16.mxu0 %v806
      %2202 = vmatmul.mubr.bf16.gmra.mrb[0].mxu0 %v805
      %v2203 = vpop.f32.mrb[0].mxu0
      %v2204 = vadd.f32 %v2091, %v2203
      %v2205 = vpop.f32.mrb[0].mxu0
      %v2206 = vadd.f32 %v2093, %v2205
      %v2207 = vpop.f32.mrb[0].mxu0
      %v2208 = vadd.f32 %v2095, %v2207
      %v2209 = vpop.f32.mrb[0].mxu0
      %v2210 = vadd.f32 %v2097, %v2209
      %2211 = vdwg.mxu0
      %2212 = vmatprep.subr.bf16.mxu0 %v1667
      %2213 = vmatpush1.bf16.msra.mxu0 %v1666
      %2214 = vmatprep.subr.bf16.mxu0 %v1671
      %2215 = vmatpush1.bf16.msra.mxu0 %v1670
      %2216 = vmatprep.subr.bf16.mxu0 %v1675
      %2217 = vmatpush1.bf16.msra.mxu0 %v1674
      %2218 = vmatprep.subr.bf16.mxu0 %v1679
      %2219 = vmatpush1.bf16.msra.mxu0 %v1678
      %2220 = vmatprep.subr.bf16.mxu0 %v1683
      %2221 = vmatpush1.bf16.msra.mxu0 %v1682
      %2222 = vmatprep.subr.bf16.mxu0 %v1687
      %2223 = vmatpush1.bf16.msra.mxu0 %v1686
      %2224 = vmatprep.subr.bf16.mxu0 %v1691
      %2225 = vmatpush1.bf16.msra.mxu0 %v1690
      %2226 = vmatprep.subr.bf16.mxu0 %v1695
      %2227 = vmatpush1.bf16.msra.mxu0 %v1694
      %2228 = vmatprep.subr.bf16.mxu0 %v1699
      %2229 = vmatpush1.bf16.msra.mxu0 %v1698
      %2230 = vmatprep.subr.bf16.mxu0 %v1703
      %2231 = vmatpush1.bf16.msra.mxu0 %v1702
      %2232 = vmatprep.subr.bf16.mxu0 %v1707
      %2233 = vmatpush1.bf16.msra.mxu0 %v1706
      %2234 = vmatprep.subr.bf16.mxu0 %v1711
      %2235 = vmatpush1.bf16.msra.mxu0 %v1710
      %2236 = vmatprep.subr.bf16.mxu0 %v1715
      %2237 = vmatpush1.bf16.msra.mxu0 %v1714
      %2238 = vmatprep.subr.bf16.mxu0 %v1719
      %2239 = vmatpush1.bf16.msra.mxu0 %v1718
      %2240 = vmatprep.subr.bf16.mxu0 %v1723
      %2241 = vmatpush1.bf16.msra.mxu0 %v1722
      %2242 = vmatprep.subr.bf16.mxu0 %v1727
      %2243 = vmatpush1.bf16.msra.mxu0 %v1726
      %2244 = vmatprep.mubr.bf16.mxu0 %v759
      %2245 = vmatmul.mubr.bf16.gmra.mrb[0].mxu0 %v758
      %v2246 = vpop.f32.mrb[0].mxu0
      %v2247 = vadd.f32 %v2134, %v2246
      %v2248 = vpop.f32.mrb[0].mxu0
      %v2249 = vadd.f32 %v2136, %v2248
      %v2250 = vpop.f32.mrb[0].mxu0
      %v2251 = vadd.f32 %v2138, %v2250
      %v2252 = vpop.f32.mrb[0].mxu0
      %v2253 = vadd.f32 %v2140, %v2252
      %2254 = vmatprep.mubr.bf16.mxu0 %v766
      %2255 = vmatmul.mubr.bf16.gmra.mrb[0].mxu0 %v765
      %v2256 = vpop.f32.mrb[0].mxu0
      %v2257 = vadd.f32 %v2144, %v2256
      %v2258 = vpop.f32.mrb[0].mxu0
      %v2259 = vadd.f32 %v2146, %v2258
      %v2260 = vpop.f32.mrb[0].mxu0
      %v2261 = vadd.f32 %v2148, %v2260
      %v2262 = vpop.f32.mrb[0].mxu0
      %v2263 = vadd.f32 %v2150, %v2262
      %2264 = vmatprep.mubr.bf16.mxu0 %v773
      %2265 = vmatmul.mubr.bf16.gmra.mrb[0].mxu0 %v772
      %v2266 = vpop.f32.mrb[0].mxu0
      %v2267 = vadd.f32 %v2154, %v2266
      %v2268 = vpop.f32.mrb[0].mxu0
      %v2269 = vadd.f32 %v2156, %v2268
      %v2270 = vpop.f32.mrb[0].mxu0
      %v2271 = vadd.f32 %v2158, %v2270
      %v2272 = vpop.f32.mrb[0].mxu0
      %v2273 = vadd.f32 %v2160, %v2272
      %2274 = vmatprep.mubr.bf16.mxu0 %v780
      %2275 = vmatmul.mubr.bf16.gmra.mrb[0].mxu0 %v779
      %v2276 = vpop.f32.mrb[0].mxu0
      %v2277 = vadd.f32 %v2164, %v2276
      %v2278 = vpop.f32.mrb[0].mxu0
      %v2279 = vadd.f32 %v2166, %v2278
      %v2280 = vpop.f32.mrb[0].mxu0
      %v2281 = vadd.f32 %v2168, %v2280
      %v2282 = vpop.f32.mrb[0].mxu0
      %v2283 = vadd.f32 %v2170, %v2282
      %2284 = vmatprep.mubr.bf16.mxu0 %v787
      %2285 = vmatmul.mubr.bf16.gmra.mrb[0].mxu0 %v786
      %v2286 = vpop.f32.mrb[0].mxu0
      %v2287 = vadd.f32 %v2174, %v2286
      %v2288 = vpop.f32.mrb[0].mxu0
      %v2289 = vadd.f32 %v2176, %v2288
      %v2290 = vpop.f32.mrb[0].mxu0
      %v2291 = vadd.f32 %v2178, %v2290
      %v2292 = vpop.f32.mrb[0].mxu0
      %v2293 = vadd.f32 %v2180, %v2292
      %2294 = vmatprep.mubr.bf16.mxu0 %v794
      %2295 = vmatmul.mubr.bf16.gmra.mrb[0].mxu0 %v793
      %v2296 = vpop.f32.mrb[0].mxu0
      %v2297 = vadd.f32 %v2184, %v2296
      %v2298 = vpop.f32.mrb[0].mxu0
      %v2299 = vadd.f32 %v2186, %v2298
      %v2300 = vpop.f32.mrb[0].mxu0
      %v2301 = vadd.f32 %v2188, %v2300
      %v2302 = vpop.f32.mrb[0].mxu0
      %v2303 = vadd.f32 %v2190, %v2302
      %2304 = vmatprep.mubr.bf16.mxu0 %v801
      %2305 = vmatmul.mubr.bf16.gmra.mrb[0].mxu0 %v800
      %v2306 = vpop.f32.mrb[0].mxu0
      %v2307 = vadd.f32 %v2194, %v2306
      %v2308 = vpop.f32.mrb[0].mxu0
      %v2309 = vadd.f32 %v2196, %v2308
      %v2310 = vpop.f32.mrb[0].mxu0
      %v2311 = vadd.f32 %v2198, %v2310
      %v2312 = vpop.f32.mrb[0].mxu0
      %v2313 = vadd.f32 %v2200, %v2312
      %2314 = vmatprep.mubr.bf16.mxu0 %v808
      %2315 = vmatmul.mubr.bf16.gmra.mrb[0].mxu0 %v807
      %v2316 = vpop.f32.mrb[0].mxu0
      %v2317 = vadd.f32 %v2204, %v2316
      %v2318 = vpop.f32.mrb[0].mxu0
      %v2319 = vadd.f32 %v2206, %v2318
      %v2320 = vpop.f32.mrb[0].mxu0
      %v2321 = vadd.f32 %v2208, %v2320
      %v2322 = vpop.f32.mrb[0].mxu0
      %v2323 = vadd.f32 %v2210, %v2322
      %2324 = vdwg.mxu0
      %2325 = vmatprep.subr.bf16.mxu0 %v1731
      %2326 = vmatpush1.bf16.msra.mxu0 %v1730
      %2327 = vmatprep.subr.bf16.mxu0 %v1735
      %2328 = vmatpush1.bf16.msra.mxu0 %v1734
      %2329 = vmatprep.subr.bf16.mxu0 %v1739
      %2330 = vmatpush1.bf16.msra.mxu0 %v1738
      %2331 = vmatprep.subr.bf16.mxu0 %v1743
      %2332 = vmatpush1.bf16.msra.mxu0 %v1742
      %2333 = vmatprep.subr.bf16.mxu0 %v1747
      %2334 = vmatpush1.bf16.msra.mxu0 %v1746
      %2335 = vmatprep.subr.bf16.mxu0 %v1751
      %2336 = vmatpush1.bf16.msra.mxu0 %v1750
      %2337 = vmatprep.subr.bf16.mxu0 %v1755
      %2338 = vmatpush1.bf16.msra.mxu0 %v1754
      %2339 = vmatprep.subr.bf16.mxu0 %v1759
      %2340 = vmatpush1.bf16.msra.mxu0 %v1758
      %2341 = vmatprep.subr.bf16.mxu0 0
      %2342 = vmatpush1.bf16.msra.mxu0 0
      %2343 = vmatprep.subr.bf16.mxu0 0
      %2344 = vmatpush1.bf16.msra.mxu0 0
      %2345 = vmatprep.subr.bf16.mxu0 0
      %2346 = vmatpush1.bf16.msra.mxu0 0
      %2347 = vmatprep.subr.bf16.mxu0 0
      %2348 = vmatpush1.bf16.msra.mxu0 0
      %2349 = vmatprep.subr.bf16.mxu0 0
      %2350 = vmatpush1.bf16.msra.mxu0 0
      %2351 = vmatprep.subr.bf16.mxu0 0
      %2352 = vmatpush1.bf16.msra.mxu0 0
      %2353 = vmatprep.subr.bf16.mxu0 0
      %2354 = vmatpush1.bf16.msra.mxu0 0
      %2355 = vmatprep.subr.bf16.mxu0 0
      %2356 = vmatpush1.bf16.msra.mxu0 0
      %2357 = vmatprep.mubr.bf16.mxu0 0
      %2358 = vmatmul.mubr.bf16.gmra.mrb[0].mxu0 %v760
      %v2359 = vpop.f32.mrb[0].mxu0
      %v2360 = vadd.f32 %v2247, %v2359
      %v2361 = vpop.f32.mrb[0].mxu0
      %v2362 = vadd.f32 %v2249, %v2361
      %v2363 = vpop.f32.mrb[0].mxu0
      %v2364 = vadd.f32 %v2251, %v2363
      %v2365 = vpop.f32.mrb[0].mxu0
      %v2366 = vadd.f32 %v2253, %v2365
      %2367 = vmatprep.mubr.bf16.mxu0 0
      %2368 = vmatmul.mubr.bf16.gmra.mrb[0].mxu0 %v767
      %v2369 = vpop.f32.mrb[0].mxu0
      %v2370 = vadd.f32 %v2257, %v2369
      %v2371 = vpop.f32.mrb[0].mxu0
      %v2372 = vadd.f32 %v2259, %v2371
      %v2373 = vpop.f32.mrb[0].mxu0
      %v2374 = vadd.f32 %v2261, %v2373
      %v2375 = vpop.f32.mrb[0].mxu0
      %v2376 = vadd.f32 %v2263, %v2375
      %2377 = vmatprep.mubr.bf16.mxu0 0
      %2378 = vmatmul.mubr.bf16.gmra.mrb[0].mxu0 %v774
      %v2379 = vpop.f32.mrb[0].mxu0
      %v2380 = vadd.f32 %v2267, %v2379
      %v2381 = vpop.f32.mrb[0].mxu0
      %v2382 = vadd.f32 %v2269, %v2381
      %v2383 = vpop.f32.mrb[0].mxu0
      %v2384 = vadd.f32 %v2271, %v2383
      %v2385 = vpop.f32.mrb[0].mxu0
      %v2386 = vadd.f32 %v2273, %v2385
      %2387 = vmatprep.mubr.bf16.mxu0 0
      %2388 = vmatmul.mubr.bf16.gmra.mrb[0].mxu0 %v781
      %v2389 = vpop.f32.mrb[0].mxu0
      %v2390 = vadd.f32 %v2277, %v2389
      %v2391 = vpop.f32.mrb[0].mxu0
      %v2392 = vadd.f32 %v2279, %v2391
      %v2393 = vpop.f32.mrb[0].mxu0
      %v2394 = vadd.f32 %v2281, %v2393
      %v2395 = vpop.f32.mrb[0].mxu0
      %v2396 = vadd.f32 %v2283, %v2395
      %2397 = vmatprep.mubr.bf16.mxu0 0
      %2398 = vmatmul.mubr.bf16.gmra.mrb[0].mxu0 %v788
      %v2399 = vpop.f32.mrb[0].mxu0
      %v2400 = vadd.f32 %v2287, %v2399
      %v2401 = vpop.f32.mrb[0].mxu0
      %v2402 = vadd.f32 %v2289, %v2401
      %v2403 = vpop.f32.mrb[0].mxu0
      %v2404 = vadd.f32 %v2291, %v2403
      %v2405 = vpop.f32.mrb[0].mxu0
      %v2406 = vadd.f32 %v2293, %v2405
      %2407 = vmatprep.mubr.bf16.mxu0 0
      %2408 = vmatmul.mubr.bf16.gmra.mrb[0].mxu0 %v795
      %v2409 = vpop.f32.mrb[0].mxu0
      %v2410 = vadd.f32 %v2297, %v2409
      %v2411 = vpop.f32.mrb[0].mxu0
      %v2412 = vadd.f32 %v2299, %v2411
      %v2413 = vpop.f32.mrb[0].mxu0
      %v2414 = vadd.f32 %v2301, %v2413
      %v2415 = vpop.f32.mrb[0].mxu0
      %v2416 = vadd.f32 %v2303, %v2415
      %2417 = vmatprep.mubr.bf16.mxu0 0
      %2418 = vmatmul.mubr.bf16.gmra.mrb[0].mxu0 %v802
      %v2419 = vpop.f32.mrb[0].mxu0
      %v2420 = vadd.f32 %v2307, %v2419
      %v2421 = vpop.f32.mrb[0].mxu0
      %v2422 = vadd.f32 %v2309, %v2421
      %v2423 = vpop.f32.mrb[0].mxu0
      %v2424 = vadd.f32 %v2311, %v2423
      %v2425 = vpop.f32.mrb[0].mxu0
      %v2426 = vadd.f32 %v2313, %v2425
      %2427 = vmatprep.mubr.bf16.mxu0 0
      %2428 = vmatmul.mubr.bf16.gmra.mrb[0].mxu0 %v809
      %v2429 = vpop.f32.mrb[0].mxu0
      %v2430 = vadd.f32 %v2317, %v2429
      %v2431 = vpop.f32.mrb[0].mxu0
      %v2432 = vadd.f32 %v2319, %v2431
      %v2433 = vpop.f32.mrb[0].mxu0
      %v2434 = vadd.f32 %v2321, %v2433
      %v2435 = vpop.f32.mrb[0].mxu0
      %v2436 = vadd.f32 %v2323, %v2435
      %2437 = vdwg.mxu0
      %2438 = vmatprep.subr.bf16.mxu0 %v1541
      %2439 = vmatpush1.bf16.msra.mxu0 %v1540
      %2440 = vmatprep.subr.bf16.mxu0 %v1545
      %2441 = vmatpush1.bf16.msra.mxu0 %v1544
      %2442 = vmatprep.subr.bf16.mxu0 %v1549
      %2443 = vmatpush1.bf16.msra.mxu0 %v1548
      %2444 = vmatprep.subr.bf16.mxu0 %v1553
      %2445 = vmatpush1.bf16.msra.mxu0 %v1552
      %2446 = vmatprep.subr.bf16.mxu0 %v1557
      %2447 = vmatpush1.bf16.msra.mxu0 %v1556
      %2448 = vmatprep.subr.bf16.mxu0 %v1561
      %2449 = vmatpush1.bf16.msra.mxu0 %v1560
      %2450 = vmatprep.subr.bf16.mxu0 %v1565
      %2451 = vmatpush1.bf16.msra.mxu0 %v1564
      %2452 = vmatprep.subr.bf16.mxu0 %v1569
      %2453 = vmatpush1.bf16.msra.mxu0 %v1568
      %2454 = vmatprep.subr.bf16.mxu0 %v1573
      %2455 = vmatpush1.bf16.msra.mxu0 %v1572
      %2456 = vmatprep.subr.bf16.mxu0 %v1577
      %2457 = vmatpush1.bf16.msra.mxu0 %v1576
      %2458 = vmatprep.subr.bf16.mxu0 %v1581
      %2459 = vmatpush1.bf16.msra.mxu0 %v1580
      %2460 = vmatprep.subr.bf16.mxu0 %v1585
      %2461 = vmatpush1.bf16.msra.mxu0 %v1584
      %2462 = vmatprep.subr.bf16.mxu0 %v1589
      %2463 = vmatpush1.bf16.msra.mxu0 %v1588
      %2464 = vmatprep.subr.bf16.mxu0 %v1593
      %2465 = vmatpush1.bf16.msra.mxu0 %v1592
      %2466 = vmatprep.subr.bf16.mxu0 %v1597
      %2467 = vmatpush1.bf16.msra.mxu0 %v1596
      %2468 = vmatprep.subr.bf16.mxu0 %v1601
      %2469 = vmatpush1.bf16.msra.mxu0 %v1600
      %2470 = vmatprep.mubr.bf16.mxu0 %v755
      %2471 = vmatmul.mubr.bf16.gmra.mrb[0].mxu0 %v754
      %v2472 = vpop.f32.mrb[0].mxu0
      %v2473 = vadd.f32 0.0, %v2472
      %v2474 = vpop.f32.mrb[0].mxu0
      %v2475 = vadd.f32 0.0, %v2474
      %v2476 = vpop.f32.mrb[0].mxu0
      %v2477 = vadd.f32 0.0, %v2476
      %v2478 = vpop.f32.mrb[0].mxu0
      %v2479 = vadd.f32 0.0, %v2478
      %2480 = vmatprep.mubr.bf16.mxu0 %v762
      %2481 = vmatmul.mubr.bf16.gmra.mrb[0].mxu0 %v761
      %v2482 = vpop.f32.mrb[0].mxu0
      %v2483 = vadd.f32 0.0, %v2482
      %v2484 = vpop.f32.mrb[0].mxu0
      %v2485 = vadd.f32 0.0, %v2484
      %v2486 = vpop.f32.mrb[0].mxu0
      %v2487 = vadd.f32 0.0, %v2486
      %v2488 = vpop.f32.mrb[0].mxu0
      %v2489 = vadd.f32 0.0, %v2488
      %2490 = vmatprep.mubr.bf16.mxu0 %v769
      %2491 = vmatmul.mubr.bf16.gmra.mrb[0].mxu0 %v768
      %v2492 = vpop.f32.mrb[0].mxu0
      %v2493 = vadd.f32 0.0, %v2492
      %v2494 = vpop.f32.mrb[0].mxu0
      %v2495 = vadd.f32 0.0, %v2494
      %v2496 = vpop.f32.mrb[0].mxu0
      %v2497 = vadd.f32 0.0, %v2496
      %v2498 = vpop.f32.mrb[0].mxu0
      %v2499 = vadd.f32 0.0, %v2498
      %2500 = vmatprep.mubr.bf16.mxu0 %v776
      %2501 = vmatmul.mubr.bf16.gmra.mrb[0].mxu0 %v775
      %v2502 = vpop.f32.mrb[0].mxu0
      %v2503 = vadd.f32 0.0, %v2502
      %v2504 = vpop.f32.mrb[0].mxu0
      %v2505 = vadd.f32 0.0, %v2504
      %v2506 = vpop.f32.mrb[0].mxu0
      %v2507 = vadd.f32 0.0, %v2506
      %v2508 = vpop.f32.mrb[0].mxu0
      %v2509 = vadd.f32 0.0, %v2508
      %2510 = vmatprep.mubr.bf16.mxu0 %v783
      %2511 = vmatmul.mubr.bf16.gmra.mrb[0].mxu0 %v782
      %v2512 = vpop.f32.mrb[0].mxu0
      %v2513 = vadd.f32 0.0, %v2512
      %v2514 = vpop.f32.mrb[0].mxu0
      %v2515 = vadd.f32 0.0, %v2514
      %v2516 = vpop.f32.mrb[0].mxu0
      %v2517 = vadd.f32 0.0, %v2516
      %v2518 = vpop.f32.mrb[0].mxu0
      %v2519 = vadd.f32 0.0, %v2518
      %2520 = vmatprep.mubr.bf16.mxu0 %v790
      %2521 = vmatmul.mubr.bf16.gmra.mrb[0].mxu0 %v789
      %v2522 = vpop.f32.mrb[0].mxu0
      %v2523 = vadd.f32 0.0, %v2522
      %v2524 = vpop.f32.mrb[0].mxu0
      %v2525 = vadd.f32 0.0, %v2524
      %v2526 = vpop.f32.mrb[0].mxu0
      %v2527 = vadd.f32 0.0, %v2526
      %v2528 = vpop.f32.mrb[0].mxu0
      %v2529 = vadd.f32 0.0, %v2528
      %2530 = vmatprep.mubr.bf16.mxu0 %v797
      %2531 = vmatmul.mubr.bf16.gmra.mrb[0].mxu0 %v796
      %v2532 = vpop.f32.mrb[0].mxu0
      %v2533 = vadd.f32 0.0, %v2532
      %v2534 = vpop.f32.mrb[0].mxu0
      %v2535 = vadd.f32 0.0, %v2534
      %v2536 = vpop.f32.mrb[0].mxu0
      %v2537 = vadd.f32 0.0, %v2536
      %v2538 = vpop.f32.mrb[0].mxu0
      %v2539 = vadd.f32 0.0, %v2538
      %2540 = vmatprep.mubr.bf16.mxu0 %v804
      %2541 = vmatmul.mubr.bf16.gmra.mrb[0].mxu0 %v803
      %v2542 = vpop.f32.mrb[0].mxu0
      %v2543 = vadd.f32 0.0, %v2542
      %v2544 = vpop.f32.mrb[0].mxu0
      %v2545 = vadd.f32 0.0, %v2544
      %v2546 = vpop.f32.mrb[0].mxu0
      %v2547 = vadd.f32 0.0, %v2546
      %v2548 = vpop.f32.mrb[0].mxu0
      %v2549 = vadd.f32 0.0, %v2548
      %2550 = vdwg.mxu0
      %2551 = vmatprep.subr.bf16.mxu0 %v1605
      %2552 = vmatpush1.bf16.msra.mxu0 %v1604
      %2553 = vmatprep.subr.bf16.mxu0 %v1609
      %2554 = vmatpush1.bf16.msra.mxu0 %v1608
      %2555 = vmatprep.subr.bf16.mxu0 %v1613
      %2556 = vmatpush1.bf16.msra.mxu0 %v1612
      %2557 = vmatprep.subr.bf16.mxu0 %v1617
      %2558 = vmatpush1.bf16.msra.mxu0 %v1616
      %2559 = vmatprep.subr.bf16.mxu0 %v1621
      %2560 = vmatpush1.bf16.msra.mxu0 %v1620
      %2561 = vmatprep.subr.bf16.mxu0 %v1625
      %2562 = vmatpush1.bf16.msra.mxu0 %v1624
      %2563 = vmatprep.subr.bf16.mxu0 %v1629
      %2564 = vmatpush1.bf16.msra.mxu0 %v1628
      %2565 = vmatprep.subr.bf16.mxu0 %v1633
      %2566 = vmatpush1.bf16.msra.mxu0 %v1632
      %2567 = vmatprep.subr.bf16.mxu0 %v1637
      %2568 = vmatpush1.bf16.msra.mxu0 %v1636
      %2569 = vmatprep.subr.bf16.mxu0 %v1641
      %2570 = vmatpush1.bf16.msra.mxu0 %v1640
      %2571 = vmatprep.subr.bf16.mxu0 %v1645
      %2572 = vmatpush1.bf16.msra.mxu0 %v1644
      %2573 = vmatprep.subr.bf16.mxu0 %v1649
      %2574 = vmatpush1.bf16.msra.mxu0 %v1648
      %2575 = vmatprep.subr.bf16.mxu0 %v1653
      %2576 = vmatpush1.bf16.msra.mxu0 %v1652
      %2577 = vmatprep.subr.bf16.mxu0 %v1657
      %2578 = vmatpush1.bf16.msra.mxu0 %v1656
      %2579 = vmatprep.subr.bf16.mxu0 %v1661
      %2580 = vmatpush1.bf16.msra.mxu0 %v1660
      %2581 = vmatprep.subr.bf16.mxu0 %v1665
      %2582 = vmatpush1.bf16.msra.mxu0 %v1664
      %2583 = vmatprep.mubr.bf16.mxu0 %v757
      %2584 = vmatmul.mubr.bf16.gmra.mrb[0].mxu0 %v756
      %v2585 = vpop.f32.mrb[0].mxu0
      %v2586 = vadd.f32 %v2473, %v2585
      %v2587 = vpop.f32.mrb[0].mxu0
      %v2588 = vadd.f32 %v2475, %v2587
      %v2589 = vpop.f32.mrb[0].mxu0
      %v2590 = vadd.f32 %v2477, %v2589
      %v2591 = vpop.f32.mrb[0].mxu0
      %v2592 = vadd.f32 %v2479, %v2591
      %2593 = vmatprep.mubr.bf16.mxu0 %v764
      %2594 = vmatmul.mubr.bf16.gmra.mrb[0].mxu0 %v763
      %v2595 = vpop.f32.mrb[0].mxu0
      %v2596 = vadd.f32 %v2483, %v2595
      %v2597 = vpop.f32.mrb[0].mxu0
      %v2598 = vadd.f32 %v2485, %v2597
      %v2599 = vpop.f32.mrb[0].mxu0
      %v2600 = vadd.f32 %v2487, %v2599
      %v2601 = vpop.f32.mrb[0].mxu0
      %v2602 = vadd.f32 %v2489, %v2601
      %2603 = vmatprep.mubr.bf16.mxu0 %v771
      %2604 = vmatmul.mubr.bf16.gmra.mrb[0].mxu0 %v770
      %v2605 = vpop.f32.mrb[0].mxu0
      %v2606 = vadd.f32 %v2493, %v2605
      %v2607 = vpop.f32.mrb[0].mxu0
      %v2608 = vadd.f32 %v2495, %v2607
      %v2609 = vpop.f32.mrb[0].mxu0
      %v2610 = vadd.f32 %v2497, %v2609
      %v2611 = vpop.f32.mrb[0].mxu0
      %v2612 = vadd.f32 %v2499, %v2611
      %2613 = vmatprep.mubr.bf16.mxu0 %v778
      %2614 = vmatmul.mubr.bf16.gmra.mrb[0].mxu0 %v777
      %v2615 = vpop.f32.mrb[0].mxu0
      %v2616 = vadd.f32 %v2503, %v2615
      %v2617 = vpop.f32.mrb[0].mxu0
      %v2618 = vadd.f32 %v2505, %v2617
      %v2619 = vpop.f32.mrb[0].mxu0
      %v2620 = vadd.f32 %v2507, %v2619
      %v2621 = vpop.f32.mrb[0].mxu0
      %v2622 = vadd.f32 %v2509, %v2621
      %2623 = vmatprep.mubr.bf16.mxu0 %v785
      %2624 = vmatmul.mubr.bf16.gmra.mrb[0].mxu0 %v784
      %v2625 = vpop.f32.mrb[0].mxu0
      %v2626 = vadd.f32 %v2513, %v2625
      %v2627 = vpop.f32.mrb[0].mxu0
      %v2628 = vadd.f32 %v2515, %v2627
      %v2629 = vpop.f32.mrb[0].mxu0
      %v2630 = vadd.f32 %v2517, %v2629
      %v2631 = vpop.f32.mrb[0].mxu0
      %v2632 = vadd.f32 %v2519, %v2631
      %2633 = vmatprep.mubr.bf16.mxu0 %v792
      %2634 = vmatmul.mubr.bf16.gmra.mrb[0].mxu0 %v791
      %v2635 = vpop.f32.mrb[0].mxu0
      %v2636 = vadd.f32 %v2523, %v2635
      %v2637 = vpop.f32.mrb[0].mxu0
      %v2638 = vadd.f32 %v2525, %v2637
      %v2639 = vpop.f32.mrb[0].mxu0
      %v2640 = vadd.f32 %v2527, %v2639
      %v2641 = vpop.f32.mrb[0].mxu0
      %v2642 = vadd.f32 %v2529, %v2641
      %2643 = vmatprep.mubr.bf16.mxu0 %v799
      %2644 = vmatmul.mubr.bf16.gmra.mrb[0].mxu0 %v798
      %v2645 = vpop.f32.mrb[0].mxu0
      %v2646 = vadd.f32 %v2533, %v2645
      %v2647 = vpop.f32.mrb[0].mxu0
      %v2648 = vadd.f32 %v2535, %v2647
      %v2649 = vpop.f32.mrb[0].mxu0
      %v2650 = vadd.f32 %v2537, %v2649
      %v2651 = vpop.f32.mrb[0].mxu0
      %v2652 = vadd.f32 %v2539, %v2651
      %2653 = vmatprep.mubr.bf16.mxu0 %v806
      %2654 = vmatmul.mubr.bf16.gmra.mrb[0].mxu0 %v805
      %v2655 = vpop.f32.mrb[0].mxu0
      %v2656 = vadd.f32 %v2543, %v2655
      %v2657 = vpop.f32.mrb[0].mxu0
      %v2658 = vadd.f32 %v2545, %v2657
      %v2659 = vpop.f32.mrb[0].mxu0
      %v2660 = vadd.f32 %v2547, %v2659
      %v2661 = vpop.f32.mrb[0].mxu0
      %v2662 = vadd.f32 %v2549, %v2661
      %2663 = vdwg.mxu0
      %2664 = vmatprep.subr.bf16.mxu0 %v1669
      %2665 = vmatpush1.bf16.msra.mxu0 %v1668
      %2666 = vmatprep.subr.bf16.mxu0 %v1673
      %2667 = vmatpush1.bf16.msra.mxu0 %v1672
      %2668 = vmatprep.subr.bf16.mxu0 %v1677
      %2669 = vmatpush1.bf16.msra.mxu0 %v1676
      %2670 = vmatprep.subr.bf16.mxu0 %v1681
      %2671 = vmatpush1.bf16.msra.mxu0 %v1680
      %2672 = vmatprep.subr.bf16.mxu0 %v1685
      %2673 = vmatpush1.bf16.msra.mxu0 %v1684
      %2674 = vmatprep.subr.bf16.mxu0 %v1689
      %2675 = vmatpush1.bf16.msra.mxu0 %v1688
      %2676 = vmatprep.subr.bf16.mxu0 %v1693
      %2677 = vmatpush1.bf16.msra.mxu0 %v1692
      %2678 = vmatprep.subr.bf16.mxu0 %v1697
      %2679 = vmatpush1.bf16.msra.mxu0 %v1696
      %2680 = vmatprep.subr.bf16.mxu0 %v1701
      %2681 = vmatpush1.bf16.msra.mxu0 %v1700
      %2682 = vmatprep.subr.bf16.mxu0 %v1705
      %2683 = vmatpush1.bf16.msra.mxu0 %v1704
      %2684 = vmatprep.subr.bf16.mxu0 %v1709
      %2685 = vmatpush1.bf16.msra.mxu0 %v1708
      %2686 = vmatprep.subr.bf16.mxu0 %v1713
      %2687 = vmatpush1.bf16.msra.mxu0 %v1712
      %2688 = vmatprep.subr.bf16.mxu0 %v1717
      %2689 = vmatpush1.bf16.msra.mxu0 %v1716
      %2690 = vmatprep.subr.bf16.mxu0 %v1721
      %2691 = vmatpush1.bf16.msra.mxu0 %v1720
      %2692 = vmatprep.subr.bf16.mxu0 %v1725
      %2693 = vmatpush1.bf16.msra.mxu0 %v1724
      %2694 = vmatprep.subr.bf16.mxu0 %v1729
      %2695 = vmatpush1.bf16.msra.mxu0 %v1728
      %2696 = vmatprep.mubr.bf16.mxu0 %v759
      %2697 = vmatmul.mubr.bf16.gmra.mrb[0].mxu0 %v758
      %v2698 = vpop.f32.mrb[0].mxu0
      %v2699 = vadd.f32 %v2586, %v2698
      %v2700 = vpop.f32.mrb[0].mxu0
      %v2701 = vadd.f32 %v2588, %v2700
      %v2702 = vpop.f32.mrb[0].mxu0
      %v2703 = vadd.f32 %v2590, %v2702
      %v2704 = vpop.f32.mrb[0].mxu0
      %v2705 = vadd.f32 %v2592, %v2704
      %2706 = vmatprep.mubr.bf16.mxu0 %v766
      %2707 = vmatmul.mubr.bf16.gmra.mrb[0].mxu0 %v765
      %v2708 = vpop.f32.mrb[0].mxu0
      %v2709 = vadd.f32 %v2596, %v2708
      %v2710 = vpop.f32.mrb[0].mxu0
      %v2711 = vadd.f32 %v2598, %v2710
      %v2712 = vpop.f32.mrb[0].mxu0
      %v2713 = vadd.f32 %v2600, %v2712
      %v2714 = vpop.f32.mrb[0].mxu0
      %v2715 = vadd.f32 %v2602, %v2714
      %2716 = vmatprep.mubr.bf16.mxu0 %v773
      %2717 = vmatmul.mubr.bf16.gmra.mrb[0].mxu0 %v772
      %v2718 = vpop.f32.mrb[0].mxu0
      %v2719 = vadd.f32 %v2606, %v2718
      %v2720 = vpop.f32.mrb[0].mxu0
      %v2721 = vadd.f32 %v2608, %v2720
      %v2722 = vpop.f32.mrb[0].mxu0
      %v2723 = vadd.f32 %v2610, %v2722
      %v2724 = vpop.f32.mrb[0].mxu0
      %v2725 = vadd.f32 %v2612, %v2724
      %2726 = vmatprep.mubr.bf16.mxu0 %v780
      %2727 = vmatmul.mubr.bf16.gmra.mrb[0].mxu0 %v779
      %v2728 = vpop.f32.mrb[0].mxu0
      %v2729 = vadd.f32 %v2616, %v2728
      %v2730 = vpop.f32.mrb[0].mxu0
      %v2731 = vadd.f32 %v2618, %v2730
      %v2732 = vpop.f32.mrb[0].mxu0
      %v2733 = vadd.f32 %v2620, %v2732
      %v2734 = vpop.f32.mrb[0].mxu0
      %v2735 = vadd.f32 %v2622, %v2734
      %2736 = vmatprep.mubr.bf16.mxu0 %v787
      %2737 = vmatmul.mubr.bf16.gmra.mrb[0].mxu0 %v786
      %v2738 = vpop.f32.mrb[0].mxu0
      %v2739 = vadd.f32 %v2626, %v2738
      %v2740 = vpop.f32.mrb[0].mxu0
      %v2741 = vadd.f32 %v2628, %v2740
      %v2742 = vpop.f32.mrb[0].mxu0
      %v2743 = vadd.f32 %v2630, %v2742
      %v2744 = vpop.f32.mrb[0].mxu0
      %v2745 = vadd.f32 %v2632, %v2744
      %2746 = vmatprep.mubr.bf16.mxu0 %v794
      %2747 = vmatmul.mubr.bf16.gmra.mrb[0].mxu0 %v793
      %v2748 = vpop.f32.mrb[0].mxu0
      %v2749 = vadd.f32 %v2636, %v2748
      %v2750 = vpop.f32.mrb[0].mxu0
      %v2751 = vadd.f32 %v2638, %v2750
      %v2752 = vpop.f32.mrb[0].mxu0
      %v2753 = vadd.f32 %v2640, %v2752
      %v2754 = vpop.f32.mrb[0].mxu0
      %v2755 = vadd.f32 %v2642, %v2754
      %2756 = vmatprep.mubr.bf16.mxu0 %v801
      %2757 = vmatmul.mubr.bf16.gmra.mrb[0].mxu0 %v800
      %v2758 = vpop.f32.mrb[0].mxu0
      %v2759 = vadd.f32 %v2646, %v2758
      %v2760 = vpop.f32.mrb[0].mxu0
      %v2761 = vadd.f32 %v2648, %v2760
      %v2762 = vpop.f32.mrb[0].mxu0
      %v2763 = vadd.f32 %v2650, %v2762
      %v2764 = vpop.f32.mrb[0].mxu0
      %v2765 = vadd.f32 %v2652, %v2764
      %2766 = vmatprep.mubr.bf16.mxu0 %v808
      %2767 = vmatmul.mubr.bf16.gmra.mrb[0].mxu0 %v807
      %v2768 = vpop.f32.mrb[0].mxu0
      %v2769 = vadd.f32 %v2656, %v2768
      %v2770 = vpop.f32.mrb[0].mxu0
      %v2771 = vadd.f32 %v2658, %v2770
      %v2772 = vpop.f32.mrb[0].mxu0
      %v2773 = vadd.f32 %v2660, %v2772
      %v2774 = vpop.f32.mrb[0].mxu0
      %v2775 = vadd.f32 %v2662, %v2774
      %2776 = vdwg.mxu0
      %2777 = vmatprep.subr.bf16.mxu0 %v1733
      %2778 = vmatpush1.bf16.msra.mxu0 %v1732
      %2779 = vmatprep.subr.bf16.mxu0 %v1737
      %2780 = vmatpush1.bf16.msra.mxu0 %v1736
      %2781 = vmatprep.subr.bf16.mxu0 %v1741
      %2782 = vmatpush1.bf16.msra.mxu0 %v1740
      %2783 = vmatprep.subr.bf16.mxu0 %v1745
      %2784 = vmatpush1.bf16.msra.mxu0 %v1744
      %2785 = vmatprep.subr.bf16.mxu0 %v1749
      %2786 = vmatpush1.bf16.msra.mxu0 %v1748
      %2787 = vmatprep.subr.bf16.mxu0 %v1753
      %2788 = vmatpush1.bf16.msra.mxu0 %v1752
      %2789 = vmatprep.subr.bf16.mxu0 %v1757
      %2790 = vmatpush1.bf16.msra.mxu0 %v1756
      %2791 = vmatprep.subr.bf16.mxu0 %v1761
      %2792 = vmatpush1.bf16.msra.mxu0 %v1760
      %2793 = vmatprep.subr.bf16.mxu0 0
      %2794 = vmatpush1.bf16.msra.mxu0 0
      %2795 = vmatprep.subr.bf16.mxu0 0
      %2796 = vmatpush1.bf16.msra.mxu0 0
      %2797 = vmatprep.subr.bf16.mxu0 0
      %2798 = vmatpush1.bf16.msra.mxu0 0
      %2799 = vmatprep.subr.bf16.mxu0 0
      %2800 = vmatpush1.bf16.msra.mxu0 0
      %2801 = vmatprep.subr.bf16.mxu0 0
      %2802 = vmatpush1.bf16.msra.mxu0 0
      %2803 = vmatprep.subr.bf16.mxu0 0
      %2804 = vmatpush1.bf16.msra.mxu0 0
      %2805 = vmatprep.subr.bf16.mxu0 0
      %2806 = vmatpush1.bf16.msra.mxu0 0
      %2807 = vmatprep.subr.bf16.mxu0 0
      %2808 = vmatpush1.bf16.msra.mxu0 0
      %2809 = vmatprep.mubr.bf16.mxu0 0
      %2810 = vmatmul.mubr.bf16.gmra.mrb[0].mxu0 %v760
      %v2811 = vpop.f32.mrb[0].mxu0
      %v2812 = vadd.f32 %v2699, %v2811
      %v2813 = vpop.f32.mrb[0].mxu0
      %v2814 = vadd.f32 %v2701, %v2813
      %v2815 = vpop.f32.mrb[0].mxu0
      %v2816 = vadd.f32 %v2703, %v2815
      %v2817 = vpop.f32.mrb[0].mxu0
      %v2818 = vadd.f32 %v2705, %v2817
      %2819 = vmatprep.mubr.bf16.mxu0 0
      %2820 = vmatmul.mubr.bf16.gmra.mrb[0].mxu0 %v767
      %v2821 = vpop.f32.mrb[0].mxu0
      %v2822 = vadd.f32 %v2709, %v2821
      %v2823 = vpop.f32.mrb[0].mxu0
      %v2824 = vadd.f32 %v2711, %v2823
      %v2825 = vpop.f32.mrb[0].mxu0
      %v2826 = vadd.f32 %v2713, %v2825
      %v2827 = vpop.f32.mrb[0].mxu0
      %v2828 = vadd.f32 %v2715, %v2827
      %2829 = vmatprep.mubr.bf16.mxu0 0
      %2830 = vmatmul.mubr.bf16.gmra.mrb[0].mxu0 %v774
      %v2831 = vpop.f32.mrb[0].mxu0
      %v2832 = vadd.f32 %v2719, %v2831
      %v2833 = vpop.f32.mrb[0].mxu0
      %v2834 = vadd.f32 %v2721, %v2833
      %v2835 = vpop.f32.mrb[0].mxu0
      %v2836 = vadd.f32 %v2723, %v2835
      %v2837 = vpop.f32.mrb[0].mxu0
      %v2838 = vadd.f32 %v2725, %v2837
      %2839 = vmatprep.mubr.bf16.mxu0 0
      %2840 = vmatmul.mubr.bf16.gmra.mrb[0].mxu0 %v781
      %v2841 = vpop.f32.mrb[0].mxu0
      %v2842 = vadd.f32 %v2729, %v2841
      %v2843 = vpop.f32.mrb[0].mxu0
      %v2844 = vadd.f32 %v2731, %v2843
      %v2845 = vpop.f32.mrb[0].mxu0
      %v2846 = vadd.f32 %v2733, %v2845
      %v2847 = vpop.f32.mrb[0].mxu0
      %v2848 = vadd.f32 %v2735, %v2847
      %2849 = vmatprep.mubr.bf16.mxu0 0
      %2850 = vmatmul.mubr.bf16.gmra.mrb[0].mxu0 %v788
      %v2851 = vpop.f32.mrb[0].mxu0
      %v2852 = vadd.f32 %v2739, %v2851
      %v2853 = vpop.f32.mrb[0].mxu0
      %v2854 = vadd.f32 %v2741, %v2853
      %v2855 = vpop.f32.mrb[0].mxu0
      %v2856 = vadd.f32 %v2743, %v2855
      %v2857 = vpop.f32.mrb[0].mxu0
      %v2858 = vadd.f32 %v2745, %v2857
      %2859 = vmatprep.mubr.bf16.mxu0 0
      %2860 = vmatmul.mubr.bf16.gmra.mrb[0].mxu0 %v795
      %v2861 = vpop.f32.mrb[0].mxu0
      %v2862 = vadd.f32 %v2749, %v2861
      %v2863 = vpop.f32.mrb[0].mxu0
      %v2864 = vadd.f32 %v2751, %v2863
      %v2865 = vpop.f32.mrb[0].mxu0
      %v2866 = vadd.f32 %v2753, %v2865
      %v2867 = vpop.f32.mrb[0].mxu0
      %v2868 = vadd.f32 %v2755, %v2867
      %2869 = vmatprep.mubr.bf16.mxu0 0
      %2870 = vmatmul.mubr.bf16.gmra.mrb[0].mxu0 %v802
      %v2871 = vpop.f32.mrb[0].mxu0
      %v2872 = vadd.f32 %v2759, %v2871
      %v2873 = vpop.f32.mrb[0].mxu0
      %v2874 = vadd.f32 %v2761, %v2873
      %v2875 = vpop.f32.mrb[0].mxu0
      %v2876 = vadd.f32 %v2763, %v2875
      %v2877 = vpop.f32.mrb[0].mxu0
      %v2878 = vadd.f32 %v2765, %v2877
      %2879 = vmatprep.mubr.bf16.mxu0 0
      %2880 = vmatmul.mubr.bf16.gmra.mrb[0].mxu0 %v809
      %v2881 = vpop.f32.mrb[0].mxu0
      %v2882 = vadd.f32 %v2769, %v2881
      %v2883 = vpop.f32.mrb[0].mxu0
      %v2884 = vadd.f32 %v2771, %v2883
      %v2885 = vpop.f32.mrb[0].mxu0
      %v2886 = vadd.f32 %v2773, %v2885
      %v2887 = vpop.f32.mrb[0].mxu0
      %v2888 = vadd.f32 %v2775, %v2887
      %2889 = vdwg.mxu0
      %v2890 = vlaneseq
      %v2891 = vshrl.u32 %v2890, 7
      %v2892 = vsub.s32 0, %v2891
      %v2893 = vrot.slane %v286, %v2892
      %v2894 = vlaneseq
      %v2895 = vshrl.u32 %v2894, 7
      %v2896 = vsub.s32 0, %v2895
      %v2897 = vrot.slane %v287, %v2896
      %v2898 = vlaneseq
      %v2899 = vshrl.u32 %v2898, 7
      %v2900 = vsub.s32 0, %v2899
      %v2901 = vrot.slane %v288, %v2900
      %v2902 = vlaneseq
      %v2903 = vshrl.u32 %v2902, 7
      %v2904 = vsub.s32 0, %v2903
      %v2905 = vrot.slane %v289, %v2904
      %v2906 = vmul.f32 %v2360, %v2893
      %v2907 = vmul.f32 %v2362, %v2897
      %v2908 = vmul.f32 %v2812, %v2901
      %v2909 = vmul.f32 %v2814, %v2905
      %v2910 = vmul.f32 %v2364, %v2893
      %v2911 = vmul.f32 %v2366, %v2897
      %v2912 = vmul.f32 %v2816, %v2901
      %v2913 = vmul.f32 %v2818, %v2905
      %v2914 = vmul.f32 %v2370, %v2893
      %v2915 = vmul.f32 %v2372, %v2897
      %v2916 = vmul.f32 %v2822, %v2901
      %v2917 = vmul.f32 %v2824, %v2905
      %v2918 = vmul.f32 %v2374, %v2893
      %v2919 = vmul.f32 %v2376, %v2897
      %v2920 = vmul.f32 %v2826, %v2901
      %v2921 = vmul.f32 %v2828, %v2905
      %v2922 = vmul.f32 %v2380, %v2893
      %v2923 = vmul.f32 %v2382, %v2897
      %v2924 = vmul.f32 %v2832, %v2901
      %v2925 = vmul.f32 %v2834, %v2905
      %v2926 = vmul.f32 %v2384, %v2893
      %v2927 = vmul.f32 %v2386, %v2897
      %v2928 = vmul.f32 %v2836, %v2901
      %v2929 = vmul.f32 %v2838, %v2905
      %v2930 = vmul.f32 %v2390, %v2893
      %v2931 = vmul.f32 %v2392, %v2897
      %v2932 = vmul.f32 %v2842, %v2901
      %v2933 = vmul.f32 %v2844, %v2905
      %v2934 = vmul.f32 %v2394, %v2893
      %v2935 = vmul.f32 %v2396, %v2897
      %v2936 = vmul.f32 %v2846, %v2901
      %v2937 = vmul.f32 %v2848, %v2905
      %v2938 = vmul.f32 %v2400, %v2893
      %v2939 = vmul.f32 %v2402, %v2897
      %v2940 = vmul.f32 %v2852, %v2901
      %v2941 = vmul.f32 %v2854, %v2905
      %v2942 = vmul.f32 %v2404, %v2893
      %v2943 = vmul.f32 %v2406, %v2897
      %v2944 = vmul.f32 %v2856, %v2901
      %v2945 = vmul.f32 %v2858, %v2905
      %v2946 = vmul.f32 %v2410, %v2893
      %v2947 = vmul.f32 %v2412, %v2897
      %v2948 = vmul.f32 %v2862, %v2901
      %v2949 = vmul.f32 %v2864, %v2905
      %v2950 = vmul.f32 %v2414, %v2893
      %v2951 = vmul.f32 %v2416, %v2897
      %v2952 = vmul.f32 %v2866, %v2901
      %v2953 = vmul.f32 %v2868, %v2905
      %v2954 = vmul.f32 %v2420, %v2893
      %v2955 = vmul.f32 %v2422, %v2897
      %v2956 = vmul.f32 %v2872, %v2901
      %v2957 = vmul.f32 %v2874, %v2905
      %v2958 = vmul.f32 %v2424, %v2893
      %v2959 = vmul.f32 %v2426, %v2897
      %v2960 = vmul.f32 %v2876, %v2901
      %v2961 = vmul.f32 %v2878, %v2905
      %v2962 = vmul.f32 %v2430, %v2893
      %v2963 = vmul.f32 %v2432, %v2897
      %v2964 = vmul.f32 %v2882, %v2901
      %v2965 = vmul.f32 %v2884, %v2905
      %v2966 = vmul.f32 %v2434, %v2893
      %v2967 = vmul.f32 %v2436, %v2897
      %v2968 = vmul.f32 %v2886, %v2901
      %v2969 = vmul.f32 %v2888, %v2905
      %v2970 = vlaneseq
      %v2971 = vshrl.u32 %v2970, 7
      %v2972 = vsub.s32 1, %v2971
      %v2973 = vrot.slane %v286, %v2972
      %v2974 = vlaneseq
      %v2975 = vshrl.u32 %v2974, 7
      %v2976 = vsub.s32 1, %v2975
      %v2977 = vrot.slane %v287, %v2976
      %v2978 = vlaneseq
      %v2979 = vshrl.u32 %v2978, 7
      %v2980 = vsub.s32 1, %v2979
      %v2981 = vrot.slane %v288, %v2980
      %v2982 = vlaneseq
      %v2983 = vshrl.u32 %v2982, 7
      %v2984 = vsub.s32 1, %v2983
      %v2985 = vrot.slane %v289, %v2984
      %v2986 = vadd.f32 %v2906, %v2973
      %v2987 = vadd.f32 %v2907, %v2977
      %v2988 = vadd.f32 %v2908, %v2981
      %v2989 = vadd.f32 %v2909, %v2985
      %v2990 = vadd.f32 %v2910, %v2973
      %v2991 = vadd.f32 %v2911, %v2977
      %v2992 = vadd.f32 %v2912, %v2981
      %v2993 = vadd.f32 %v2913, %v2985
      %v2994 = vadd.f32 %v2914, %v2973
      %v2995 = vadd.f32 %v2915, %v2977
      %v2996 = vadd.f32 %v2916, %v2981
      %v2997 = vadd.f32 %v2917, %v2985
      %v2998 = vadd.f32 %v2918, %v2973
      %v2999 = vadd.f32 %v2919, %v2977
      %v3000 = vadd.f32 %v2920, %v2981
      %v3001 = vadd.f32 %v2921, %v2985
      %v3002 = vadd.f32 %v2922, %v2973
      %v3003 = vadd.f32 %v2923, %v2977
      %v3004 = vadd.f32 %v2924, %v2981
      %v3005 = vadd.f32 %v2925, %v2985
      %v3006 = vadd.f32 %v2926, %v2973
      %v3007 = vadd.f32 %v2927, %v2977
      %v3008 = vadd.f32 %v2928, %v2981
      %v3009 = vadd.f32 %v2929, %v2985
      %v3010 = vadd.f32 %v2930, %v2973
      %v3011 = vadd.f32 %v2931, %v2977
      %v3012 = vadd.f32 %v2932, %v2981
      %v3013 = vadd.f32 %v2933, %v2985
      %v3014 = vadd.f32 %v2934, %v2973
      %v3015 = vadd.f32 %v2935, %v2977
      %v3016 = vadd.f32 %v2936, %v2981
      %v3017 = vadd.f32 %v2937, %v2985
      %v3018 = vadd.f32 %v2938, %v2973
      %v3019 = vadd.f32 %v2939, %v2977
      %v3020 = vadd.f32 %v2940, %v2981
      %v3021 = vadd.f32 %v2941, %v2985
      %v3022 = vadd.f32 %v2942, %v2973
      %v3023 = vadd.f32 %v2943, %v2977
      %v3024 = vadd.f32 %v2944, %v2981
      %v3025 = vadd.f32 %v2945, %v2985
      %v3026 = vadd.f32 %v2946, %v2973
      %v3027 = vadd.f32 %v2947, %v2977
      %v3028 = vadd.f32 %v2948, %v2981
      %v3029 = vadd.f32 %v2949, %v2985
      %v3030 = vadd.f32 %v2950, %v2973
      %v3031 = vadd.f32 %v2951, %v2977
      %v3032 = vadd.f32 %v2952, %v2981
      %v3033 = vadd.f32 %v2953, %v2985
      %v3034 = vadd.f32 %v2954, %v2973
      %v3035 = vadd.f32 %v2955, %v2977
      %v3036 = vadd.f32 %v2956, %v2981
      %v3037 = vadd.f32 %v2957, %v2985
      %v3038 = vadd.f32 %v2958, %v2973
      %v3039 = vadd.f32 %v2959, %v2977
      %v3040 = vadd.f32 %v2960, %v2981
      %v3041 = vadd.f32 %v2961, %v2985
      %v3042 = vadd.f32 %v2962, %v2973
      %v3043 = vadd.f32 %v2963, %v2977
      %v3044 = vadd.f32 %v2964, %v2981
      %v3045 = vadd.f32 %v2965, %v2985
      %v3046 = vadd.f32 %v2966, %v2973
      %v3047 = vadd.f32 %v2967, %v2977
      %v3048 = vadd.f32 %v2968, %v2981
      %v3049 = vadd.f32 %v2969, %v2985
      %vm3050 = vcmp.ge.f32.partialorder %v2986, 0.0
      %vm3051 = vcmp.ge.f32.partialorder %v2987, 0.0
      %vm3052 = vcmp.ge.f32.partialorder %v2988, 0.0
      %vm3053 = vcmp.ge.f32.partialorder %v2989, 0.0
      %vm3054 = vcmp.ge.f32.partialorder %v2990, 0.0
      %vm3055 = vcmp.ge.f32.partialorder %v2991, 0.0
      %vm3056 = vcmp.ge.f32.partialorder %v2992, 0.0
      %vm3057 = vcmp.ge.f32.partialorder %v2993, 0.0
      %vm3058 = vcmp.ge.f32.partialorder %v2994, 0.0
      %vm3059 = vcmp.ge.f32.partialorder %v2995, 0.0
      %vm3060 = vcmp.ge.f32.partialorder %v2996, 0.0
      %vm3061 = vcmp.ge.f32.partialorder %v2997, 0.0
      %vm3062 = vcmp.ge.f32.partialorder %v2998, 0.0
      %vm3063 = vcmp.ge.f32.partialorder %v2999, 0.0
      %vm3064 = vcmp.ge.f32.partialorder %v3000, 0.0
      %vm3065 = vcmp.ge.f32.partialorder %v3001, 0.0
      %vm3066 = vcmp.ge.f32.partialorder %v3002, 0.0
      %vm3067 = vcmp.ge.f32.partialorder %v3003, 0.0
      %vm3068 = vcmp.ge.f32.partialorder %v3004, 0.0
      %vm3069 = vcmp.ge.f32.partialorder %v3005, 0.0
      %vm3070 = vcmp.ge.f32.partialorder %v3006, 0.0
      %vm3071 = vcmp.ge.f32.partialorder %v3007, 0.0
      %vm3072 = vcmp.ge.f32.partialorder %v3008, 0.0
      %vm3073 = vcmp.ge.f32.partialorder %v3009, 0.0
      %vm3074 = vcmp.ge.f32.partialorder %v3010, 0.0
      %vm3075 = vcmp.ge.f32.partialorder %v3011, 0.0
      %vm3076 = vcmp.ge.f32.partialorder %v3012, 0.0
      %vm3077 = vcmp.ge.f32.partialorder %v3013, 0.0
      %vm3078 = vcmp.ge.f32.partialorder %v3014, 0.0
      %vm3079 = vcmp.ge.f32.partialorder %v3015, 0.0
      %vm3080 = vcmp.ge.f32.partialorder %v3016, 0.0
      %vm3081 = vcmp.ge.f32.partialorder %v3017, 0.0
      %vm3082 = vcmp.ge.f32.partialorder %v3018, 0.0
      %vm3083 = vcmp.ge.f32.partialorder %v3019, 0.0
      %vm3084 = vcmp.ge.f32.partialorder %v3020, 0.0
      %vm3085 = vcmp.ge.f32.partialorder %v3021, 0.0
      %vm3086 = vcmp.ge.f32.partialorder %v3022, 0.0
      %vm3087 = vcmp.ge.f32.partialorder %v3023, 0.0
      %vm3088 = vcmp.ge.f32.partialorder %v3024, 0.0
      %vm3089 = vcmp.ge.f32.partialorder %v3025, 0.0
      %vm3090 = vcmp.ge.f32.partialorder %v3026, 0.0
      %vm3091 = vcmp.ge.f32.partialorder %v3027, 0.0
      %vm3092 = vcmp.ge.f32.partialorder %v3028, 0.0
      %vm3093 = vcmp.ge.f32.partialorder %v3029, 0.0
      %vm3094 = vcmp.ge.f32.partialorder %v3030, 0.0
      %vm3095 = vcmp.ge.f32.partialorder %v3031, 0.0
      %vm3096 = vcmp.ge.f32.partialorder %v3032, 0.0
      %vm3097 = vcmp.ge.f32.partialorder %v3033, 0.0
      %vm3098 = vcmp.ge.f32.partialorder %v3034, 0.0
      %vm3099 = vcmp.ge.f32.partialorder %v3035, 0.0
      %vm3100 = vcmp.ge.f32.partialorder %v3036, 0.0
      %vm3101 = vcmp.ge.f32.partialorder %v3037, 0.0
      %vm3102 = vcmp.ge.f32.partialorder %v3038, 0.0
      %vm3103 = vcmp.ge.f32.partialorder %v3039, 0.0
      %vm3104 = vcmp.ge.f32.partialorder %v3040, 0.0
      %vm3105 = vcmp.ge.f32.partialorder %v3041, 0.0
      %vm3106 = vcmp.ge.f32.partialorder %v3042, 0.0
      %vm3107 = vcmp.ge.f32.partialorder %v3043, 0.0
      %vm3108 = vcmp.ge.f32.partialorder %v3044, 0.0
      %vm3109 = vcmp.ge.f32.partialorder %v3045, 0.0
      %vm3110 = vcmp.ge.f32.partialorder %v3046, 0.0
      %vm3111 = vcmp.ge.f32.partialorder %v3047, 0.0
      %vm3112 = vcmp.ge.f32.partialorder %v3048, 0.0
      %vm3113 = vcmp.ge.f32.partialorder %v3049, 0.0
      %v3114 = vsel %vm3050, 1.0, -1.0
      %v3115 = vsel %vm3051, 1.0, -1.0
      %v3116 = vsel %vm3052, 1.0, -1.0
      %v3117 = vsel %vm3053, 1.0, -1.0
      %v3118 = vsel %vm3054, 1.0, -1.0
      %v3119 = vsel %vm3055, 1.0, -1.0
      %v3120 = vsel %vm3056, 1.0, -1.0
      %v3121 = vsel %vm3057, 1.0, -1.0
      %v3122 = vsel %vm3058, 1.0, -1.0
      %v3123 = vsel %vm3059, 1.0, -1.0
      %v3124 = vsel %vm3060, 1.0, -1.0
      %v3125 = vsel %vm3061, 1.0, -1.0
      %v3126 = vsel %vm3062, 1.0, -1.0
      %v3127 = vsel %vm3063, 1.0, -1.0
      %v3128 = vsel %vm3064, 1.0, -1.0
      %v3129 = vsel %vm3065, 1.0, -1.0
      %v3130 = vsel %vm3066, 1.0, -1.0
      %v3131 = vsel %vm3067, 1.0, -1.0
      %v3132 = vsel %vm3068, 1.0, -1.0
      %v3133 = vsel %vm3069, 1.0, -1.0
      %v3134 = vsel %vm3070, 1.0, -1.0
      %v3135 = vsel %vm3071, 1.0, -1.0
      %v3136 = vsel %vm3072, 1.0, -1.0
      %v3137 = vsel %vm3073, 1.0, -1.0
      %v3138 = vsel %vm3074, 1.0, -1.0
      %v3139 = vsel %vm3075, 1.0, -1.0
      %v3140 = vsel %vm3076, 1.0, -1.0
      %v3141 = vsel %vm3077, 1.0, -1.0
      %v3142 = vsel %vm3078, 1.0, -1.0
      %v3143 = vsel %vm3079, 1.0, -1.0
      %v3144 = vsel %vm3080, 1.0, -1.0
      %v3145 = vsel %vm3081, 1.0, -1.0
      %v3146 = vsel %vm3082, 1.0, -1.0
      %v3147 = vsel %vm3083, 1.0, -1.0
      %v3148 = vsel %vm3084, 1.0, -1.0
      %v3149 = vsel %vm3085, 1.0, -1.0
      %v3150 = vsel %vm3086, 1.0, -1.0
      %v3151 = vsel %vm3087, 1.0, -1.0
      %v3152 = vsel %vm3088, 1.0, -1.0
      %v3153 = vsel %vm3089, 1.0, -1.0
      %v3154 = vsel %vm3090, 1.0, -1.0
      %v3155 = vsel %vm3091, 1.0, -1.0
      %v3156 = vsel %vm3092, 1.0, -1.0
      %v3157 = vsel %vm3093, 1.0, -1.0
      %v3158 = vsel %vm3094, 1.0, -1.0
      %v3159 = vsel %vm3095, 1.0, -1.0
      %v3160 = vsel %vm3096, 1.0, -1.0
      %v3161 = vsel %vm3097, 1.0, -1.0
      %v3162 = vsel %vm3098, 1.0, -1.0
      %v3163 = vsel %vm3099, 1.0, -1.0
      %v3164 = vsel %vm3100, 1.0, -1.0
      %v3165 = vsel %vm3101, 1.0, -1.0
      %v3166 = vsel %vm3102, 1.0, -1.0
      %v3167 = vsel %vm3103, 1.0, -1.0
      %v3168 = vsel %vm3104, 1.0, -1.0
      %v3169 = vsel %vm3105, 1.0, -1.0
      %v3170 = vsel %vm3106, 1.0, -1.0
      %v3171 = vsel %vm3107, 1.0, -1.0
      %v3172 = vsel %vm3108, 1.0, -1.0
      %v3173 = vsel %vm3109, 1.0, -1.0
      %v3174 = vsel %vm3110, 1.0, -1.0
      %v3175 = vsel %vm3111, 1.0, -1.0
      %v3176 = vsel %vm3112, 1.0, -1.0
      %v3177 = vsel %vm3113, 1.0, -1.0
      %v3178 = vpack.c.bf16 %v3118, %v3114
      %v3179 = vpack.c.bf16 %v3119, %v3115
      %v3180 = vpack.c.bf16 %v3120, %v3116
      %v3181 = vpack.c.bf16 %v3121, %v3117
      %v3182 = vpack.c.bf16 %v3126, %v3122
      %v3183 = vpack.c.bf16 %v3127, %v3123
      %v3184 = vpack.c.bf16 %v3128, %v3124
      %v3185 = vpack.c.bf16 %v3129, %v3125
      %v3186 = vpack.c.bf16 %v3134, %v3130
      %v3187 = vpack.c.bf16 %v3135, %v3131
      %v3188 = vpack.c.bf16 %v3136, %v3132
      %v3189 = vpack.c.bf16 %v3137, %v3133
      %v3190 = vpack.c.bf16 %v3142, %v3138
      %v3191 = vpack.c.bf16 %v3143, %v3139
      %v3192 = vpack.c.bf16 %v3144, %v3140
      %v3193 = vpack.c.bf16 %v3145, %v3141
      %v3194 = vpack.c.bf16 %v3150, %v3146
      %v3195 = vpack.c.bf16 %v3151, %v3147
      %v3196 = vpack.c.bf16 %v3152, %v3148
      %v3197 = vpack.c.bf16 %v3153, %v3149
      %v3198 = vpack.c.bf16 %v3158, %v3154
      %v3199 = vpack.c.bf16 %v3159, %v3155
      %v3200 = vpack.c.bf16 %v3160, %v3156
      %v3201 = vpack.c.bf16 %v3161, %v3157
      %v3202 = vpack.c.bf16 %v3166, %v3162
      %v3203 = vpack.c.bf16 %v3167, %v3163
      %v3204 = vpack.c.bf16 %v3168, %v3164
      %v3205 = vpack.c.bf16 %v3169, %v3165
      %v3206 = vpack.c.bf16 %v3174, %v3170
      %v3207 = vpack.c.bf16 %v3175, %v3171
      %v3208 = vpack.c.bf16 %v3176, %v3172
      %v3209 = vpack.c.bf16 %v3177, %v3173
      %v3210 = vld [vmem:[%s2] sm:$0xff]
      %v3211 = vld [vmem:[%s2 + $0x8] sm:$0xff]
      %v3212 = vld [vmem:[%s2 + $0x10] sm:$0xff]
      %v3213 = vld [vmem:[%s2 + $0x18] sm:$0xff]
      %v3214 = vld [vmem:[%s2 + $0x20] sm:$0xff]
      %v3215 = vld [vmem:[%s2 + $0x28] sm:$0xff]
      %v3216 = vld [vmem:[%s2 + $0x30] sm:$0xff]
      %v3217 = vld [vmem:[%s2 + $0x38] sm:$0xff]
      %v3218 = vld [vmem:[%s2 + $0x40] sm:$0xff]
      %v3219 = vld [vmem:[%s2 + $0x48] sm:$0xff]
      %v3220 = vld [vmem:[%s2 + $0x50] sm:$0xff]
      %v3221 = vld [vmem:[%s2 + $0x58] sm:$0xff]
      %v3222 = vld [vmem:[%s2 + $0x60] sm:$0xff]
      %v3223 = vld [vmem:[%s2 + $0x68] sm:$0xff]
      %v3224 = vld [vmem:[%s2 + $0x70] sm:$0xff]
      %v3225 = vld [vmem:[%s2 + $0x78] sm:$0xff]
      %v3226 = vld [vmem:[%s2 + $0x80] sm:$0xff]
      %v3227 = vld [vmem:[%s2 + $0x88] sm:$0xff]
      %v3228 = vld [vmem:[%s2 + $0x90] sm:$0xff]
      %v3229 = vld [vmem:[%s2 + $0x98] sm:$0xff]
      %v3230 = vld [vmem:[%s2 + $0xa0] sm:$0xff]
      %v3231 = vld [vmem:[%s2 + $0xa8] sm:$0xff]
      %v3232 = vld [vmem:[%s2 + $0xb0] sm:$0xff]
      %v3233 = vld [vmem:[%s2 + $0xb8] sm:$0xff]
      %v3234 = vld [vmem:[%s2 + $0xc0] sm:$0xff]
      %v3235 = vld [vmem:[%s2 + $0xc8] sm:$0xff]
      %v3236 = vld [vmem:[%s2 + $0xd0] sm:$0xff]
      %v3237 = vld [vmem:[%s2 + $0xd8] sm:$0xff]
      %v3238 = vld [vmem:[%s2 + $0xe0] sm:$0xff]
      %v3239 = vld [vmem:[%s2 + $0xe8] sm:$0xff]
      %v3240 = vld [vmem:[%s2 + $0xf0] sm:$0xff]
      %v3241 = vld [vmem:[%s2 + $0xf8] sm:$0xff]
      %v3242 = vld [vmem:[%s2 + $0x100] sm:$0xff]
      %v3243 = vld [vmem:[%s2 + $0x108] sm:$0xff]
      %v3244 = vld [vmem:[%s2 + $0x110] sm:$0xff]
      %v3245 = vld [vmem:[%s2 + $0x118] sm:$0xff]
      %v3246 = vld [vmem:[%s2 + $0x120] sm:$0xff]
      %v3247 = vld [vmem:[%s2 + $0x128] sm:$0xff]
      %v3248 = vld [vmem:[%s2 + $0x130] sm:$0xff]
      %v3249 = vld [vmem:[%s2 + $0x138] sm:$0xff]
      %v3250 = vld [vmem:[%s2 + $0x140] sm:$0xff]
      %v3251 = vld [vmem:[%s2 + $0x148] sm:$0xff]
      %v3252 = vld [vmem:[%s2 + $0x150] sm:$0xff]
      %v3253 = vld [vmem:[%s2 + $0x158] sm:$0xff]
      %v3254 = vld [vmem:[%s2 + $0x160] sm:$0xff]
      %v3255 = vld [vmem:[%s2 + $0x168] sm:$0xff]
      %v3256 = vld [vmem:[%s2 + $0x170] sm:$0xff]
      %v3257 = vld [vmem:[%s2 + $0x178] sm:$0xff]
      %v3258 = vld [vmem:[%s2 + $0x180] sm:$0xff]
      %v3259 = vld [vmem:[%s2 + $0x188] sm:$0xff]
      %v3260 = vld [vmem:[%s2 + $0x190] sm:$0xff]
      %v3261 = vld [vmem:[%s2 + $0x198] sm:$0xff]
      %v3262 = vld [vmem:[%s2 + $0x1a0] sm:$0xff]
      %v3263 = vld [vmem:[%s2 + $0x1a8] sm:$0xff]
      %v3264 = vld [vmem:[%s2 + $0x1b0] sm:$0xff]
      %v3265 = vld [vmem:[%s2 + $0x1b8] sm:$0xff]
      %v3266 = vld [vmem:[%s2 + $0x1c0] sm:$0xff]
      %v3267 = vld [vmem:[%s2 + $0x1c8] sm:$0xff]
      %v3268 = vld [vmem:[%s2 + $0x1d0] sm:$0xff]
      %v3269 = vld [vmem:[%s2 + $0x1d8] sm:$0xff]
      %v3270 = vld [vmem:[%s2 + $0x1e0] sm:$0xff]
      %v3271 = vld [vmem:[%s2 + $0x1e8] sm:$0xff]
      %v3272 = vld [vmem:[%s2 + $0x1f0] sm:$0xff]
      %v3273 = vld [vmem:[%s2 + $0x1f8] sm:$0xff]
      %v3274 = vld [vmem:[%s2 + $0x200] sm:$0xff]
      %v3275 = vld [vmem:[%s2 + $0x208] sm:$0xff]
      %v3276 = vld [vmem:[%s2 + $0x210] sm:$0xff]
      %v3277 = vld [vmem:[%s2 + $0x218] sm:$0xff]
      %v3278 = vld [vmem:[%s2 + $0x220] sm:$0xff]
      %v3279 = vld [vmem:[%s2 + $0x228] sm:$0xff]
      %v3280 = vld [vmem:[%s2 + $0x230] sm:$0xff]
      %v3281 = vld [vmem:[%s2 + $0x238] sm:$0xff]
      %v3282 = vld [vmem:[%s2 + $0x240] sm:$0xff]
      %v3283 = vld [vmem:[%s2 + $0x248] sm:$0xff]
      %v3284 = vld [vmem:[%s2 + $0x250] sm:$0xff]
      %v3285 = vld [vmem:[%s2 + $0x258] sm:$0xff]
      %v3286 = vld [vmem:[%s2 + $0x260] sm:$0xff]
      %v3287 = vld [vmem:[%s2 + $0x268] sm:$0xff]
      %v3288 = vld [vmem:[%s2 + $0x270] sm:$0xff]
      %v3289 = vld [vmem:[%s2 + $0x278] sm:$0xff]
      %v3290 = vld [vmem:[%s2 + $0x280] sm:$0xff]
      %v3291 = vld [vmem:[%s2 + $0x288] sm:$0xff]
      %v3292 = vld [vmem:[%s2 + $0x290] sm:$0xff]
      %v3293 = vld [vmem:[%s2 + $0x298] sm:$0xff]
      %v3294 = vld [vmem:[%s2 + $0x2a0] sm:$0xff]
      %v3295 = vld [vmem:[%s2 + $0x2a8] sm:$0xff]
      %v3296 = vld [vmem:[%s2 + $0x2b0] sm:$0xff]
      %v3297 = vld [vmem:[%s2 + $0x2b8] sm:$0xff]
      %v3298 = vld [vmem:[%s2 + $0x2c0] sm:$0xff]
      %v3299 = vld [vmem:[%s2 + $0x2c8] sm:$0xff]
      %v3300 = vld [vmem:[%s2 + $0x2d0] sm:$0xff]
      %v3301 = vld [vmem:[%s2 + $0x2d8] sm:$0xff]
      %v3302 = vld [vmem:[%s2 + $0x2e0] sm:$0xff]
      %v3303 = vld [vmem:[%s2 + $0x2e8] sm:$0xff]
      %v3304 = vld [vmem:[%s2 + $0x2f0] sm:$0xff]
      %v3305 = vld [vmem:[%s2 + $0x2f8] sm:$0xff]
      %v3306 = vld [vmem:[%s2 + $0x300] sm:$0xff]
      %v3307 = vld [vmem:[%s2 + $0x308] sm:$0xff]
      %v3308 = vld [vmem:[%s2 + $0x310] sm:$0xff]
      %v3309 = vld [vmem:[%s2 + $0x318] sm:$0xff]
      %v3310 = vld [vmem:[%s2 + $0x320] sm:$0xff]
      %v3311 = vld [vmem:[%s2 + $0x328] sm:$0xff]
      %v3312 = vld [vmem:[%s2 + $0x330] sm:$0xff]
      %v3313 = vld [vmem:[%s2 + $0x338] sm:$0xff]
      %v3314 = vld [vmem:[%s2 + $0x340] sm:$0xff]
      %v3315 = vld [vmem:[%s2 + $0x348] sm:$0xff]
      %v3316 = vld [vmem:[%s2 + $0x350] sm:$0xff]
      %v3317 = vld [vmem:[%s2 + $0x358] sm:$0xff]
      %v3318 = vld [vmem:[%s2 + $0x360] sm:$0xff]
      %v3319 = vld [vmem:[%s2 + $0x368] sm:$0xff]
      %v3320 = vld [vmem:[%s2 + $0x370] sm:$0xff]
      %v3321 = vld [vmem:[%s2 + $0x378] sm:$0xff]
      %v3322 = vld [vmem:[%s2 + $0x380] sm:$0xff]
      %v3323 = vld [vmem:[%s2 + $0x388] sm:$0xff]
      %v3324 = vld [vmem:[%s2 + $0x390] sm:$0xff]
      %v3325 = vld [vmem:[%s2 + $0x398] sm:$0xff]
      %v3326 = vld [vmem:[%s2 + $0x3a0] sm:$0xff]
      %v3327 = vld [vmem:[%s2 + $0x3a8] sm:$0xff]
      %v3328 = vld [vmem:[%s2 + $0x3b0] sm:$0xff]
      %v3329 = vld [vmem:[%s2 + $0x3b8] sm:$0xff]
      %v3330 = vld [vmem:[%s2 + $0x3c0] sm:$0xff]
      %v3331 = vld [vmem:[%s2 + $0x3c8] sm:$0xff]
      %v3332 = vld [vmem:[%s2 + $0x3d0] sm:$0xff]
      %v3333 = vld [vmem:[%s2 + $0x3d8] sm:$0xff]
      %v3334 = vld [vmem:[%s2 + $0x3e0] sm:$0xff]
      %v3335 = vld [vmem:[%s2 + $0x3e8] sm:$0xff]
      %v3336 = vld [vmem:[%s2 + $0x3f0] sm:$0xff]
      %v3337 = vld [vmem:[%s2 + $0x3f8] sm:$0xff]
      %v3466 = vunpack.c.l.b16 %v3210
      %v3467 = vunpack.c.h.b16 %v3210
      %v3468 = vunpack.c.l.b16 %v3211
      %v3469 = vunpack.c.h.b16 %v3211
      %v3470 = vunpack.c.l.b16 %v3212
      %v3471 = vunpack.c.h.b16 %v3212
      %v3472 = vunpack.c.l.b16 %v3213
      %v3473 = vunpack.c.h.b16 %v3213
      %v3474 = vunpack.c.l.b16 %v3214
      %v3475 = vunpack.c.h.b16 %v3214
      %v3476 = vunpack.c.l.b16 %v3215
      %v3477 = vunpack.c.h.b16 %v3215
      %v3478 = vunpack.c.l.b16 %v3216
      %v3479 = vunpack.c.h.b16 %v3216
      %v3480 = vunpack.c.l.b16 %v3217
      %v3481 = vunpack.c.h.b16 %v3217
      %v3482 = vunpack.c.l.b16 %v3218
      %v3483 = vunpack.c.h.b16 %v3218
      %v3484 = vunpack.c.l.b16 %v3219
      %v3485 = vunpack.c.h.b16 %v3219
      %v3486 = vunpack.c.l.b16 %v3220
      %v3487 = vunpack.c.h.b16 %v3220
      %v3488 = vunpack.c.l.b16 %v3221
      %v3489 = vunpack.c.h.b16 %v3221
      %v3490 = vunpack.c.l.b16 %v3222
      %v3491 = vunpack.c.h.b16 %v3222
      %v3492 = vunpack.c.l.b16 %v3223
      %v3493 = vunpack.c.h.b16 %v3223
      %v3494 = vunpack.c.l.b16 %v3224
      %v3495 = vunpack.c.h.b16 %v3224
      %v3496 = vunpack.c.l.b16 %v3225
      %v3497 = vunpack.c.h.b16 %v3225
      %v3498 = vunpack.c.l.b16 %v3226
      %v3499 = vunpack.c.h.b16 %v3226
      %v3500 = vunpack.c.l.b16 %v3227
      %v3501 = vunpack.c.h.b16 %v3227
      %v3502 = vunpack.c.l.b16 %v3228
      %v3503 = vunpack.c.h.b16 %v3228
      %v3504 = vunpack.c.l.b16 %v3229
      %v3505 = vunpack.c.h.b16 %v3229
      %v3506 = vunpack.c.l.b16 %v3230
      %v3507 = vunpack.c.h.b16 %v3230
      %v3508 = vunpack.c.l.b16 %v3231
      %v3509 = vunpack.c.h.b16 %v3231
      %v3510 = vunpack.c.l.b16 %v3232
      %v3511 = vunpack.c.h.b16 %v3232
      %v3512 = vunpack.c.l.b16 %v3233
      %v3513 = vunpack.c.h.b16 %v3233
      %v3514 = vunpack.c.l.b16 %v3234
      %v3515 = vunpack.c.h.b16 %v3234
      %v3516 = vunpack.c.l.b16 %v3235
      %v3517 = vunpack.c.h.b16 %v3235
      %v3518 = vunpack.c.l.b16 %v3236
      %v3519 = vunpack.c.h.b16 %v3236
      %v3520 = vunpack.c.l.b16 %v3237
      %v3521 = vunpack.c.h.b16 %v3237
      %v3522 = vunpack.c.l.b16 %v3238
      %v3523 = vunpack.c.h.b16 %v3238
      %v3524 = vunpack.c.l.b16 %v3239
      %v3525 = vunpack.c.h.b16 %v3239
      %v3526 = vunpack.c.l.b16 %v3240
      %v3527 = vunpack.c.h.b16 %v3240
      %v3528 = vunpack.c.l.b16 %v3241
      %v3529 = vunpack.c.h.b16 %v3241
      %v3530 = vunpack.c.l.b16 %v3242
      %v3531 = vunpack.c.h.b16 %v3242
      %v3532 = vunpack.c.l.b16 %v3243
      %v3533 = vunpack.c.h.b16 %v3243
      %v3534 = vunpack.c.l.b16 %v3244
      %v3535 = vunpack.c.h.b16 %v3244
      %v3536 = vunpack.c.l.b16 %v3245
      %v3537 = vunpack.c.h.b16 %v3245
      %v3538 = vunpack.c.l.b16 %v3246
      %v3539 = vunpack.c.h.b16 %v3246
      %v3540 = vunpack.c.l.b16 %v3247
      %v3541 = vunpack.c.h.b16 %v3247
      %v3542 = vunpack.c.l.b16 %v3248
      %v3543 = vunpack.c.h.b16 %v3248
      %v3544 = vunpack.c.l.b16 %v3249
      %v3545 = vunpack.c.h.b16 %v3249
      %v3546 = vunpack.c.l.b16 %v3250
      %v3547 = vunpack.c.h.b16 %v3250
      %v3548 = vunpack.c.l.b16 %v3251
      %v3549 = vunpack.c.h.b16 %v3251
      %v3550 = vunpack.c.l.b16 %v3252
      %v3551 = vunpack.c.h.b16 %v3252
      %v3552 = vunpack.c.l.b16 %v3253
      %v3553 = vunpack.c.h.b16 %v3253
      %v3554 = vunpack.c.l.b16 %v3254
      %v3555 = vunpack.c.h.b16 %v3254
      %v3556 = vunpack.c.l.b16 %v3255
      %v3557 = vunpack.c.h.b16 %v3255
      %v3558 = vunpack.c.l.b16 %v3256
      %v3559 = vunpack.c.h.b16 %v3256
      %v3560 = vunpack.c.l.b16 %v3257
      %v3561 = vunpack.c.h.b16 %v3257
      %v3562 = vunpack.c.l.b16 %v3258
      %v3563 = vunpack.c.h.b16 %v3258
      %v3564 = vunpack.c.l.b16 %v3259
      %v3565 = vunpack.c.h.b16 %v3259
      %v3566 = vunpack.c.l.b16 %v3260
      %v3567 = vunpack.c.h.b16 %v3260
      %v3568 = vunpack.c.l.b16 %v3261
      %v3569 = vunpack.c.h.b16 %v3261
      %v3570 = vunpack.c.l.b16 %v3262
      %v3571 = vunpack.c.h.b16 %v3262
      %v3572 = vunpack.c.l.b16 %v3263
      %v3573 = vunpack.c.h.b16 %v3263
      %v3574 = vunpack.c.l.b16 %v3264
      %v3575 = vunpack.c.h.b16 %v3264
      %v3576 = vunpack.c.l.b16 %v3265
      %v3577 = vunpack.c.h.b16 %v3265
      %v3578 = vunpack.c.l.b16 %v3266
      %v3579 = vunpack.c.h.b16 %v3266
      %v3580 = vunpack.c.l.b16 %v3267
      %v3581 = vunpack.c.h.b16 %v3267
      %v3582 = vunpack.c.l.b16 %v3268
      %v3583 = vunpack.c.h.b16 %v3268
      %v3584 = vunpack.c.l.b16 %v3269
      %v3585 = vunpack.c.h.b16 %v3269
      %v3586 = vunpack.c.l.b16 %v3270
      %v3587 = vunpack.c.h.b16 %v3270
      %v3588 = vunpack.c.l.b16 %v3271
      %v3589 = vunpack.c.h.b16 %v3271
      %v3590 = vunpack.c.l.b16 %v3272
      %v3591 = vunpack.c.h.b16 %v3272
      %v3592 = vunpack.c.l.b16 %v3273
      %v3593 = vunpack.c.h.b16 %v3273
      %v3594 = vunpack.c.l.b16 %v3274
      %v3595 = vunpack.c.h.b16 %v3274
      %v3596 = vunpack.c.l.b16 %v3275
      %v3597 = vunpack.c.h.b16 %v3275
      %v3598 = vunpack.c.l.b16 %v3276
      %v3599 = vunpack.c.h.b16 %v3276
      %v3600 = vunpack.c.l.b16 %v3277
      %v3601 = vunpack.c.h.b16 %v3277
      %v3602 = vunpack.c.l.b16 %v3278
      %v3603 = vunpack.c.h.b16 %v3278
      %v3604 = vunpack.c.l.b16 %v3279
      %v3605 = vunpack.c.h.b16 %v3279
      %v3606 = vunpack.c.l.b16 %v3280
      %v3607 = vunpack.c.h.b16 %v3280
      %v3608 = vunpack.c.l.b16 %v3281
      %v3609 = vunpack.c.h.b16 %v3281
      %v3610 = vunpack.c.l.b16 %v3282
      %v3611 = vunpack.c.h.b16 %v3282
      %v3612 = vunpack.c.l.b16 %v3283
      %v3613 = vunpack.c.h.b16 %v3283
      %v3614 = vunpack.c.l.b16 %v3284
      %v3615 = vunpack.c.h.b16 %v3284
      %v3616 = vunpack.c.l.b16 %v3285
      %v3617 = vunpack.c.h.b16 %v3285
      %v3618 = vunpack.c.l.b16 %v3286
      %v3619 = vunpack.c.h.b16 %v3286
      %v3620 = vunpack.c.l.b16 %v3287
      %v3621 = vunpack.c.h.b16 %v3287
      %v3622 = vunpack.c.l.b16 %v3288
      %v3623 = vunpack.c.h.b16 %v3288
      %v3624 = vunpack.c.l.b16 %v3289
      %v3625 = vunpack.c.h.b16 %v3289
      %v3626 = vunpack.c.l.b16 %v3290
      %v3627 = vunpack.c.h.b16 %v3290
      %v3628 = vunpack.c.l.b16 %v3291
      %v3629 = vunpack.c.h.b16 %v3291
      %v3630 = vunpack.c.l.b16 %v3292
      %v3631 = vunpack.c.h.b16 %v3292
      %v3632 = vunpack.c.l.b16 %v3293
      %v3633 = vunpack.c.h.b16 %v3293
      %v3634 = vunpack.c.l.b16 %v3294
      %v3635 = vunpack.c.h.b16 %v3294
      %v3636 = vunpack.c.l.b16 %v3295
      %v3637 = vunpack.c.h.b16 %v3295
      %v3638 = vunpack.c.l.b16 %v3296
      %v3639 = vunpack.c.h.b16 %v3296
      %v3640 = vunpack.c.l.b16 %v3297
      %v3641 = vunpack.c.h.b16 %v3297
      %v3642 = vunpack.c.l.b16 %v3298
      %v3643 = vunpack.c.h.b16 %v3298
      %v3644 = vunpack.c.l.b16 %v3299
      %v3645 = vunpack.c.h.b16 %v3299
      %v3646 = vunpack.c.l.b16 %v3300
      %v3647 = vunpack.c.h.b16 %v3300
      %v3648 = vunpack.c.l.b16 %v3301
      %v3649 = vunpack.c.h.b16 %v3301
      %v3650 = vunpack.c.l.b16 %v3302
      %v3651 = vunpack.c.h.b16 %v3302
      %v3652 = vunpack.c.l.b16 %v3303
      %v3653 = vunpack.c.h.b16 %v3303
      %v3654 = vunpack.c.l.b16 %v3304
      %v3655 = vunpack.c.h.b16 %v3304
      %v3656 = vunpack.c.l.b16 %v3305
      %v3657 = vunpack.c.h.b16 %v3305
      %v3658 = vunpack.c.l.b16 %v3306
      %v3659 = vunpack.c.h.b16 %v3306
      %v3660 = vunpack.c.l.b16 %v3307
      %v3661 = vunpack.c.h.b16 %v3307
      %v3662 = vunpack.c.l.b16 %v3308
      %v3663 = vunpack.c.h.b16 %v3308
      %v3664 = vunpack.c.l.b16 %v3309
      %v3665 = vunpack.c.h.b16 %v3309
      %v3666 = vunpack.c.l.b16 %v3310
      %v3667 = vunpack.c.h.b16 %v3310
      %v3668 = vunpack.c.l.b16 %v3311
      %v3669 = vunpack.c.h.b16 %v3311
      %v3670 = vunpack.c.l.b16 %v3312
      %v3671 = vunpack.c.h.b16 %v3312
      %v3672 = vunpack.c.l.b16 %v3313
      %v3673 = vunpack.c.h.b16 %v3313
      %v3674 = vunpack.c.l.b16 %v3314
      %v3675 = vunpack.c.h.b16 %v3314
      %v3676 = vunpack.c.l.b16 %v3315
      %v3677 = vunpack.c.h.b16 %v3315
      %v3678 = vunpack.c.l.b16 %v3316
      %v3679 = vunpack.c.h.b16 %v3316
      %v3680 = vunpack.c.l.b16 %v3317
      %v3681 = vunpack.c.h.b16 %v3317
      %v3682 = vunpack.c.l.b16 %v3318
      %v3683 = vunpack.c.h.b16 %v3318
      %v3684 = vunpack.c.l.b16 %v3319
      %v3685 = vunpack.c.h.b16 %v3319
      %v3686 = vunpack.c.l.b16 %v3320
      %v3687 = vunpack.c.h.b16 %v3320
      %v3688 = vunpack.c.l.b16 %v3321
      %v3689 = vunpack.c.h.b16 %v3321
      %v3690 = vunpack.c.l.b16 %v3322
      %v3691 = vunpack.c.h.b16 %v3322
      %v3692 = vunpack.c.l.b16 %v3323
      %v3693 = vunpack.c.h.b16 %v3323
      %v3694 = vunpack.c.l.b16 %v3324
      %v3695 = vunpack.c.h.b16 %v3324
      %v3696 = vunpack.c.l.b16 %v3325
      %v3697 = vunpack.c.h.b16 %v3325
      %v3698 = vunpack.c.l.b16 %v3326
      %v3699 = vunpack.c.h.b16 %v3326
      %v3700 = vunpack.c.l.b16 %v3327
      %v3701 = vunpack.c.h.b16 %v3327
      %v3702 = vunpack.c.l.b16 %v3328
      %v3703 = vunpack.c.h.b16 %v3328
      %v3704 = vunpack.c.l.b16 %v3329
      %v3705 = vunpack.c.h.b16 %v3329
      %v3706 = vunpack.c.l.b16 %v3330
      %v3707 = vunpack.c.h.b16 %v3330
      %v3708 = vunpack.c.l.b16 %v3331
      %v3709 = vunpack.c.h.b16 %v3331
      %v3710 = vunpack.c.l.b16 %v3332
      %v3711 = vunpack.c.h.b16 %v3332
      %v3712 = vunpack.c.l.b16 %v3333
      %v3713 = vunpack.c.h.b16 %v3333
      %v3714 = vunpack.c.l.b16 %v3334
      %v3715 = vunpack.c.h.b16 %v3334
      %v3716 = vunpack.c.l.b16 %v3335
      %v3717 = vunpack.c.h.b16 %v3335
      %v3718 = vunpack.c.l.b16 %v3336
      %v3719 = vunpack.c.h.b16 %v3336
      %v3720 = vunpack.c.l.b16 %v3337
      %v3721 = vunpack.c.h.b16 %v3337
      %v3722 = vpack.c.b16 %v3470, %v3466
      %v3723 = vpack.c.b16 %v3471, %v3467
      %v3724 = vpack.c.b16 %v3472, %v3468
      %v3725 = vpack.c.b16 %v3473, %v3469
      %v3726 = vpack.c.b16 %v3478, %v3474
      %v3727 = vpack.c.b16 %v3479, %v3475
      %v3728 = vpack.c.b16 %v3480, %v3476
      %v3729 = vpack.c.b16 %v3481, %v3477
      %v3730 = vpack.c.b16 %v3486, %v3482
      %v3731 = vpack.c.b16 %v3487, %v3483
      %v3732 = vpack.c.b16 %v3488, %v3484
      %v3733 = vpack.c.b16 %v3489, %v3485
      %v3734 = vpack.c.b16 %v3494, %v3490
      %v3735 = vpack.c.b16 %v3495, %v3491
      %v3736 = vpack.c.b16 %v3496, %v3492
      %v3737 = vpack.c.b16 %v3497, %v3493
      %v3738 = vpack.c.b16 %v3502, %v3498
      %v3739 = vpack.c.b16 %v3503, %v3499
      %v3740 = vpack.c.b16 %v3504, %v3500
      %v3741 = vpack.c.b16 %v3505, %v3501
      %v3742 = vpack.c.b16 %v3510, %v3506
      %v3743 = vpack.c.b16 %v3511, %v3507
      %v3744 = vpack.c.b16 %v3512, %v3508
      %v3745 = vpack.c.b16 %v3513, %v3509
      %v3746 = vpack.c.b16 %v3518, %v3514
      %v3747 = vpack.c.b16 %v3519, %v3515
      %v3748 = vpack.c.b16 %v3520, %v3516
      %v3749 = vpack.c.b16 %v3521, %v3517
      %v3750 = vpack.c.b16 %v3526, %v3522
      %v3751 = vpack.c.b16 %v3527, %v3523
      %v3752 = vpack.c.b16 %v3528, %v3524
      %v3753 = vpack.c.b16 %v3529, %v3525
      %v3754 = vpack.c.b16 %v3534, %v3530
      %v3755 = vpack.c.b16 %v3535, %v3531
      %v3756 = vpack.c.b16 %v3536, %v3532
      %v3757 = vpack.c.b16 %v3537, %v3533
      %v3758 = vpack.c.b16 %v3542, %v3538
      %v3759 = vpack.c.b16 %v3543, %v3539
      %v3760 = vpack.c.b16 %v3544, %v3540
      %v3761 = vpack.c.b16 %v3545, %v3541
      %v3762 = vpack.c.b16 %v3550, %v3546
      %v3763 = vpack.c.b16 %v3551, %v3547
      %v3764 = vpack.c.b16 %v3552, %v3548
      %v3765 = vpack.c.b16 %v3553, %v3549
      %v3766 = vpack.c.b16 %v3558, %v3554
      %v3767 = vpack.c.b16 %v3559, %v3555
      %v3768 = vpack.c.b16 %v3560, %v3556
      %v3769 = vpack.c.b16 %v3561, %v3557
      %v3770 = vpack.c.b16 %v3566, %v3562
      %v3771 = vpack.c.b16 %v3567, %v3563
      %v3772 = vpack.c.b16 %v3568, %v3564
      %v3773 = vpack.c.b16 %v3569, %v3565
      %v3774 = vpack.c.b16 %v3574, %v3570
      %v3775 = vpack.c.b16 %v3575, %v3571
      %v3776 = vpack.c.b16 %v3576, %v3572
      %v3777 = vpack.c.b16 %v3577, %v3573
      %v3778 = vpack.c.b16 %v3582, %v3578
      %v3779 = vpack.c.b16 %v3583, %v3579
      %v3780 = vpack.c.b16 %v3584, %v3580
      %v3781 = vpack.c.b16 %v3585, %v3581
      %v3782 = vpack.c.b16 %v3590, %v3586
      %v3783 = vpack.c.b16 %v3591, %v3587
      %v3784 = vpack.c.b16 %v3592, %v3588
      %v3785 = vpack.c.b16 %v3593, %v3589
      %v3786 = vpack.c.b16 %v3598, %v3594
      %v3787 = vpack.c.b16 %v3599, %v3595
      %v3788 = vpack.c.b16 %v3600, %v3596
      %v3789 = vpack.c.b16 %v3601, %v3597
      %v3790 = vpack.c.b16 %v3606, %v3602
      %v3791 = vpack.c.b16 %v3607, %v3603
      %v3792 = vpack.c.b16 %v3608, %v3604
      %v3793 = vpack.c.b16 %v3609, %v3605
      %v3794 = vpack.c.b16 %v3614, %v3610
      %v3795 = vpack.c.b16 %v3615, %v3611
      %v3796 = vpack.c.b16 %v3616, %v3612
      %v3797 = vpack.c.b16 %v3617, %v3613
      %v3798 = vpack.c.b16 %v3622, %v3618
      %v3799 = vpack.c.b16 %v3623, %v3619
      %v3800 = vpack.c.b16 %v3624, %v3620
      %v3801 = vpack.c.b16 %v3625, %v3621
      %v3802 = vpack.c.b16 %v3630, %v3626
      %v3803 = vpack.c.b16 %v3631, %v3627
      %v3804 = vpack.c.b16 %v3632, %v3628
      %v3805 = vpack.c.b16 %v3633, %v3629
      %v3806 = vpack.c.b16 %v3638, %v3634
      %v3807 = vpack.c.b16 %v3639, %v3635
      %v3808 = vpack.c.b16 %v3640, %v3636
      %v3809 = vpack.c.b16 %v3641, %v3637
      %v3810 = vpack.c.b16 %v3646, %v3642
      %v3811 = vpack.c.b16 %v3647, %v3643
      %v3812 = vpack.c.b16 %v3648, %v3644
      %v3813 = vpack.c.b16 %v3649, %v3645
      %v3814 = vpack.c.b16 %v3654, %v3650
      %v3815 = vpack.c.b16 %v3655, %v3651
      %v3816 = vpack.c.b16 %v3656, %v3652
      %v3817 = vpack.c.b16 %v3657, %v3653
      %v3818 = vpack.c.b16 %v3662, %v3658
      %v3819 = vpack.c.b16 %v3663, %v3659
      %v3820 = vpack.c.b16 %v3664, %v3660
      %v3821 = vpack.c.b16 %v3665, %v3661
      %v3822 = vpack.c.b16 %v3670, %v3666
      %v3823 = vpack.c.b16 %v3671, %v3667
      %v3824 = vpack.c.b16 %v3672, %v3668
      %v3825 = vpack.c.b16 %v3673, %v3669
      %v3826 = vpack.c.b16 %v3678, %v3674
      %v3827 = vpack.c.b16 %v3679, %v3675
      %v3828 = vpack.c.b16 %v3680, %v3676
      %v3829 = vpack.c.b16 %v3681, %v3677
      %v3830 = vpack.c.b16 %v3686, %v3682
      %v3831 = vpack.c.b16 %v3687, %v3683
      %v3832 = vpack.c.b16 %v3688, %v3684
      %v3833 = vpack.c.b16 %v3689, %v3685
      %v3834 = vpack.c.b16 %v3694, %v3690
      %v3835 = vpack.c.b16 %v3695, %v3691
      %v3836 = vpack.c.b16 %v3696, %v3692
      %v3837 = vpack.c.b16 %v3697, %v3693
      %v3838 = vpack.c.b16 %v3702, %v3698
      %v3839 = vpack.c.b16 %v3703, %v3699
      %v3840 = vpack.c.b16 %v3704, %v3700
      %v3841 = vpack.c.b16 %v3705, %v3701
      %v3842 = vpack.c.b16 %v3710, %v3706
      %v3843 = vpack.c.b16 %v3711, %v3707
      %v3844 = vpack.c.b16 %v3712, %v3708
      %v3845 = vpack.c.b16 %v3713, %v3709
      %v3846 = vpack.c.b16 %v3718, %v3714
      %v3847 = vpack.c.b16 %v3719, %v3715
      %v3848 = vpack.c.b16 %v3720, %v3716
      %v3849 = vpack.c.b16 %v3721, %v3717
      %3978 = vmatprep.subr.bf16.mxu0 %v3723
      %3979 = vmatpush1.bf16.msra.mxu0 %v3722
      %3980 = vmatprep.subr.bf16.mxu0 %v3727
      %3981 = vmatpush1.bf16.msra.mxu0 %v3726
      %3982 = vmatprep.subr.bf16.mxu0 %v3731
      %3983 = vmatpush1.bf16.msra.mxu0 %v3730
      %3984 = vmatprep.subr.bf16.mxu0 %v3735
      %3985 = vmatpush1.bf16.msra.mxu0 %v3734
      %3986 = vmatprep.subr.bf16.mxu0 %v3739
      %3987 = vmatpush1.bf16.msra.mxu0 %v3738
      %3988 = vmatprep.subr.bf16.mxu0 %v3743
      %3989 = vmatpush1.bf16.msra.mxu0 %v3742
      %3990 = vmatprep.subr.bf16.mxu0 %v3747
      %3991 = vmatpush1.bf16.msra.mxu0 %v3746
      %3992 = vmatprep.subr.bf16.mxu0 %v3751
      %3993 = vmatpush1.bf16.msra.mxu0 %v3750
      %3994 = vmatprep.subr.bf16.mxu0 %v3755
      %3995 = vmatpush1.bf16.msra.mxu0 %v3754
      %3996 = vmatprep.subr.bf16.mxu0 %v3759
      %3997 = vmatpush1.bf16.msra.mxu0 %v3758
      %3998 = vmatprep.subr.bf16.mxu0 %v3763
      %3999 = vmatpush1.bf16.msra.mxu0 %v3762
      %4000 = vmatprep.subr.bf16.mxu0 %v3767
      %4001 = vmatpush1.bf16.msra.mxu0 %v3766
      %4002 = vmatprep.subr.bf16.mxu0 %v3771
      %4003 = vmatpush1.bf16.msra.mxu0 %v3770
      %4004 = vmatprep.subr.bf16.mxu0 %v3775
      %4005 = vmatpush1.bf16.msra.mxu0 %v3774
      %4006 = vmatprep.subr.bf16.mxu0 %v3779
      %4007 = vmatpush1.bf16.msra.mxu0 %v3778
      %4008 = vmatprep.subr.bf16.mxu0 %v3783
      %4009 = vmatpush1.bf16.msra.mxu0 %v3782
      %4010 = vmatprep.mubr.bf16.mxu0 %v3179
      %4011 = vmatmul.mubr.bf16.gmra.mrb[0].mxu0 %v3178
      %v4012 = vpop.f32.mrb[0].mxu0
      %v4013 = vadd.f32 0.0, %v4012
      %v4014 = vpop.f32.mrb[0].mxu0
      %v4015 = vadd.f32 0.0, %v4014
      %v4016 = vpop.f32.mrb[0].mxu0
      %v4017 = vadd.f32 0.0, %v4016
      %v4018 = vpop.f32.mrb[0].mxu0
      %v4019 = vadd.f32 0.0, %v4018
      %4020 = vmatprep.mubr.bf16.mxu0 %v3183
      %4021 = vmatmul.mubr.bf16.gmra.mrb[0].mxu0 %v3182
      %v4022 = vpop.f32.mrb[0].mxu0
      %v4023 = vadd.f32 0.0, %v4022
      %v4024 = vpop.f32.mrb[0].mxu0
      %v4025 = vadd.f32 0.0, %v4024
      %v4026 = vpop.f32.mrb[0].mxu0
      %v4027 = vadd.f32 0.0, %v4026
      %v4028 = vpop.f32.mrb[0].mxu0
      %v4029 = vadd.f32 0.0, %v4028
      %4030 = vmatprep.mubr.bf16.mxu0 %v3187
      %4031 = vmatmul.mubr.bf16.gmra.mrb[0].mxu0 %v3186
      %v4032 = vpop.f32.mrb[0].mxu0
      %v4033 = vadd.f32 0.0, %v4032
      %v4034 = vpop.f32.mrb[0].mxu0
      %v4035 = vadd.f32 0.0, %v4034
      %v4036 = vpop.f32.mrb[0].mxu0
      %v4037 = vadd.f32 0.0, %v4036
      %v4038 = vpop.f32.mrb[0].mxu0
      %v4039 = vadd.f32 0.0, %v4038
      %4040 = vmatprep.mubr.bf16.mxu0 %v3191
      %4041 = vmatmul.mubr.bf16.gmra.mrb[0].mxu0 %v3190
      %v4042 = vpop.f32.mrb[0].mxu0
      %v4043 = vadd.f32 0.0, %v4042
      %v4044 = vpop.f32.mrb[0].mxu0
      %v4045 = vadd.f32 0.0, %v4044
      %v4046 = vpop.f32.mrb[0].mxu0
      %v4047 = vadd.f32 0.0, %v4046
      %v4048 = vpop.f32.mrb[0].mxu0
      %v4049 = vadd.f32 0.0, %v4048
      %4050 = vmatprep.mubr.bf16.mxu0 %v3195
      %4051 = vmatmul.mubr.bf16.gmra.mrb[0].mxu0 %v3194
      %v4052 = vpop.f32.mrb[0].mxu0
      %v4053 = vadd.f32 0.0, %v4052
      %v4054 = vpop.f32.mrb[0].mxu0
      %v4055 = vadd.f32 0.0, %v4054
      %v4056 = vpop.f32.mrb[0].mxu0
      %v4057 = vadd.f32 0.0, %v4056
      %v4058 = vpop.f32.mrb[0].mxu0
      %v4059 = vadd.f32 0.0, %v4058
      %4060 = vmatprep.mubr.bf16.mxu0 %v3199
      %4061 = vmatmul.mubr.bf16.gmra.mrb[0].mxu0 %v3198
      %v4062 = vpop.f32.mrb[0].mxu0
      %v4063 = vadd.f32 0.0, %v4062
      %v4064 = vpop.f32.mrb[0].mxu0
      %v4065 = vadd.f32 0.0, %v4064
      %v4066 = vpop.f32.mrb[0].mxu0
      %v4067 = vadd.f32 0.0, %v4066
      %v4068 = vpop.f32.mrb[0].mxu0
      %v4069 = vadd.f32 0.0, %v4068
      %4070 = vmatprep.mubr.bf16.mxu0 %v3203
      %4071 = vmatmul.mubr.bf16.gmra.mrb[0].mxu0 %v3202
      %v4072 = vpop.f32.mrb[0].mxu0
      %v4073 = vadd.f32 0.0, %v4072
      %v4074 = vpop.f32.mrb[0].mxu0
      %v4075 = vadd.f32 0.0, %v4074
      %v4076 = vpop.f32.mrb[0].mxu0
      %v4077 = vadd.f32 0.0, %v4076
      %v4078 = vpop.f32.mrb[0].mxu0
      %v4079 = vadd.f32 0.0, %v4078
      %4080 = vmatprep.mubr.bf16.mxu0 %v3207
      %4081 = vmatmul.mubr.bf16.gmra.mrb[0].mxu0 %v3206
      %v4082 = vpop.f32.mrb[0].mxu0
      %v4083 = vadd.f32 0.0, %v4082
      %v4084 = vpop.f32.mrb[0].mxu0
      %v4085 = vadd.f32 0.0, %v4084
      %v4086 = vpop.f32.mrb[0].mxu0
      %v4087 = vadd.f32 0.0, %v4086
      %v4088 = vpop.f32.mrb[0].mxu0
      %v4089 = vadd.f32 0.0, %v4088
      %4090 = vdwg.mxu0
      %4091 = vmatprep.subr.bf16.mxu0 %v3787
      %4092 = vmatpush1.bf16.msra.mxu0 %v3786
      %4093 = vmatprep.subr.bf16.mxu0 %v3791
      %4094 = vmatpush1.bf16.msra.mxu0 %v3790
      %4095 = vmatprep.subr.bf16.mxu0 %v3795
      %4096 = vmatpush1.bf16.msra.mxu0 %v3794
      %4097 = vmatprep.subr.bf16.mxu0 %v3799
      %4098 = vmatpush1.bf16.msra.mxu0 %v3798
      %4099 = vmatprep.subr.bf16.mxu0 %v3803
      %4100 = vmatpush1.bf16.msra.mxu0 %v3802
      %4101 = vmatprep.subr.bf16.mxu0 %v3807
      %4102 = vmatpush1.bf16.msra.mxu0 %v3806
      %4103 = vmatprep.subr.bf16.mxu0 %v3811
      %4104 = vmatpush1.bf16.msra.mxu0 %v3810
      %4105 = vmatprep.subr.bf16.mxu0 %v3815
      %4106 = vmatpush1.bf16.msra.mxu0 %v3814
      %4107 = vmatprep.subr.bf16.mxu0 %v3819
      %4108 = vmatpush1.bf16.msra.mxu0 %v3818
      %4109 = vmatprep.subr.bf16.mxu0 %v3823
      %4110 = vmatpush1.bf16.msra.mxu0 %v3822
      %4111 = vmatprep.subr.bf16.mxu0 %v3827
      %4112 = vmatpush1.bf16.msra.mxu0 %v3826
      %4113 = vmatprep.subr.bf16.mxu0 %v3831
      %4114 = vmatpush1.bf16.msra.mxu0 %v3830
      %4115 = vmatprep.subr.bf16.mxu0 %v3835
      %4116 = vmatpush1.bf16.msra.mxu0 %v3834
      %4117 = vmatprep.subr.bf16.mxu0 %v3839
      %4118 = vmatpush1.bf16.msra.mxu0 %v3838
      %4119 = vmatprep.subr.bf16.mxu0 %v3843
      %4120 = vmatpush1.bf16.msra.mxu0 %v3842
      %4121 = vmatprep.subr.bf16.mxu0 %v3847
      %4122 = vmatpush1.bf16.msra.mxu0 %v3846
      %4123 = vmatprep.mubr.bf16.mxu0 %v3181
      %4124 = vmatmul.mubr.bf16.gmra.mrb[0].mxu0 %v3180
      %v4125 = vpop.f32.mrb[0].mxu0
      %v4126 = vadd.f32 %v4013, %v4125
      %v4127 = vpop.f32.mrb[0].mxu0
      %v4128 = vadd.f32 %v4015, %v4127
      %v4129 = vpop.f32.mrb[0].mxu0
      %v4130 = vadd.f32 %v4017, %v4129
      %v4131 = vpop.f32.mrb[0].mxu0
      %v4132 = vadd.f32 %v4019, %v4131
      %4133 = vmatprep.mubr.bf16.mxu0 %v3185
      %4134 = vmatmul.mubr.bf16.gmra.mrb[0].mxu0 %v3184
      %v4135 = vpop.f32.mrb[0].mxu0
      %v4136 = vadd.f32 %v4023, %v4135
      %v4137 = vpop.f32.mrb[0].mxu0
      %v4138 = vadd.f32 %v4025, %v4137
      %v4139 = vpop.f32.mrb[0].mxu0
      %v4140 = vadd.f32 %v4027, %v4139
      %v4141 = vpop.f32.mrb[0].mxu0
      %v4142 = vadd.f32 %v4029, %v4141
      %4143 = vmatprep.mubr.bf16.mxu0 %v3189
      %4144 = vmatmul.mubr.bf16.gmra.mrb[0].mxu0 %v3188
      %v4145 = vpop.f32.mrb[0].mxu0
      %v4146 = vadd.f32 %v4033, %v4145
      %v4147 = vpop.f32.mrb[0].mxu0
      %v4148 = vadd.f32 %v4035, %v4147
      %v4149 = vpop.f32.mrb[0].mxu0
      %v4150 = vadd.f32 %v4037, %v4149
      %v4151 = vpop.f32.mrb[0].mxu0
      %v4152 = vadd.f32 %v4039, %v4151
      %4153 = vmatprep.mubr.bf16.mxu0 %v3193
      %4154 = vmatmul.mubr.bf16.gmra.mrb[0].mxu0 %v3192
      %v4155 = vpop.f32.mrb[0].mxu0
      %v4156 = vadd.f32 %v4043, %v4155
      %v4157 = vpop.f32.mrb[0].mxu0
      %v4158 = vadd.f32 %v4045, %v4157
      %v4159 = vpop.f32.mrb[0].mxu0
      %v4160 = vadd.f32 %v4047, %v4159
      %v4161 = vpop.f32.mrb[0].mxu0
      %v4162 = vadd.f32 %v4049, %v4161
      %4163 = vmatprep.mubr.bf16.mxu0 %v3197
      %4164 = vmatmul.mubr.bf16.gmra.mrb[0].mxu0 %v3196
      %v4165 = vpop.f32.mrb[0].mxu0
      %v4166 = vadd.f32 %v4053, %v4165
      %v4167 = vpop.f32.mrb[0].mxu0
      %v4168 = vadd.f32 %v4055, %v4167
      %v4169 = vpop.f32.mrb[0].mxu0
      %v4170 = vadd.f32 %v4057, %v4169
      %v4171 = vpop.f32.mrb[0].mxu0
      %v4172 = vadd.f32 %v4059, %v4171
      %4173 = vmatprep.mubr.bf16.mxu0 %v3201
      %4174 = vmatmul.mubr.bf16.gmra.mrb[0].mxu0 %v3200
      %v4175 = vpop.f32.mrb[0].mxu0
      %v4176 = vadd.f32 %v4063, %v4175
      %v4177 = vpop.f32.mrb[0].mxu0
      %v4178 = vadd.f32 %v4065, %v4177
      %v4179 = vpop.f32.mrb[0].mxu0
      %v4180 = vadd.f32 %v4067, %v4179
      %v4181 = vpop.f32.mrb[0].mxu0
      %v4182 = vadd.f32 %v4069, %v4181
      %4183 = vmatprep.mubr.bf16.mxu0 %v3205
      %4184 = vmatmul.mubr.bf16.gmra.mrb[0].mxu0 %v3204
      %v4185 = vpop.f32.mrb[0].mxu0
      %v4186 = vadd.f32 %v4073, %v4185
      %v4187 = vpop.f32.mrb[0].mxu0
      %v4188 = vadd.f32 %v4075, %v4187
      %v4189 = vpop.f32.mrb[0].mxu0
      %v4190 = vadd.f32 %v4077, %v4189
      %v4191 = vpop.f32.mrb[0].mxu0
      %v4192 = vadd.f32 %v4079, %v4191
      %4193 = vmatprep.mubr.bf16.mxu0 %v3209
      %4194 = vmatmul.mubr.bf16.gmra.mrb[0].mxu0 %v3208
      %v4195 = vpop.f32.mrb[0].mxu0
      %v4196 = vadd.f32 %v4083, %v4195
      %v4197 = vpop.f32.mrb[0].mxu0
      %v4198 = vadd.f32 %v4085, %v4197
      %v4199 = vpop.f32.mrb[0].mxu0
      %v4200 = vadd.f32 %v4087, %v4199
      %v4201 = vpop.f32.mrb[0].mxu0
      %v4202 = vadd.f32 %v4089, %v4201
      %4203 = vdwg.mxu0
      %4204 = vmatprep.subr.bf16.mxu0 %v3725
      %4205 = vmatpush1.bf16.msra.mxu0 %v3724
      %4206 = vmatprep.subr.bf16.mxu0 %v3729
      %4207 = vmatpush1.bf16.msra.mxu0 %v3728
      %4208 = vmatprep.subr.bf16.mxu0 %v3733
      %4209 = vmatpush1.bf16.msra.mxu0 %v3732
      %4210 = vmatprep.subr.bf16.mxu0 %v3737
      %4211 = vmatpush1.bf16.msra.mxu0 %v3736
      %4212 = vmatprep.subr.bf16.mxu0 %v3741
      %4213 = vmatpush1.bf16.msra.mxu0 %v3740
      %4214 = vmatprep.subr.bf16.mxu0 %v3745
      %4215 = vmatpush1.bf16.msra.mxu0 %v3744
      %4216 = vmatprep.subr.bf16.mxu0 %v3749
      %4217 = vmatpush1.bf16.msra.mxu0 %v3748
      %4218 = vmatprep.subr.bf16.mxu0 %v3753
      %4219 = vmatpush1.bf16.msra.mxu0 %v3752
      %4220 = vmatprep.subr.bf16.mxu0 %v3757
      %4221 = vmatpush1.bf16.msra.mxu0 %v3756
      %4222 = vmatprep.subr.bf16.mxu0 %v3761
      %4223 = vmatpush1.bf16.msra.mxu0 %v3760
      %4224 = vmatprep.subr.bf16.mxu0 %v3765
      %4225 = vmatpush1.bf16.msra.mxu0 %v3764
      %4226 = vmatprep.subr.bf16.mxu0 %v3769
      %4227 = vmatpush1.bf16.msra.mxu0 %v3768
      %4228 = vmatprep.subr.bf16.mxu0 %v3773
      %4229 = vmatpush1.bf16.msra.mxu0 %v3772
      %4230 = vmatprep.subr.bf16.mxu0 %v3777
      %4231 = vmatpush1.bf16.msra.mxu0 %v3776
      %4232 = vmatprep.subr.bf16.mxu0 %v3781
      %4233 = vmatpush1.bf16.msra.mxu0 %v3780
      %4234 = vmatprep.subr.bf16.mxu0 %v3785
      %4235 = vmatpush1.bf16.msra.mxu0 %v3784
      %4236 = vmatprep.mubr.bf16.mxu0 %v3179
      %4237 = vmatmul.mubr.bf16.gmra.mrb[0].mxu0 %v3178
      %v4238 = vpop.f32.mrb[0].mxu0
      %v4239 = vadd.f32 0.0, %v4238
      %v4240 = vpop.f32.mrb[0].mxu0
      %v4241 = vadd.f32 0.0, %v4240
      %v4242 = vpop.f32.mrb[0].mxu0
      %v4243 = vadd.f32 0.0, %v4242
      %v4244 = vpop.f32.mrb[0].mxu0
      %v4245 = vadd.f32 0.0, %v4244
      %4246 = vmatprep.mubr.bf16.mxu0 %v3183
      %4247 = vmatmul.mubr.bf16.gmra.mrb[0].mxu0 %v3182
      %v4248 = vpop.f32.mrb[0].mxu0
      %v4249 = vadd.f32 0.0, %v4248
      %v4250 = vpop.f32.mrb[0].mxu0
      %v4251 = vadd.f32 0.0, %v4250
      %v4252 = vpop.f32.mrb[0].mxu0
      %v4253 = vadd.f32 0.0, %v4252
      %v4254 = vpop.f32.mrb[0].mxu0
      %v4255 = vadd.f32 0.0, %v4254
      %4256 = vmatprep.mubr.bf16.mxu0 %v3187
      %4257 = vmatmul.mubr.bf16.gmra.mrb[0].mxu0 %v3186
      %v4258 = vpop.f32.mrb[0].mxu0
      %v4259 = vadd.f32 0.0, %v4258
      %v4260 = vpop.f32.mrb[0].mxu0
      %v4261 = vadd.f32 0.0, %v4260
      %v4262 = vpop.f32.mrb[0].mxu0
      %v4263 = vadd.f32 0.0, %v4262
      %v4264 = vpop.f32.mrb[0].mxu0
      %v4265 = vadd.f32 0.0, %v4264
      %4266 = vmatprep.mubr.bf16.mxu0 %v3191
      %4267 = vmatmul.mubr.bf16.gmra.mrb[0].mxu0 %v3190
      %v4268 = vpop.f32.mrb[0].mxu0
      %v4269 = vadd.f32 0.0, %v4268
      %v4270 = vpop.f32.mrb[0].mxu0
      %v4271 = vadd.f32 0.0, %v4270
      %v4272 = vpop.f32.mrb[0].mxu0
      %v4273 = vadd.f32 0.0, %v4272
      %v4274 = vpop.f32.mrb[0].mxu0
      %v4275 = vadd.f32 0.0, %v4274
      %4276 = vmatprep.mubr.bf16.mxu0 %v3195
      %4277 = vmatmul.mubr.bf16.gmra.mrb[0].mxu0 %v3194
      %v4278 = vpop.f32.mrb[0].mxu0
      %v4279 = vadd.f32 0.0, %v4278
      %v4280 = vpop.f32.mrb[0].mxu0
      %v4281 = vadd.f32 0.0, %v4280
      %v4282 = vpop.f32.mrb[0].mxu0
      %v4283 = vadd.f32 0.0, %v4282
      %v4284 = vpop.f32.mrb[0].mxu0
      %v4285 = vadd.f32 0.0, %v4284
      %4286 = vmatprep.mubr.bf16.mxu0 %v3199
      %4287 = vmatmul.mubr.bf16.gmra.mrb[0].mxu0 %v3198
      %v4288 = vpop.f32.mrb[0].mxu0
      %v4289 = vadd.f32 0.0, %v4288
      %v4290 = vpop.f32.mrb[0].mxu0
      %v4291 = vadd.f32 0.0, %v4290
      %v4292 = vpop.f32.mrb[0].mxu0
      %v4293 = vadd.f32 0.0, %v4292
      %v4294 = vpop.f32.mrb[0].mxu0
      %v4295 = vadd.f32 0.0, %v4294
      %4296 = vmatprep.mubr.bf16.mxu0 %v3203
      %4297 = vmatmul.mubr.bf16.gmra.mrb[0].mxu0 %v3202
      %v4298 = vpop.f32.mrb[0].mxu0
      %v4299 = vadd.f32 0.0, %v4298
      %v4300 = vpop.f32.mrb[0].mxu0
      %v4301 = vadd.f32 0.0, %v4300
      %v4302 = vpop.f32.mrb[0].mxu0
      %v4303 = vadd.f32 0.0, %v4302
      %v4304 = vpop.f32.mrb[0].mxu0
      %v4305 = vadd.f32 0.0, %v4304
      %4306 = vmatprep.mubr.bf16.mxu0 %v3207
      %4307 = vmatmul.mubr.bf16.gmra.mrb[0].mxu0 %v3206
      %v4308 = vpop.f32.mrb[0].mxu0
      %v4309 = vadd.f32 0.0, %v4308
      %v4310 = vpop.f32.mrb[0].mxu0
      %v4311 = vadd.f32 0.0, %v4310
      %v4312 = vpop.f32.mrb[0].mxu0
      %v4313 = vadd.f32 0.0, %v4312
      %v4314 = vpop.f32.mrb[0].mxu0
      %v4315 = vadd.f32 0.0, %v4314
      %4316 = vdwg.mxu0
      %4317 = vmatprep.subr.bf16.mxu0 %v3789
      %4318 = vmatpush1.bf16.msra.mxu0 %v3788
      %4319 = vmatprep.subr.bf16.mxu0 %v3793
      %4320 = vmatpush1.bf16.msra.mxu0 %v3792
      %4321 = vmatprep.subr.bf16.mxu0 %v3797
      %4322 = vmatpush1.bf16.msra.mxu0 %v3796
      %4323 = vmatprep.subr.bf16.mxu0 %v3801
      %4324 = vmatpush1.bf16.msra.mxu0 %v3800
      %4325 = vmatprep.subr.bf16.mxu0 %v3805
      %4326 = vmatpush1.bf16.msra.mxu0 %v3804
      %4327 = vmatprep.subr.bf16.mxu0 %v3809
      %4328 = vmatpush1.bf16.msra.mxu0 %v3808
      %4329 = vmatprep.subr.bf16.mxu0 %v3813
      %4330 = vmatpush1.bf16.msra.mxu0 %v3812
      %4331 = vmatprep.subr.bf16.mxu0 %v3817
      %4332 = vmatpush1.bf16.msra.mxu0 %v3816
      %4333 = vmatprep.subr.bf16.mxu0 %v3821
      %4334 = vmatpush1.bf16.msra.mxu0 %v3820
      %4335 = vmatprep.subr.bf16.mxu0 %v3825
      %4336 = vmatpush1.bf16.msra.mxu0 %v3824
      %4337 = vmatprep.subr.bf16.mxu0 %v3829
      %4338 = vmatpush1.bf16.msra.mxu0 %v3828
      %4339 = vmatprep.subr.bf16.mxu0 %v3833
      %4340 = vmatpush1.bf16.msra.mxu0 %v3832
      %4341 = vmatprep.subr.bf16.mxu0 %v3837
      %4342 = vmatpush1.bf16.msra.mxu0 %v3836
      %4343 = vmatprep.subr.bf16.mxu0 %v3841
      %4344 = vmatpush1.bf16.msra.mxu0 %v3840
      %4345 = vmatprep.subr.bf16.mxu0 %v3845
      %4346 = vmatpush1.bf16.msra.mxu0 %v3844
      %4347 = vmatprep.subr.bf16.mxu0 %v3849
      %4348 = vmatpush1.bf16.msra.mxu0 %v3848
      %4349 = vmatprep.mubr.bf16.mxu0 %v3181
      %4350 = vmatmul.mubr.bf16.gmra.mrb[0].mxu0 %v3180
      %v4351 = vpop.f32.mrb[0].mxu0
      %v4352 = vadd.f32 %v4239, %v4351
      %v4353 = vpop.f32.mrb[0].mxu0
      %v4354 = vadd.f32 %v4241, %v4353
      %v4355 = vpop.f32.mrb[0].mxu0
      %v4356 = vadd.f32 %v4243, %v4355
      %v4357 = vpop.f32.mrb[0].mxu0
      %v4358 = vadd.f32 %v4245, %v4357
      %4359 = vmatprep.mubr.bf16.mxu0 %v3185
      %4360 = vmatmul.mubr.bf16.gmra.mrb[0].mxu0 %v3184
      %v4361 = vpop.f32.mrb[0].mxu0
      %v4362 = vadd.f32 %v4249, %v4361
      %v4363 = vpop.f32.mrb[0].mxu0
      %v4364 = vadd.f32 %v4251, %v4363
      %v4365 = vpop.f32.mrb[0].mxu0
      %v4366 = vadd.f32 %v4253, %v4365
      %v4367 = vpop.f32.mrb[0].mxu0
      %v4368 = vadd.f32 %v4255, %v4367
      %4369 = vmatprep.mubr.bf16.mxu0 %v3189
      %4370 = vmatmul.mubr.bf16.gmra.mrb[0].mxu0 %v3188
      %v4371 = vpop.f32.mrb[0].mxu0
      %v4372 = vadd.f32 %v4259, %v4371
      %v4373 = vpop.f32.mrb[0].mxu0
      %v4374 = vadd.f32 %v4261, %v4373
      %v4375 = vpop.f32.mrb[0].mxu0
      %v4376 = vadd.f32 %v4263, %v4375
      %v4377 = vpop.f32.mrb[0].mxu0
      %v4378 = vadd.f32 %v4265, %v4377
      %4379 = vmatprep.mubr.bf16.mxu0 %v3193
      %4380 = vmatmul.mubr.bf16.gmra.mrb[0].mxu0 %v3192
      %v4381 = vpop.f32.mrb[0].mxu0
      %v4382 = vadd.f32 %v4269, %v4381
      %v4383 = vpop.f32.mrb[0].mxu0
      %v4384 = vadd.f32 %v4271, %v4383
      %v4385 = vpop.f32.mrb[0].mxu0
      %v4386 = vadd.f32 %v4273, %v4385
      %v4387 = vpop.f32.mrb[0].mxu0
      %v4388 = vadd.f32 %v4275, %v4387
      %4389 = vmatprep.mubr.bf16.mxu0 %v3197
      %4390 = vmatmul.mubr.bf16.gmra.mrb[0].mxu0 %v3196
      %v4391 = vpop.f32.mrb[0].mxu0
      %v4392 = vadd.f32 %v4279, %v4391
      %v4393 = vpop.f32.mrb[0].mxu0
      %v4394 = vadd.f32 %v4281, %v4393
      %v4395 = vpop.f32.mrb[0].mxu0
      %v4396 = vadd.f32 %v4283, %v4395
      %v4397 = vpop.f32.mrb[0].mxu0
      %v4398 = vadd.f32 %v4285, %v4397
      %4399 = vmatprep.mubr.bf16.mxu0 %v3201
      %4400 = vmatmul.mubr.bf16.gmra.mrb[0].mxu0 %v3200
      %v4401 = vpop.f32.mrb[0].mxu0
      %v4402 = vadd.f32 %v4289, %v4401
      %v4403 = vpop.f32.mrb[0].mxu0
      %v4404 = vadd.f32 %v4291, %v4403
      %v4405 = vpop.f32.mrb[0].mxu0
      %v4406 = vadd.f32 %v4293, %v4405
      %v4407 = vpop.f32.mrb[0].mxu0
      %v4408 = vadd.f32 %v4295, %v4407
      %4409 = vmatprep.mubr.bf16.mxu0 %v3205
      %4410 = vmatmul.mubr.bf16.gmra.mrb[0].mxu0 %v3204
      %v4411 = vpop.f32.mrb[0].mxu0
      %v4412 = vadd.f32 %v4299, %v4411
      %v4413 = vpop.f32.mrb[0].mxu0
      %v4414 = vadd.f32 %v4301, %v4413
      %v4415 = vpop.f32.mrb[0].mxu0
      %v4416 = vadd.f32 %v4303, %v4415
      %v4417 = vpop.f32.mrb[0].mxu0
      %v4418 = vadd.f32 %v4305, %v4417
      %4419 = vmatprep.mubr.bf16.mxu0 %v3209
      %4420 = vmatmul.mubr.bf16.gmra.mrb[0].mxu0 %v3208
      %v4421 = vpop.f32.mrb[0].mxu0
      %v4422 = vadd.f32 %v4309, %v4421
      %v4423 = vpop.f32.mrb[0].mxu0
      %v4424 = vadd.f32 %v4311, %v4423
      %v4425 = vpop.f32.mrb[0].mxu0
      %v4426 = vadd.f32 %v4313, %v4425
      %v4427 = vpop.f32.mrb[0].mxu0
      %v4428 = vadd.f32 %v4315, %v4427
      %4429 = vdwg.mxu0
      %v4430 = vlaneseq
      %v4431 = vshrl.u32 %v4430, 7
      %v4432 = vsub.s32 2, %v4431
      %v4433 = vrot.slane %v286, %v4432
      %v4434 = vlaneseq
      %v4435 = vshrl.u32 %v4434, 7
      %v4436 = vsub.s32 2, %v4435
      %v4437 = vrot.slane %v287, %v4436
      %v4438 = vlaneseq
      %v4439 = vshrl.u32 %v4438, 7
      %v4440 = vsub.s32 2, %v4439
      %v4441 = vrot.slane %v288, %v4440
      %v4442 = vlaneseq
      %v4443 = vshrl.u32 %v4442, 7
      %v4444 = vsub.s32 2, %v4443
      %v4445 = vrot.slane %v289, %v4444
      %v4446 = vmul.f32 %v4126, %v4433
      %v4447 = vmul.f32 %v4128, %v4437
      %v4448 = vmul.f32 %v4352, %v4441
      %v4449 = vmul.f32 %v4354, %v4445
      %v4450 = vmul.f32 %v4130, %v4433
      %v4451 = vmul.f32 %v4132, %v4437
      %v4452 = vmul.f32 %v4356, %v4441
      %v4453 = vmul.f32 %v4358, %v4445
      %v4454 = vmul.f32 %v4136, %v4433
      %v4455 = vmul.f32 %v4138, %v4437
      %v4456 = vmul.f32 %v4362, %v4441
      %v4457 = vmul.f32 %v4364, %v4445
      %v4458 = vmul.f32 %v4140, %v4433
      %v4459 = vmul.f32 %v4142, %v4437
      %v4460 = vmul.f32 %v4366, %v4441
      %v4461 = vmul.f32 %v4368, %v4445
      %v4462 = vmul.f32 %v4146, %v4433
      %v4463 = vmul.f32 %v4148, %v4437
      %v4464 = vmul.f32 %v4372, %v4441
      %v4465 = vmul.f32 %v4374, %v4445
      %v4466 = vmul.f32 %v4150, %v4433
      %v4467 = vmul.f32 %v4152, %v4437
      %v4468 = vmul.f32 %v4376, %v4441
      %v4469 = vmul.f32 %v4378, %v4445
      %v4470 = vmul.f32 %v4156, %v4433
      %v4471 = vmul.f32 %v4158, %v4437
      %v4472 = vmul.f32 %v4382, %v4441
      %v4473 = vmul.f32 %v4384, %v4445
      %v4474 = vmul.f32 %v4160, %v4433
      %v4475 = vmul.f32 %v4162, %v4437
      %v4476 = vmul.f32 %v4386, %v4441
      %v4477 = vmul.f32 %v4388, %v4445
      %v4478 = vmul.f32 %v4166, %v4433
      %v4479 = vmul.f32 %v4168, %v4437
      %v4480 = vmul.f32 %v4392, %v4441
      %v4481 = vmul.f32 %v4394, %v4445
      %v4482 = vmul.f32 %v4170, %v4433
      %v4483 = vmul.f32 %v4172, %v4437
      %v4484 = vmul.f32 %v4396, %v4441
      %v4485 = vmul.f32 %v4398, %v4445
      %v4486 = vmul.f32 %v4176, %v4433
      %v4487 = vmul.f32 %v4178, %v4437
      %v4488 = vmul.f32 %v4402, %v4441
      %v4489 = vmul.f32 %v4404, %v4445
      %v4490 = vmul.f32 %v4180, %v4433
      %v4491 = vmul.f32 %v4182, %v4437
      %v4492 = vmul.f32 %v4406, %v4441
      %v4493 = vmul.f32 %v4408, %v4445
      %v4494 = vmul.f32 %v4186, %v4433
      %v4495 = vmul.f32 %v4188, %v4437
      %v4496 = vmul.f32 %v4412, %v4441
      %v4497 = vmul.f32 %v4414, %v4445
      %v4498 = vmul.f32 %v4190, %v4433
      %v4499 = vmul.f32 %v4192, %v4437
      %v4500 = vmul.f32 %v4416, %v4441
      %v4501 = vmul.f32 %v4418, %v4445
      %v4502 = vmul.f32 %v4196, %v4433
      %v4503 = vmul.f32 %v4198, %v4437
      %v4504 = vmul.f32 %v4422, %v4441
      %v4505 = vmul.f32 %v4424, %v4445
      %v4506 = vmul.f32 %v4200, %v4433
      %v4507 = vmul.f32 %v4202, %v4437
      %v4508 = vmul.f32 %v4426, %v4441
      %v4509 = vmul.f32 %v4428, %v4445
      %v4510 = vlaneseq
      %v4511 = vshrl.u32 %v4510, 7
      %v4512 = vsub.s32 3, %v4511
      %v4513 = vrot.slane %v286, %v4512
      %v4514 = vlaneseq
      %v4515 = vshrl.u32 %v4514, 7
      %v4516 = vsub.s32 3, %v4515
      %v4517 = vrot.slane %v287, %v4516
      %v4518 = vlaneseq
      %v4519 = vshrl.u32 %v4518, 7
      %v4520 = vsub.s32 3, %v4519
      %v4521 = vrot.slane %v288, %v4520
      %v4522 = vlaneseq
      %v4523 = vshrl.u32 %v4522, 7
      %v4524 = vsub.s32 3, %v4523
      %v4525 = vrot.slane %v289, %v4524
      %v4526 = vadd.f32 %v4446, %v4513
      %v4527 = vadd.f32 %v4447, %v4517
      %v4528 = vadd.f32 %v4448, %v4521
      %v4529 = vadd.f32 %v4449, %v4525
      %v4530 = vadd.f32 %v4450, %v4513
      %v4531 = vadd.f32 %v4451, %v4517
      %v4532 = vadd.f32 %v4452, %v4521
      %v4533 = vadd.f32 %v4453, %v4525
      %v4534 = vadd.f32 %v4454, %v4513
      %v4535 = vadd.f32 %v4455, %v4517
      %v4536 = vadd.f32 %v4456, %v4521
      %v4537 = vadd.f32 %v4457, %v4525
      %v4538 = vadd.f32 %v4458, %v4513
      %v4539 = vadd.f32 %v4459, %v4517
      %v4540 = vadd.f32 %v4460, %v4521
      %v4541 = vadd.f32 %v4461, %v4525
      %v4542 = vadd.f32 %v4462, %v4513
      %v4543 = vadd.f32 %v4463, %v4517
      %v4544 = vadd.f32 %v4464, %v4521
      %v4545 = vadd.f32 %v4465, %v4525
      %v4546 = vadd.f32 %v4466, %v4513
      %v4547 = vadd.f32 %v4467, %v4517
      %v4548 = vadd.f32 %v4468, %v4521
      %v4549 = vadd.f32 %v4469, %v4525
      %v4550 = vadd.f32 %v4470, %v4513
      %v4551 = vadd.f32 %v4471, %v4517
      %v4552 = vadd.f32 %v4472, %v4521
      %v4553 = vadd.f32 %v4473, %v4525
      %v4554 = vadd.f32 %v4474, %v4513
      %v4555 = vadd.f32 %v4475, %v4517
      %v4556 = vadd.f32 %v4476, %v4521
      %v4557 = vadd.f32 %v4477, %v4525
      %v4558 = vadd.f32 %v4478, %v4513
      %v4559 = vadd.f32 %v4479, %v4517
      %v4560 = vadd.f32 %v4480, %v4521
      %v4561 = vadd.f32 %v4481, %v4525
      %v4562 = vadd.f32 %v4482, %v4513
      %v4563 = vadd.f32 %v4483, %v4517
      %v4564 = vadd.f32 %v4484, %v4521
      %v4565 = vadd.f32 %v4485, %v4525
      %v4566 = vadd.f32 %v4486, %v4513
      %v4567 = vadd.f32 %v4487, %v4517
      %v4568 = vadd.f32 %v4488, %v4521
      %v4569 = vadd.f32 %v4489, %v4525
      %v4570 = vadd.f32 %v4490, %v4513
      %v4571 = vadd.f32 %v4491, %v4517
      %v4572 = vadd.f32 %v4492, %v4521
      %v4573 = vadd.f32 %v4493, %v4525
      %v4574 = vadd.f32 %v4494, %v4513
      %v4575 = vadd.f32 %v4495, %v4517
      %v4576 = vadd.f32 %v4496, %v4521
      %v4577 = vadd.f32 %v4497, %v4525
      %v4578 = vadd.f32 %v4498, %v4513
      %v4579 = vadd.f32 %v4499, %v4517
      %v4580 = vadd.f32 %v4500, %v4521
      %v4581 = vadd.f32 %v4501, %v4525
      %v4582 = vadd.f32 %v4502, %v4513
      %v4583 = vadd.f32 %v4503, %v4517
      %v4584 = vadd.f32 %v4504, %v4521
      %v4585 = vadd.f32 %v4505, %v4525
      %v4586 = vadd.f32 %v4506, %v4513
      %v4587 = vadd.f32 %v4507, %v4517
      %v4588 = vadd.f32 %v4508, %v4521
      %v4589 = vadd.f32 %v4509, %v4525
      %vm4590 = vcmp.ge.f32.partialorder %v4526, 0.0
      %vm4591 = vcmp.ge.f32.partialorder %v4527, 0.0
      %vm4592 = vcmp.ge.f32.partialorder %v4528, 0.0
      %vm4593 = vcmp.ge.f32.partialorder %v4529, 0.0
      %vm4594 = vcmp.ge.f32.partialorder %v4530, 0.0
      %vm4595 = vcmp.ge.f32.partialorder %v4531, 0.0
      %vm4596 = vcmp.ge.f32.partialorder %v4532, 0.0
      %vm4597 = vcmp.ge.f32.partialorder %v4533, 0.0
      %vm4598 = vcmp.ge.f32.partialorder %v4534, 0.0
      %vm4599 = vcmp.ge.f32.partialorder %v4535, 0.0
      %vm4600 = vcmp.ge.f32.partialorder %v4536, 0.0
      %vm4601 = vcmp.ge.f32.partialorder %v4537, 0.0
      %vm4602 = vcmp.ge.f32.partialorder %v4538, 0.0
      %vm4603 = vcmp.ge.f32.partialorder %v4539, 0.0
      %vm4604 = vcmp.ge.f32.partialorder %v4540, 0.0
      %vm4605 = vcmp.ge.f32.partialorder %v4541, 0.0
      %vm4606 = vcmp.ge.f32.partialorder %v4542, 0.0
      %vm4607 = vcmp.ge.f32.partialorder %v4543, 0.0
      %vm4608 = vcmp.ge.f32.partialorder %v4544, 0.0
      %vm4609 = vcmp.ge.f32.partialorder %v4545, 0.0
      %vm4610 = vcmp.ge.f32.partialorder %v4546, 0.0
      %vm4611 = vcmp.ge.f32.partialorder %v4547, 0.0
      %vm4612 = vcmp.ge.f32.partialorder %v4548, 0.0
      %vm4613 = vcmp.ge.f32.partialorder %v4549, 0.0
      %vm4614 = vcmp.ge.f32.partialorder %v4550, 0.0
      %vm4615 = vcmp.ge.f32.partialorder %v4551, 0.0
      %vm4616 = vcmp.ge.f32.partialorder %v4552, 0.0
      %vm4617 = vcmp.ge.f32.partialorder %v4553, 0.0
      %vm4618 = vcmp.ge.f32.partialorder %v4554, 0.0
      %vm4619 = vcmp.ge.f32.partialorder %v4555, 0.0
      %vm4620 = vcmp.ge.f32.partialorder %v4556, 0.0
      %vm4621 = vcmp.ge.f32.partialorder %v4557, 0.0
      %vm4622 = vcmp.ge.f32.partialorder %v4558, 0.0
      %vm4623 = vcmp.ge.f32.partialorder %v4559, 0.0
      %vm4624 = vcmp.ge.f32.partialorder %v4560, 0.0
      %vm4625 = vcmp.ge.f32.partialorder %v4561, 0.0
      %vm4626 = vcmp.ge.f32.partialorder %v4562, 0.0
      %vm4627 = vcmp.ge.f32.partialorder %v4563, 0.0
      %vm4628 = vcmp.ge.f32.partialorder %v4564, 0.0
      %vm4629 = vcmp.ge.f32.partialorder %v4565, 0.0
      %vm4630 = vcmp.ge.f32.partialorder %v4566, 0.0
      %vm4631 = vcmp.ge.f32.partialorder %v4567, 0.0
      %vm4632 = vcmp.ge.f32.partialorder %v4568, 0.0
      %vm4633 = vcmp.ge.f32.partialorder %v4569, 0.0
      %vm4634 = vcmp.ge.f32.partialorder %v4570, 0.0
      %vm4635 = vcmp.ge.f32.partialorder %v4571, 0.0
      %vm4636 = vcmp.ge.f32.partialorder %v4572, 0.0
      %vm4637 = vcmp.ge.f32.partialorder %v4573, 0.0
      %vm4638 = vcmp.ge.f32.partialorder %v4574, 0.0
      %vm4639 = vcmp.ge.f32.partialorder %v4575, 0.0
      %vm4640 = vcmp.ge.f32.partialorder %v4576, 0.0
      %vm4641 = vcmp.ge.f32.partialorder %v4577, 0.0
      %vm4642 = vcmp.ge.f32.partialorder %v4578, 0.0
      %vm4643 = vcmp.ge.f32.partialorder %v4579, 0.0
      %vm4644 = vcmp.ge.f32.partialorder %v4580, 0.0
      %vm4645 = vcmp.ge.f32.partialorder %v4581, 0.0
      %vm4646 = vcmp.ge.f32.partialorder %v4582, 0.0
      %vm4647 = vcmp.ge.f32.partialorder %v4583, 0.0
      %vm4648 = vcmp.ge.f32.partialorder %v4584, 0.0
      %vm4649 = vcmp.ge.f32.partialorder %v4585, 0.0
      %vm4650 = vcmp.ge.f32.partialorder %v4586, 0.0
      %vm4651 = vcmp.ge.f32.partialorder %v4587, 0.0
      %vm4652 = vcmp.ge.f32.partialorder %v4588, 0.0
      %vm4653 = vcmp.ge.f32.partialorder %v4589, 0.0
      %v4654 = vsel %vm4590, 1.0, -1.0
      %v4655 = vsel %vm4591, 1.0, -1.0
      %v4656 = vsel %vm4592, 1.0, -1.0
      %v4657 = vsel %vm4593, 1.0, -1.0
      %v4658 = vsel %vm4594, 1.0, -1.0
      %v4659 = vsel %vm4595, 1.0, -1.0
      %v4660 = vsel %vm4596, 1.0, -1.0
      %v4661 = vsel %vm4597, 1.0, -1.0
      %v4662 = vsel %vm4598, 1.0, -1.0
      %v4663 = vsel %vm4599, 1.0, -1.0
      %v4664 = vsel %vm4600, 1.0, -1.0
      %v4665 = vsel %vm4601, 1.0, -1.0
      %v4666 = vsel %vm4602, 1.0, -1.0
      %v4667 = vsel %vm4603, 1.0, -1.0
      %v4668 = vsel %vm4604, 1.0, -1.0
      %v4669 = vsel %vm4605, 1.0, -1.0
      %v4670 = vsel %vm4606, 1.0, -1.0
      %v4671 = vsel %vm4607, 1.0, -1.0
      %v4672 = vsel %vm4608, 1.0, -1.0
      %v4673 = vsel %vm4609, 1.0, -1.0
      %v4674 = vsel %vm4610, 1.0, -1.0
      %v4675 = vsel %vm4611, 1.0, -1.0
      %v4676 = vsel %vm4612, 1.0, -1.0
      %v4677 = vsel %vm4613, 1.0, -1.0
      %v4678 = vsel %vm4614, 1.0, -1.0
      %v4679 = vsel %vm4615, 1.0, -1.0
      %v4680 = vsel %vm4616, 1.0, -1.0
      %v4681 = vsel %vm4617, 1.0, -1.0
      %v4682 = vsel %vm4618, 1.0, -1.0
      %v4683 = vsel %vm4619, 1.0, -1.0
      %v4684 = vsel %vm4620, 1.0, -1.0
      %v4685 = vsel %vm4621, 1.0, -1.0
      %v4686 = vsel %vm4622, 1.0, -1.0
      %v4687 = vsel %vm4623, 1.0, -1.0
      %v4688 = vsel %vm4624, 1.0, -1.0
      %v4689 = vsel %vm4625, 1.0, -1.0
      %v4690 = vsel %vm4626, 1.0, -1.0
      %v4691 = vsel %vm4627, 1.0, -1.0
      %v4692 = vsel %vm4628, 1.0, -1.0
      %v4693 = vsel %vm4629, 1.0, -1.0
      %v4694 = vsel %vm4630, 1.0, -1.0
      %v4695 = vsel %vm4631, 1.0, -1.0
      %v4696 = vsel %vm4632, 1.0, -1.0
      %v4697 = vsel %vm4633, 1.0, -1.0
      %v4698 = vsel %vm4634, 1.0, -1.0
      %v4699 = vsel %vm4635, 1.0, -1.0
      %v4700 = vsel %vm4636, 1.0, -1.0
      %v4701 = vsel %vm4637, 1.0, -1.0
      %v4702 = vsel %vm4638, 1.0, -1.0
      %v4703 = vsel %vm4639, 1.0, -1.0
      %v4704 = vsel %vm4640, 1.0, -1.0
      %v4705 = vsel %vm4641, 1.0, -1.0
      %v4706 = vsel %vm4642, 1.0, -1.0
      %v4707 = vsel %vm4643, 1.0, -1.0
      %v4708 = vsel %vm4644, 1.0, -1.0
      %v4709 = vsel %vm4645, 1.0, -1.0
      %v4710 = vsel %vm4646, 1.0, -1.0
      %v4711 = vsel %vm4647, 1.0, -1.0
      %v4712 = vsel %vm4648, 1.0, -1.0
      %v4713 = vsel %vm4649, 1.0, -1.0
      %v4714 = vsel %vm4650, 1.0, -1.0
      %v4715 = vsel %vm4651, 1.0, -1.0
      %v4716 = vsel %vm4652, 1.0, -1.0
      %v4717 = vsel %vm4653, 1.0, -1.0
      %v4718 = vpack.c.bf16 %v4658, %v4654
      %v4719 = vpack.c.bf16 %v4659, %v4655
      %v4720 = vpack.c.bf16 %v4660, %v4656
      %v4721 = vpack.c.bf16 %v4661, %v4657
      %v4722 = vpack.c.bf16 %v4666, %v4662
      %v4723 = vpack.c.bf16 %v4667, %v4663
      %v4724 = vpack.c.bf16 %v4668, %v4664
      %v4725 = vpack.c.bf16 %v4669, %v4665
      %v4726 = vpack.c.bf16 %v4674, %v4670
      %v4727 = vpack.c.bf16 %v4675, %v4671
      %v4728 = vpack.c.bf16 %v4676, %v4672
      %v4729 = vpack.c.bf16 %v4677, %v4673
      %v4730 = vpack.c.bf16 %v4682, %v4678
      %v4731 = vpack.c.bf16 %v4683, %v4679
      %v4732 = vpack.c.bf16 %v4684, %v4680
      %v4733 = vpack.c.bf16 %v4685, %v4681
      %v4734 = vpack.c.bf16 %v4690, %v4686
      %v4735 = vpack.c.bf16 %v4691, %v4687
      %v4736 = vpack.c.bf16 %v4692, %v4688
      %v4737 = vpack.c.bf16 %v4693, %v4689
      %v4738 = vpack.c.bf16 %v4698, %v4694
      %v4739 = vpack.c.bf16 %v4699, %v4695
      %v4740 = vpack.c.bf16 %v4700, %v4696
      %v4741 = vpack.c.bf16 %v4701, %v4697
      %v4742 = vpack.c.bf16 %v4706, %v4702
      %v4743 = vpack.c.bf16 %v4707, %v4703
      %v4744 = vpack.c.bf16 %v4708, %v4704
      %v4745 = vpack.c.bf16 %v4709, %v4705
      %v4746 = vpack.c.bf16 %v4714, %v4710
      %v4747 = vpack.c.bf16 %v4715, %v4711
      %v4748 = vpack.c.bf16 %v4716, %v4712
      %v4749 = vpack.c.bf16 %v4717, %v4713
      %v4750 = vld [vmem:[%s3] sm:$0xff]
      %v4751 = vld [vmem:[%s3 + $0x8] sm:$0xff]
      %v4752 = vld [vmem:[%s3 + $0x10] sm:$0xff]
      %v4753 = vld [vmem:[%s3 + $0x18] sm:$0xff]
      %v4754 = vld [vmem:[%s3 + $0x20] sm:$0xff]
      %v4755 = vld [vmem:[%s3 + $0x28] sm:$0xff]
      %v4756 = vld [vmem:[%s3 + $0x30] sm:$0xff]
      %v4757 = vld [vmem:[%s3 + $0x38] sm:$0xff]
      %v4758 = vld [vmem:[%s3 + $0x40] sm:$0xff]
      %v4759 = vld [vmem:[%s3 + $0x48] sm:$0xff]
      %v4760 = vld [vmem:[%s3 + $0x50] sm:$0xff]
      %v4761 = vld [vmem:[%s3 + $0x58] sm:$0xff]
      %v4762 = vld [vmem:[%s3 + $0x60] sm:$0xff]
      %v4763 = vld [vmem:[%s3 + $0x68] sm:$0xff]
      %v4764 = vld [vmem:[%s3 + $0x70] sm:$0xff]
      %v4765 = vld [vmem:[%s3 + $0x78] sm:$0xff]
      %v4766 = vld [vmem:[%s3 + $0x80] sm:$0xff]
      %v4767 = vld [vmem:[%s3 + $0x88] sm:$0xff]
      %v4768 = vld [vmem:[%s3 + $0x90] sm:$0xff]
      %v4769 = vld [vmem:[%s3 + $0x98] sm:$0xff]
      %v4770 = vld [vmem:[%s3 + $0xa0] sm:$0xff]
      %v4771 = vld [vmem:[%s3 + $0xa8] sm:$0xff]
      %v4772 = vld [vmem:[%s3 + $0xb0] sm:$0xff]
      %v4773 = vld [vmem:[%s3 + $0xb8] sm:$0xff]
      %v4774 = vld [vmem:[%s3 + $0xc0] sm:$0xff]
      %v4775 = vld [vmem:[%s3 + $0xc8] sm:$0xff]
      %v4776 = vld [vmem:[%s3 + $0xd0] sm:$0xff]
      %v4777 = vld [vmem:[%s3 + $0xd8] sm:$0xff]
      %v4778 = vld [vmem:[%s3 + $0xe0] sm:$0xff]
      %v4779 = vld [vmem:[%s3 + $0xe8] sm:$0xff]
      %v4780 = vld [vmem:[%s3 + $0xf0] sm:$0xff]
      %v4781 = vld [vmem:[%s3 + $0xf8] sm:$0xff]
      %v4782 = vld [vmem:[%s3 + $0x100] sm:$0xff]
      %v4783 = vld [vmem:[%s3 + $0x108] sm:$0xff]
      %v4784 = vld [vmem:[%s3 + $0x110] sm:$0xff]
      %v4785 = vld [vmem:[%s3 + $0x118] sm:$0xff]
      %v4786 = vld [vmem:[%s3 + $0x120] sm:$0xff]
      %v4787 = vld [vmem:[%s3 + $0x128] sm:$0xff]
      %v4788 = vld [vmem:[%s3 + $0x130] sm:$0xff]
      %v4789 = vld [vmem:[%s3 + $0x138] sm:$0xff]
      %v4790 = vld [vmem:[%s3 + $0x140] sm:$0xff]
      %v4791 = vld [vmem:[%s3 + $0x148] sm:$0xff]
      %v4792 = vld [vmem:[%s3 + $0x150] sm:$0xff]
      %v4793 = vld [vmem:[%s3 + $0x158] sm:$0xff]
      %v4794 = vld [vmem:[%s3 + $0x160] sm:$0xff]
      %v4795 = vld [vmem:[%s3 + $0x168] sm:$0xff]
      %v4796 = vld [vmem:[%s3 + $0x170] sm:$0xff]
      %v4797 = vld [vmem:[%s3 + $0x178] sm:$0xff]
      %v4798 = vld [vmem:[%s3 + $0x180] sm:$0xff]
      %v4799 = vld [vmem:[%s3 + $0x188] sm:$0xff]
      %v4800 = vld [vmem:[%s3 + $0x190] sm:$0xff]
      %v4801 = vld [vmem:[%s3 + $0x198] sm:$0xff]
      %v4802 = vld [vmem:[%s3 + $0x1a0] sm:$0xff]
      %v4803 = vld [vmem:[%s3 + $0x1a8] sm:$0xff]
      %v4804 = vld [vmem:[%s3 + $0x1b0] sm:$0xff]
      %v4805 = vld [vmem:[%s3 + $0x1b8] sm:$0xff]
      %v4806 = vld [vmem:[%s3 + $0x1c0] sm:$0xff]
      %v4807 = vld [vmem:[%s3 + $0x1c8] sm:$0xff]
      %v4808 = vld [vmem:[%s3 + $0x1d0] sm:$0xff]
      %v4809 = vld [vmem:[%s3 + $0x1d8] sm:$0xff]
      %v4810 = vld [vmem:[%s3 + $0x1e0] sm:$0xff]
      %v4811 = vld [vmem:[%s3 + $0x1e8] sm:$0xff]
      %v4812 = vld [vmem:[%s3 + $0x1f0] sm:$0xff]
      %v4813 = vld [vmem:[%s3 + $0x1f8] sm:$0xff]
      %v4814 = vld [vmem:[%s3 + $0x200] sm:$0xff]
      %v4815 = vld [vmem:[%s3 + $0x208] sm:$0xff]
      %v4816 = vld [vmem:[%s3 + $0x210] sm:$0xff]
      %v4817 = vld [vmem:[%s3 + $0x218] sm:$0xff]
      %v4818 = vld [vmem:[%s3 + $0x220] sm:$0xff]
      %v4819 = vld [vmem:[%s3 + $0x228] sm:$0xff]
      %v4820 = vld [vmem:[%s3 + $0x230] sm:$0xff]
      %v4821 = vld [vmem:[%s3 + $0x238] sm:$0xff]
      %v4822 = vld [vmem:[%s3 + $0x240] sm:$0xff]
      %v4823 = vld [vmem:[%s3 + $0x248] sm:$0xff]
      %v4824 = vld [vmem:[%s3 + $0x250] sm:$0xff]
      %v4825 = vld [vmem:[%s3 + $0x258] sm:$0xff]
      %v4826 = vld [vmem:[%s3 + $0x260] sm:$0xff]
      %v4827 = vld [vmem:[%s3 + $0x268] sm:$0xff]
      %v4828 = vld [vmem:[%s3 + $0x270] sm:$0xff]
      %v4829 = vld [vmem:[%s3 + $0x278] sm:$0xff]
      %v4830 = vld [vmem:[%s3 + $0x280] sm:$0xff]
      %v4831 = vld [vmem:[%s3 + $0x288] sm:$0xff]
      %v4832 = vld [vmem:[%s3 + $0x290] sm:$0xff]
      %v4833 = vld [vmem:[%s3 + $0x298] sm:$0xff]
      %v4834 = vld [vmem:[%s3 + $0x2a0] sm:$0xff]
      %v4835 = vld [vmem:[%s3 + $0x2a8] sm:$0xff]
      %v4836 = vld [vmem:[%s3 + $0x2b0] sm:$0xff]
      %v4837 = vld [vmem:[%s3 + $0x2b8] sm:$0xff]
      %v4838 = vld [vmem:[%s3 + $0x2c0] sm:$0xff]
      %v4839 = vld [vmem:[%s3 + $0x2c8] sm:$0xff]
      %v4840 = vld [vmem:[%s3 + $0x2d0] sm:$0xff]
      %v4841 = vld [vmem:[%s3 + $0x2d8] sm:$0xff]
      %v4842 = vld [vmem:[%s3 + $0x2e0] sm:$0xff]
      %v4843 = vld [vmem:[%s3 + $0x2e8] sm:$0xff]
      %v4844 = vld [vmem:[%s3 + $0x2f0] sm:$0xff]
      %v4845 = vld [vmem:[%s3 + $0x2f8] sm:$0xff]
      %v4846 = vld [vmem:[%s3 + $0x300] sm:$0xff]
      %v4847 = vld [vmem:[%s3 + $0x308] sm:$0xff]
      %v4848 = vld [vmem:[%s3 + $0x310] sm:$0xff]
      %v4849 = vld [vmem:[%s3 + $0x318] sm:$0xff]
      %v4850 = vld [vmem:[%s3 + $0x320] sm:$0xff]
      %v4851 = vld [vmem:[%s3 + $0x328] sm:$0xff]
      %v4852 = vld [vmem:[%s3 + $0x330] sm:$0xff]
      %v4853 = vld [vmem:[%s3 + $0x338] sm:$0xff]
      %v4854 = vld [vmem:[%s3 + $0x340] sm:$0xff]
      %v4855 = vld [vmem:[%s3 + $0x348] sm:$0xff]
      %v4856 = vld [vmem:[%s3 + $0x350] sm:$0xff]
      %v4857 = vld [vmem:[%s3 + $0x358] sm:$0xff]
      %v4858 = vld [vmem:[%s3 + $0x360] sm:$0xff]
      %v4859 = vld [vmem:[%s3 + $0x368] sm:$0xff]
      %v4860 = vld [vmem:[%s3 + $0x370] sm:$0xff]
      %v4861 = vld [vmem:[%s3 + $0x378] sm:$0xff]
      %v4862 = vld [vmem:[%s3 + $0x380] sm:$0xff]
      %v4863 = vld [vmem:[%s3 + $0x388] sm:$0xff]
      %v4864 = vld [vmem:[%s3 + $0x390] sm:$0xff]
      %v4865 = vld [vmem:[%s3 + $0x398] sm:$0xff]
      %v4866 = vld [vmem:[%s3 + $0x3a0] sm:$0xff]
      %v4867 = vld [vmem:[%s3 + $0x3a8] sm:$0xff]
      %v4868 = vld [vmem:[%s3 + $0x3b0] sm:$0xff]
      %v4869 = vld [vmem:[%s3 + $0x3b8] sm:$0xff]
      %v4870 = vld [vmem:[%s3 + $0x3c0] sm:$0xff]
      %v4871 = vld [vmem:[%s3 + $0x3c8] sm:$0xff]
      %v4872 = vld [vmem:[%s3 + $0x3d0] sm:$0xff]
      %v4873 = vld [vmem:[%s3 + $0x3d8] sm:$0xff]
      %v4874 = vld [vmem:[%s3 + $0x3e0] sm:$0xff]
      %v4875 = vld [vmem:[%s3 + $0x3e8] sm:$0xff]
      %v4876 = vld [vmem:[%s3 + $0x3f0] sm:$0xff]
      %v4877 = vld [vmem:[%s3 + $0x3f8] sm:$0xff]
      %v5006 = vunpack.c.l.b16 %v4750
      %v5007 = vunpack.c.h.b16 %v4750
      %v5008 = vunpack.c.l.b16 %v4751
      %v5009 = vunpack.c.h.b16 %v4751
      %v5010 = vunpack.c.l.b16 %v4752
      %v5011 = vunpack.c.h.b16 %v4752
      %v5012 = vunpack.c.l.b16 %v4753
      %v5013 = vunpack.c.h.b16 %v4753
      %v5014 = vunpack.c.l.b16 %v4754
      %v5015 = vunpack.c.h.b16 %v4754
      %v5016 = vunpack.c.l.b16 %v4755
      %v5017 = vunpack.c.h.b16 %v4755
      %v5018 = vunpack.c.l.b16 %v4756
      %v5019 = vunpack.c.h.b16 %v4756
      %v5020 = vunpack.c.l.b16 %v4757
      %v5021 = vunpack.c.h.b16 %v4757
      %v5022 = vunpack.c.l.b16 %v4758
      %v5023 = vunpack.c.h.b16 %v4758
      %v5024 = vunpack.c.l.b16 %v4759
      %v5025 = vunpack.c.h.b16 %v4759
      %v5026 = vunpack.c.l.b16 %v4760
      %v5027 = vunpack.c.h.b16 %v4760
      %v5028 = vunpack.c.l.b16 %v4761
      %v5029 = vunpack.c.h.b16 %v4761
      %v5030 = vunpack.c.l.b16 %v4762
      %v5031 = vunpack.c.h.b16 %v4762
      %v5032 = vunpack.c.l.b16 %v4763
      %v5033 = vunpack.c.h.b16 %v4763
      %v5034 = vunpack.c.l.b16 %v4764
      %v5035 = vunpack.c.h.b16 %v4764
      %v5036 = vunpack.c.l.b16 %v4765
      %v5037 = vunpack.c.h.b16 %v4765
      %v5038 = vunpack.c.l.b16 %v4766
      %v5039 = vunpack.c.h.b16 %v4766
      %v5040 = vunpack.c.l.b16 %v4767
      %v5041 = vunpack.c.h.b16 %v4767
      %v5042 = vunpack.c.l.b16 %v4768
      %v5043 = vunpack.c.h.b16 %v4768
      %v5044 = vunpack.c.l.b16 %v4769
      %v5045 = vunpack.c.h.b16 %v4769
      %v5046 = vunpack.c.l.b16 %v4770
      %v5047 = vunpack.c.h.b16 %v4770
      %v5048 = vunpack.c.l.b16 %v4771
      %v5049 = vunpack.c.h.b16 %v4771
      %v5050 = vunpack.c.l.b16 %v4772
      %v5051 = vunpack.c.h.b16 %v4772
      %v5052 = vunpack.c.l.b16 %v4773
      %v5053 = vunpack.c.h.b16 %v4773
      %v5054 = vunpack.c.l.b16 %v4774
      %v5055 = vunpack.c.h.b16 %v4774
      %v5056 = vunpack.c.l.b16 %v4775
      %v5057 = vunpack.c.h.b16 %v4775
      %v5058 = vunpack.c.l.b16 %v4776
      %v5059 = vunpack.c.h.b16 %v4776
      %v5060 = vunpack.c.l.b16 %v4777
      %v5061 = vunpack.c.h.b16 %v4777
      %v5062 = vunpack.c.l.b16 %v4778
      %v5063 = vunpack.c.h.b16 %v4778
      %v5064 = vunpack.c.l.b16 %v4779
      %v5065 = vunpack.c.h.b16 %v4779
      %v5066 = vunpack.c.l.b16 %v4780
      %v5067 = vunpack.c.h.b16 %v4780
      %v5068 = vunpack.c.l.b16 %v4781
      %v5069 = vunpack.c.h.b16 %v4781
      %v5070 = vunpack.c.l.b16 %v4782
      %v5071 = vunpack.c.h.b16 %v4782
      %v5072 = vunpack.c.l.b16 %v4783
      %v5073 = vunpack.c.h.b16 %v4783
      %v5074 = vunpack.c.l.b16 %v4784
      %v5075 = vunpack.c.h.b16 %v4784
      %v5076 = vunpack.c.l.b16 %v4785
      %v5077 = vunpack.c.h.b16 %v4785
      %v5078 = vunpack.c.l.b16 %v4786
      %v5079 = vunpack.c.h.b16 %v4786
      %v5080 = vunpack.c.l.b16 %v4787
      %v5081 = vunpack.c.h.b16 %v4787
      %v5082 = vunpack.c.l.b16 %v4788
      %v5083 = vunpack.c.h.b16 %v4788
      %v5084 = vunpack.c.l.b16 %v4789
      %v5085 = vunpack.c.h.b16 %v4789
      %v5086 = vunpack.c.l.b16 %v4790
      %v5087 = vunpack.c.h.b16 %v4790
      %v5088 = vunpack.c.l.b16 %v4791
      %v5089 = vunpack.c.h.b16 %v4791
      %v5090 = vunpack.c.l.b16 %v4792
      %v5091 = vunpack.c.h.b16 %v4792
      %v5092 = vunpack.c.l.b16 %v4793
      %v5093 = vunpack.c.h.b16 %v4793
      %v5094 = vunpack.c.l.b16 %v4794
      %v5095 = vunpack.c.h.b16 %v4794
      %v5096 = vunpack.c.l.b16 %v4795
      %v5097 = vunpack.c.h.b16 %v4795
      %v5098 = vunpack.c.l.b16 %v4796
      %v5099 = vunpack.c.h.b16 %v4796
      %v5100 = vunpack.c.l.b16 %v4797
      %v5101 = vunpack.c.h.b16 %v4797
      %v5102 = vunpack.c.l.b16 %v4798
      %v5103 = vunpack.c.h.b16 %v4798
      %v5104 = vunpack.c.l.b16 %v4799
      %v5105 = vunpack.c.h.b16 %v4799
      %v5106 = vunpack.c.l.b16 %v4800
      %v5107 = vunpack.c.h.b16 %v4800
      %v5108 = vunpack.c.l.b16 %v4801
      %v5109 = vunpack.c.h.b16 %v4801
      %v5110 = vunpack.c.l.b16 %v4802
      %v5111 = vunpack.c.h.b16 %v4802
      %v5112 = vunpack.c.l.b16 %v4803
      %v5113 = vunpack.c.h.b16 %v4803
      %v5114 = vunpack.c.l.b16 %v4804
      %v5115 = vunpack.c.h.b16 %v4804
      %v5116 = vunpack.c.l.b16 %v4805
      %v5117 = vunpack.c.h.b16 %v4805
      %v5118 = vunpack.c.l.b16 %v4806
      %v5119 = vunpack.c.h.b16 %v4806
      %v5120 = vunpack.c.l.b16 %v4807
      %v5121 = vunpack.c.h.b16 %v4807
      %v5122 = vunpack.c.l.b16 %v4808
      %v5123 = vunpack.c.h.b16 %v4808
      %v5124 = vunpack.c.l.b16 %v4809
      %v5125 = vunpack.c.h.b16 %v4809
      %v5126 = vunpack.c.l.b16 %v4810
      %v5127 = vunpack.c.h.b16 %v4810
      %v5128 = vunpack.c.l.b16 %v4811
      %v5129 = vunpack.c.h.b16 %v4811
      %v5130 = vunpack.c.l.b16 %v4812
      %v5131 = vunpack.c.h.b16 %v4812
      %v5132 = vunpack.c.l.b16 %v4813
      %v5133 = vunpack.c.h.b16 %v4813
      %v5134 = vunpack.c.l.b16 %v4814
      %v5135 = vunpack.c.h.b16 %v4814
      %v5136 = vunpack.c.l.b16 %v4815
      %v5137 = vunpack.c.h.b16 %v4815
      %v5138 = vunpack.c.l.b16 %v4816
      %v5139 = vunpack.c.h.b16 %v4816
      %v5140 = vunpack.c.l.b16 %v4817
      %v5141 = vunpack.c.h.b16 %v4817
      %v5142 = vunpack.c.l.b16 %v4818
      %v5143 = vunpack.c.h.b16 %v4818
      %v5144 = vunpack.c.l.b16 %v4819
      %v5145 = vunpack.c.h.b16 %v4819
      %v5146 = vunpack.c.l.b16 %v4820
      %v5147 = vunpack.c.h.b16 %v4820
      %v5148 = vunpack.c.l.b16 %v4821
      %v5149 = vunpack.c.h.b16 %v4821
      %v5150 = vunpack.c.l.b16 %v4822
      %v5151 = vunpack.c.h.b16 %v4822
      %v5152 = vunpack.c.l.b16 %v4823
      %v5153 = vunpack.c.h.b16 %v4823
      %v5154 = vunpack.c.l.b16 %v4824
      %v5155 = vunpack.c.h.b16 %v4824
      %v5156 = vunpack.c.l.b16 %v4825
      %v5157 = vunpack.c.h.b16 %v4825
      %v5158 = vunpack.c.l.b16 %v4826
      %v5159 = vunpack.c.h.b16 %v4826
      %v5160 = vunpack.c.l.b16 %v4827
      %v5161 = vunpack.c.h.b16 %v4827
      %v5162 = vunpack.c.l.b16 %v4828
      %v5163 = vunpack.c.h.b16 %v4828
      %v5164 = vunpack.c.l.b16 %v4829
      %v5165 = vunpack.c.h.b16 %v4829
      %v5166 = vunpack.c.l.b16 %v4830
      %v5167 = vunpack.c.h.b16 %v4830
      %v5168 = vunpack.c.l.b16 %v4831
      %v5169 = vunpack.c.h.b16 %v4831
      %v5170 = vunpack.c.l.b16 %v4832
      %v5171 = vunpack.c.h.b16 %v4832
      %v5172 = vunpack.c.l.b16 %v4833
      %v5173 = vunpack.c.h.b16 %v4833
      %v5174 = vunpack.c.l.b16 %v4834
      %v5175 = vunpack.c.h.b16 %v4834
      %v5176 = vunpack.c.l.b16 %v4835
      %v5177 = vunpack.c.h.b16 %v4835
      %v5178 = vunpack.c.l.b16 %v4836
      %v5179 = vunpack.c.h.b16 %v4836
      %v5180 = vunpack.c.l.b16 %v4837
      %v5181 = vunpack.c.h.b16 %v4837
      %v5182 = vunpack.c.l.b16 %v4838
      %v5183 = vunpack.c.h.b16 %v4838
      %v5184 = vunpack.c.l.b16 %v4839
      %v5185 = vunpack.c.h.b16 %v4839
      %v5186 = vunpack.c.l.b16 %v4840
      %v5187 = vunpack.c.h.b16 %v4840
      %v5188 = vunpack.c.l.b16 %v4841
      %v5189 = vunpack.c.h.b16 %v4841
      %v5190 = vunpack.c.l.b16 %v4842
      %v5191 = vunpack.c.h.b16 %v4842
      %v5192 = vunpack.c.l.b16 %v4843
      %v5193 = vunpack.c.h.b16 %v4843
      %v5194 = vunpack.c.l.b16 %v4844
      %v5195 = vunpack.c.h.b16 %v4844
      %v5196 = vunpack.c.l.b16 %v4845
      %v5197 = vunpack.c.h.b16 %v4845
      %v5198 = vunpack.c.l.b16 %v4846
      %v5199 = vunpack.c.h.b16 %v4846
      %v5200 = vunpack.c.l.b16 %v4847
      %v5201 = vunpack.c.h.b16 %v4847
      %v5202 = vunpack.c.l.b16 %v4848
      %v5203 = vunpack.c.h.b16 %v4848
      %v5204 = vunpack.c.l.b16 %v4849
      %v5205 = vunpack.c.h.b16 %v4849
      %v5206 = vunpack.c.l.b16 %v4850
      %v5207 = vunpack.c.h.b16 %v4850
      %v5208 = vunpack.c.l.b16 %v4851
      %v5209 = vunpack.c.h.b16 %v4851
      %v5210 = vunpack.c.l.b16 %v4852
      %v5211 = vunpack.c.h.b16 %v4852
      %v5212 = vunpack.c.l.b16 %v4853
      %v5213 = vunpack.c.h.b16 %v4853
      %v5214 = vunpack.c.l.b16 %v4854
      %v5215 = vunpack.c.h.b16 %v4854
      %v5216 = vunpack.c.l.b16 %v4855
      %v5217 = vunpack.c.h.b16 %v4855
      %v5218 = vunpack.c.l.b16 %v4856
      %v5219 = vunpack.c.h.b16 %v4856
      %v5220 = vunpack.c.l.b16 %v4857
      %v5221 = vunpack.c.h.b16 %v4857
      %v5222 = vunpack.c.l.b16 %v4858
      %v5223 = vunpack.c.h.b16 %v4858
      %v5224 = vunpack.c.l.b16 %v4859
      %v5225 = vunpack.c.h.b16 %v4859
      %v5226 = vunpack.c.l.b16 %v4860
      %v5227 = vunpack.c.h.b16 %v4860
      %v5228 = vunpack.c.l.b16 %v4861
      %v5229 = vunpack.c.h.b16 %v4861
      %v5230 = vunpack.c.l.b16 %v4862
      %v5231 = vunpack.c.h.b16 %v4862
      %v5232 = vunpack.c.l.b16 %v4863
      %v5233 = vunpack.c.h.b16 %v4863
      %v5234 = vunpack.c.l.b16 %v4864
      %v5235 = vunpack.c.h.b16 %v4864
      %v5236 = vunpack.c.l.b16 %v4865
      %v5237 = vunpack.c.h.b16 %v4865
      %v5238 = vunpack.c.l.b16 %v4866
      %v5239 = vunpack.c.h.b16 %v4866
      %v5240 = vunpack.c.l.b16 %v4867
      %v5241 = vunpack.c.h.b16 %v4867
      %v5242 = vunpack.c.l.b16 %v4868
      %v5243 = vunpack.c.h.b16 %v4868
      %v5244 = vunpack.c.l.b16 %v4869
      %v5245 = vunpack.c.h.b16 %v4869
      %v5246 = vunpack.c.l.b16 %v4870
      %v5247 = vunpack.c.h.b16 %v4870
      %v5248 = vunpack.c.l.b16 %v4871
      %v5249 = vunpack.c.h.b16 %v4871
      %v5250 = vunpack.c.l.b16 %v4872
      %v5251 = vunpack.c.h.b16 %v4872
      %v5252 = vunpack.c.l.b16 %v4873
      %v5253 = vunpack.c.h.b16 %v4873
      %v5254 = vunpack.c.l.b16 %v4874
      %v5255 = vunpack.c.h.b16 %v4874
      %v5256 = vunpack.c.l.b16 %v4875
      %v5257 = vunpack.c.h.b16 %v4875
      %v5258 = vunpack.c.l.b16 %v4876
      %v5259 = vunpack.c.h.b16 %v4876
      %v5260 = vunpack.c.l.b16 %v4877
      %v5261 = vunpack.c.h.b16 %v4877
      %v5262 = vpack.c.b16 %v5010, %v5006
      %v5263 = vpack.c.b16 %v5011, %v5007
      %v5264 = vpack.c.b16 %v5012, %v5008
      %v5265 = vpack.c.b16 %v5013, %v5009
      %v5266 = vpack.c.b16 %v5018, %v5014
      %v5267 = vpack.c.b16 %v5019, %v5015
      %v5268 = vpack.c.b16 %v5020, %v5016
      %v5269 = vpack.c.b16 %v5021, %v5017
      %v5270 = vpack.c.b16 %v5026, %v5022
      %v5271 = vpack.c.b16 %v5027, %v5023
      %v5272 = vpack.c.b16 %v5028, %v5024
      %v5273 = vpack.c.b16 %v5029, %v5025
      %v5274 = vpack.c.b16 %v5034, %v5030
      %v5275 = vpack.c.b16 %v5035, %v5031
      %v5276 = vpack.c.b16 %v5036, %v5032
      %v5277 = vpack.c.b16 %v5037, %v5033
      %v5278 = vpack.c.b16 %v5042, %v5038
      %v5279 = vpack.c.b16 %v5043, %v5039
      %v5280 = vpack.c.b16 %v5044, %v5040
      %v5281 = vpack.c.b16 %v5045, %v5041
      %v5282 = vpack.c.b16 %v5050, %v5046
      %v5283 = vpack.c.b16 %v5051, %v5047
      %v5284 = vpack.c.b16 %v5052, %v5048
      %v5285 = vpack.c.b16 %v5053, %v5049
      %v5286 = vpack.c.b16 %v5058, %v5054
      %v5287 = vpack.c.b16 %v5059, %v5055
      %v5288 = vpack.c.b16 %v5060, %v5056
      %v5289 = vpack.c.b16 %v5061, %v5057
      %v5290 = vpack.c.b16 %v5066, %v5062
      %v5291 = vpack.c.b16 %v5067, %v5063
      %v5292 = vpack.c.b16 %v5068, %v5064
      %v5293 = vpack.c.b16 %v5069, %v5065
      %v5294 = vpack.c.b16 %v5074, %v5070
      %v5295 = vpack.c.b16 %v5075, %v5071
      %v5296 = vpack.c.b16 %v5076, %v5072
      %v5297 = vpack.c.b16 %v5077, %v5073
      %v5298 = vpack.c.b16 %v5082, %v5078
      %v5299 = vpack.c.b16 %v5083, %v5079
      %v5300 = vpack.c.b16 %v5084, %v5080
      %v5301 = vpack.c.b16 %v5085, %v5081
      %v5302 = vpack.c.b16 %v5090, %v5086
      %v5303 = vpack.c.b16 %v5091, %v5087
      %v5304 = vpack.c.b16 %v5092, %v5088
      %v5305 = vpack.c.b16 %v5093, %v5089
      %v5306 = vpack.c.b16 %v5098, %v5094
      %v5307 = vpack.c.b16 %v5099, %v5095
      %v5308 = vpack.c.b16 %v5100, %v5096
      %v5309 = vpack.c.b16 %v5101, %v5097
      %v5310 = vpack.c.b16 %v5106, %v5102
      %v5311 = vpack.c.b16 %v5107, %v5103
      %v5312 = vpack.c.b16 %v5108, %v5104
      %v5313 = vpack.c.b16 %v5109, %v5105
      %v5314 = vpack.c.b16 %v5114, %v5110
      %v5315 = vpack.c.b16 %v5115, %v5111
      %v5316 = vpack.c.b16 %v5116, %v5112
      %v5317 = vpack.c.b16 %v5117, %v5113
      %v5318 = vpack.c.b16 %v5122, %v5118
      %v5319 = vpack.c.b16 %v5123, %v5119
      %v5320 = vpack.c.b16 %v5124, %v5120
      %v5321 = vpack.c.b16 %v5125, %v5121
      %v5322 = vpack.c.b16 %v5130, %v5126
      %v5323 = vpack.c.b16 %v5131, %v5127
      %v5324 = vpack.c.b16 %v5132, %v5128
      %v5325 = vpack.c.b16 %v5133, %v5129
      %v5326 = vpack.c.b16 %v5138, %v5134
      %v5327 = vpack.c.b16 %v5139, %v5135
      %v5328 = vpack.c.b16 %v5140, %v5136
      %v5329 = vpack.c.b16 %v5141, %v5137
      %v5330 = vpack.c.b16 %v5146, %v5142
      %v5331 = vpack.c.b16 %v5147, %v5143
      %v5332 = vpack.c.b16 %v5148, %v5144
      %v5333 = vpack.c.b16 %v5149, %v5145
      %v5334 = vpack.c.b16 %v5154, %v5150
      %v5335 = vpack.c.b16 %v5155, %v5151
      %v5336 = vpack.c.b16 %v5156, %v5152
      %v5337 = vpack.c.b16 %v5157, %v5153
      %v5338 = vpack.c.b16 %v5162, %v5158
      %v5339 = vpack.c.b16 %v5163, %v5159
      %v5340 = vpack.c.b16 %v5164, %v5160
      %v5341 = vpack.c.b16 %v5165, %v5161
      %v5342 = vpack.c.b16 %v5170, %v5166
      %v5343 = vpack.c.b16 %v5171, %v5167
      %v5344 = vpack.c.b16 %v5172, %v5168
      %v5345 = vpack.c.b16 %v5173, %v5169
      %v5346 = vpack.c.b16 %v5178, %v5174
      %v5347 = vpack.c.b16 %v5179, %v5175
      %v5348 = vpack.c.b16 %v5180, %v5176
      %v5349 = vpack.c.b16 %v5181, %v5177
      %v5350 = vpack.c.b16 %v5186, %v5182
      %v5351 = vpack.c.b16 %v5187, %v5183
      %v5352 = vpack.c.b16 %v5188, %v5184
      %v5353 = vpack.c.b16 %v5189, %v5185
      %v5354 = vpack.c.b16 %v5194, %v5190
      %v5355 = vpack.c.b16 %v5195, %v5191
      %v5356 = vpack.c.b16 %v5196, %v5192
      %v5357 = vpack.c.b16 %v5197, %v5193
      %v5358 = vpack.c.b16 %v5202, %v5198
      %v5359 = vpack.c.b16 %v5203, %v5199
      %v5360 = vpack.c.b16 %v5204, %v5200
      %v5361 = vpack.c.b16 %v5205, %v5201
      %v5362 = vpack.c.b16 %v5210, %v5206
      %v5363 = vpack.c.b16 %v5211, %v5207
      %v5364 = vpack.c.b16 %v5212, %v5208
      %v5365 = vpack.c.b16 %v5213, %v5209
      %v5366 = vpack.c.b16 %v5218, %v5214
      %v5367 = vpack.c.b16 %v5219, %v5215
      %v5368 = vpack.c.b16 %v5220, %v5216
      %v5369 = vpack.c.b16 %v5221, %v5217
      %v5370 = vpack.c.b16 %v5226, %v5222
      %v5371 = vpack.c.b16 %v5227, %v5223
      %v5372 = vpack.c.b16 %v5228, %v5224
      %v5373 = vpack.c.b16 %v5229, %v5225
      %v5374 = vpack.c.b16 %v5234, %v5230
      %v5375 = vpack.c.b16 %v5235, %v5231
      %v5376 = vpack.c.b16 %v5236, %v5232
      %v5377 = vpack.c.b16 %v5237, %v5233
      %v5378 = vpack.c.b16 %v5242, %v5238
      %v5379 = vpack.c.b16 %v5243, %v5239
      %v5380 = vpack.c.b16 %v5244, %v5240
      %v5381 = vpack.c.b16 %v5245, %v5241
      %v5382 = vpack.c.b16 %v5250, %v5246
      %v5383 = vpack.c.b16 %v5251, %v5247
      %v5384 = vpack.c.b16 %v5252, %v5248
      %v5385 = vpack.c.b16 %v5253, %v5249
      %v5386 = vpack.c.b16 %v5258, %v5254
      %v5387 = vpack.c.b16 %v5259, %v5255
      %v5388 = vpack.c.b16 %v5260, %v5256
      %v5389 = vpack.c.b16 %v5261, %v5257
      %5518 = vmatprep.subr.bf16.mxu0 %v5263
      %5519 = vmatpush1.bf16.msra.mxu0 %v5262
      %5520 = vmatprep.subr.bf16.mxu0 %v5267
      %5521 = vmatpush1.bf16.msra.mxu0 %v5266
      %5522 = vmatprep.subr.bf16.mxu0 %v5271
      %5523 = vmatpush1.bf16.msra.mxu0 %v5270
      %5524 = vmatprep.subr.bf16.mxu0 %v5275
      %5525 = vmatpush1.bf16.msra.mxu0 %v5274
      %5526 = vmatprep.subr.bf16.mxu0 %v5279
      %5527 = vmatpush1.bf16.msra.mxu0 %v5278
      %5528 = vmatprep.subr.bf16.mxu0 %v5283
      %5529 = vmatpush1.bf16.msra.mxu0 %v5282
      %5530 = vmatprep.subr.bf16.mxu0 %v5287
      %5531 = vmatpush1.bf16.msra.mxu0 %v5286
      %5532 = vmatprep.subr.bf16.mxu0 %v5291
      %5533 = vmatpush1.bf16.msra.mxu0 %v5290
      %5534 = vmatprep.subr.bf16.mxu0 %v5295
      %5535 = vmatpush1.bf16.msra.mxu0 %v5294
      %5536 = vmatprep.subr.bf16.mxu0 %v5299
      %5537 = vmatpush1.bf16.msra.mxu0 %v5298
      %5538 = vmatprep.subr.bf16.mxu0 %v5303
      %5539 = vmatpush1.bf16.msra.mxu0 %v5302
      %5540 = vmatprep.subr.bf16.mxu0 %v5307
      %5541 = vmatpush1.bf16.msra.mxu0 %v5306
      %5542 = vmatprep.subr.bf16.mxu0 %v5311
      %5543 = vmatpush1.bf16.msra.mxu0 %v5310
      %5544 = vmatprep.subr.bf16.mxu0 %v5315
      %5545 = vmatpush1.bf16.msra.mxu0 %v5314
      %5546 = vmatprep.subr.bf16.mxu0 %v5319
      %5547 = vmatpush1.bf16.msra.mxu0 %v5318
      %5548 = vmatprep.subr.bf16.mxu0 %v5323
      %5549 = vmatpush1.bf16.msra.mxu0 %v5322
      %5550 = vmatprep.mubr.bf16.mxu0 %v4719
      %5551 = vmatmul.mubr.bf16.gmra.mrb[0].mxu0 %v4718
      %v5552 = vpop.f32.mrb[0].mxu0
      %v5553 = vadd.f32 0.0, %v5552
      %v5554 = vpop.f32.mrb[0].mxu0
      %v5555 = vadd.f32 0.0, %v5554
      %v5556 = vpop.f32.mrb[0].mxu0
      %v5557 = vadd.f32 0.0, %v5556
      %v5558 = vpop.f32.mrb[0].mxu0
      %v5559 = vadd.f32 0.0, %v5558
      %5560 = vmatprep.mubr.bf16.mxu0 %v4723
      %5561 = vmatmul.mubr.bf16.gmra.mrb[0].mxu0 %v4722
      %v5562 = vpop.f32.mrb[0].mxu0
      %v5563 = vadd.f32 0.0, %v5562
      %v5564 = vpop.f32.mrb[0].mxu0
      %v5565 = vadd.f32 0.0, %v5564
      %v5566 = vpop.f32.mrb[0].mxu0
      %v5567 = vadd.f32 0.0, %v5566
      %v5568 = vpop.f32.mrb[0].mxu0
      %v5569 = vadd.f32 0.0, %v5568
      %5570 = vmatprep.mubr.bf16.mxu0 %v4727
      %5571 = vmatmul.mubr.bf16.gmra.mrb[0].mxu0 %v4726
      %v5572 = vpop.f32.mrb[0].mxu0
      %v5573 = vadd.f32 0.0, %v5572
      %v5574 = vpop.f32.mrb[0].mxu0
      %v5575 = vadd.f32 0.0, %v5574
      %v5576 = vpop.f32.mrb[0].mxu0
      %v5577 = vadd.f32 0.0, %v5576
      %v5578 = vpop.f32.mrb[0].mxu0
      %v5579 = vadd.f32 0.0, %v5578
      %5580 = vmatprep.mubr.bf16.mxu0 %v4731
      %5581 = vmatmul.mubr.bf16.gmra.mrb[0].mxu0 %v4730
      %v5582 = vpop.f32.mrb[0].mxu0
      %v5583 = vadd.f32 0.0, %v5582
      %v5584 = vpop.f32.mrb[0].mxu0
      %v5585 = vadd.f32 0.0, %v5584
      %v5586 = vpop.f32.mrb[0].mxu0
      %v5587 = vadd.f32 0.0, %v5586
      %v5588 = vpop.f32.mrb[0].mxu0
      %v5589 = vadd.f32 0.0, %v5588
      %5590 = vmatprep.mubr.bf16.mxu0 %v4735
      %5591 = vmatmul.mubr.bf16.gmra.mrb[0].mxu0 %v4734
      %v5592 = vpop.f32.mrb[0].mxu0
      %v5593 = vadd.f32 0.0, %v5592
      %v5594 = vpop.f32.mrb[0].mxu0
      %v5595 = vadd.f32 0.0, %v5594
      %v5596 = vpop.f32.mrb[0].mxu0
      %v5597 = vadd.f32 0.0, %v5596
      %v5598 = vpop.f32.mrb[0].mxu0
      %v5599 = vadd.f32 0.0, %v5598
      %5600 = vmatprep.mubr.bf16.mxu0 %v4739
      %5601 = vmatmul.mubr.bf16.gmra.mrb[0].mxu0 %v4738
      %v5602 = vpop.f32.mrb[0].mxu0
      %v5603 = vadd.f32 0.0, %v5602
      %v5604 = vpop.f32.mrb[0].mxu0
      %v5605 = vadd.f32 0.0, %v5604
      %v5606 = vpop.f32.mrb[0].mxu0
      %v5607 = vadd.f32 0.0, %v5606
      %v5608 = vpop.f32.mrb[0].mxu0
      %v5609 = vadd.f32 0.0, %v5608
      %5610 = vmatprep.mubr.bf16.mxu0 %v4743
      %5611 = vmatmul.mubr.bf16.gmra.mrb[0].mxu0 %v4742
      %v5612 = vpop.f32.mrb[0].mxu0
      %v5613 = vadd.f32 0.0, %v5612
      %v5614 = vpop.f32.mrb[0].mxu0
      %v5615 = vadd.f32 0.0, %v5614
      %v5616 = vpop.f32.mrb[0].mxu0
      %v5617 = vadd.f32 0.0, %v5616
      %v5618 = vpop.f32.mrb[0].mxu0
      %v5619 = vadd.f32 0.0, %v5618
      %5620 = vmatprep.mubr.bf16.mxu0 %v4747
      %5621 = vmatmul.mubr.bf16.gmra.mrb[0].mxu0 %v4746
      %v5622 = vpop.f32.mrb[0].mxu0
      %v5623 = vadd.f32 0.0, %v5622
      %v5624 = vpop.f32.mrb[0].mxu0
      %v5625 = vadd.f32 0.0, %v5624
      %v5626 = vpop.f32.mrb[0].mxu0
      %v5627 = vadd.f32 0.0, %v5626
      %v5628 = vpop.f32.mrb[0].mxu0
      %v5629 = vadd.f32 0.0, %v5628
      %5630 = vdwg.mxu0
      %5631 = vmatprep.subr.bf16.mxu0 %v5327
      %5632 = vmatpush1.bf16.msra.mxu0 %v5326
      %5633 = vmatprep.subr.bf16.mxu0 %v5331
      %5634 = vmatpush1.bf16.msra.mxu0 %v5330
      %5635 = vmatprep.subr.bf16.mxu0 %v5335
      %5636 = vmatpush1.bf16.msra.mxu0 %v5334
      %5637 = vmatprep.subr.bf16.mxu0 %v5339
      %5638 = vmatpush1.bf16.msra.mxu0 %v5338
      %5639 = vmatprep.subr.bf16.mxu0 %v5343
      %5640 = vmatpush1.bf16.msra.mxu0 %v5342
      %5641 = vmatprep.subr.bf16.mxu0 %v5347
      %5642 = vmatpush1.bf16.msra.mxu0 %v5346
      %5643 = vmatprep.subr.bf16.mxu0 %v5351
      %5644 = vmatpush1.bf16.msra.mxu0 %v5350
      %5645 = vmatprep.subr.bf16.mxu0 %v5355
      %5646 = vmatpush1.bf16.msra.mxu0 %v5354
      %5647 = vmatprep.subr.bf16.mxu0 %v5359
      %5648 = vmatpush1.bf16.msra.mxu0 %v5358
      %5649 = vmatprep.subr.bf16.mxu0 %v5363
      %5650 = vmatpush1.bf16.msra.mxu0 %v5362
      %5651 = vmatprep.subr.bf16.mxu0 %v5367
      %5652 = vmatpush1.bf16.msra.mxu0 %v5366
      %5653 = vmatprep.subr.bf16.mxu0 %v5371
      %5654 = vmatpush1.bf16.msra.mxu0 %v5370
      %5655 = vmatprep.subr.bf16.mxu0 %v5375
      %5656 = vmatpush1.bf16.msra.mxu0 %v5374
      %5657 = vmatprep.subr.bf16.mxu0 %v5379
      %5658 = vmatpush1.bf16.msra.mxu0 %v5378
      %5659 = vmatprep.subr.bf16.mxu0 %v5383
      %5660 = vmatpush1.bf16.msra.mxu0 %v5382
      %5661 = vmatprep.subr.bf16.mxu0 %v5387
      %5662 = vmatpush1.bf16.msra.mxu0 %v5386
      %5663 = vmatprep.mubr.bf16.mxu0 %v4721
      %5664 = vmatmul.mubr.bf16.gmra.mrb[0].mxu0 %v4720
      %v5665 = vpop.f32.mrb[0].mxu0
      %v5666 = vadd.f32 %v5553, %v5665
      %v5667 = vpop.f32.mrb[0].mxu0
      %v5668 = vadd.f32 %v5555, %v5667
      %v5669 = vpop.f32.mrb[0].mxu0
      %v5670 = vadd.f32 %v5557, %v5669
      %v5671 = vpop.f32.mrb[0].mxu0
      %v5672 = vadd.f32 %v5559, %v5671
      %5673 = vmatprep.mubr.bf16.mxu0 %v4725
      %5674 = vmatmul.mubr.bf16.gmra.mrb[0].mxu0 %v4724
      %v5675 = vpop.f32.mrb[0].mxu0
      %v5676 = vadd.f32 %v5563, %v5675
      %v5677 = vpop.f32.mrb[0].mxu0
      %v5678 = vadd.f32 %v5565, %v5677
      %v5679 = vpop.f32.mrb[0].mxu0
      %v5680 = vadd.f32 %v5567, %v5679
      %v5681 = vpop.f32.mrb[0].mxu0
      %v5682 = vadd.f32 %v5569, %v5681
      %5683 = vmatprep.mubr.bf16.mxu0 %v4729
      %5684 = vmatmul.mubr.bf16.gmra.mrb[0].mxu0 %v4728
      %v5685 = vpop.f32.mrb[0].mxu0
      %v5686 = vadd.f32 %v5573, %v5685
      %v5687 = vpop.f32.mrb[0].mxu0
      %v5688 = vadd.f32 %v5575, %v5687
      %v5689 = vpop.f32.mrb[0].mxu0
      %v5690 = vadd.f32 %v5577, %v5689
      %v5691 = vpop.f32.mrb[0].mxu0
      %v5692 = vadd.f32 %v5579, %v5691
      %5693 = vmatprep.mubr.bf16.mxu0 %v4733
      %5694 = vmatmul.mubr.bf16.gmra.mrb[0].mxu0 %v4732
      %v5695 = vpop.f32.mrb[0].mxu0
      %v5696 = vadd.f32 %v5583, %v5695
      %v5697 = vpop.f32.mrb[0].mxu0
      %v5698 = vadd.f32 %v5585, %v5697
      %v5699 = vpop.f32.mrb[0].mxu0
      %v5700 = vadd.f32 %v5587, %v5699
      %v5701 = vpop.f32.mrb[0].mxu0
      %v5702 = vadd.f32 %v5589, %v5701
      %5703 = vmatprep.mubr.bf16.mxu0 %v4737
      %5704 = vmatmul.mubr.bf16.gmra.mrb[0].mxu0 %v4736
      %v5705 = vpop.f32.mrb[0].mxu0
      %v5706 = vadd.f32 %v5593, %v5705
      %v5707 = vpop.f32.mrb[0].mxu0
      %v5708 = vadd.f32 %v5595, %v5707
      %v5709 = vpop.f32.mrb[0].mxu0
      %v5710 = vadd.f32 %v5597, %v5709
      %v5711 = vpop.f32.mrb[0].mxu0
      %v5712 = vadd.f32 %v5599, %v5711
      %5713 = vmatprep.mubr.bf16.mxu0 %v4741
      %5714 = vmatmul.mubr.bf16.gmra.mrb[0].mxu0 %v4740
      %v5715 = vpop.f32.mrb[0].mxu0
      %v5716 = vadd.f32 %v5603, %v5715
      %v5717 = vpop.f32.mrb[0].mxu0
      %v5718 = vadd.f32 %v5605, %v5717
      %v5719 = vpop.f32.mrb[0].mxu0
      %v5720 = vadd.f32 %v5607, %v5719
      %v5721 = vpop.f32.mrb[0].mxu0
      %v5722 = vadd.f32 %v5609, %v5721
      %5723 = vmatprep.mubr.bf16.mxu0 %v4745
      %5724 = vmatmul.mubr.bf16.gmra.mrb[0].mxu0 %v4744
      %v5725 = vpop.f32.mrb[0].mxu0
      %v5726 = vadd.f32 %v5613, %v5725
      %v5727 = vpop.f32.mrb[0].mxu0
      %v5728 = vadd.f32 %v5615, %v5727
      %v5729 = vpop.f32.mrb[0].mxu0
      %v5730 = vadd.f32 %v5617, %v5729
      %v5731 = vpop.f32.mrb[0].mxu0
      %v5732 = vadd.f32 %v5619, %v5731
      %5733 = vmatprep.mubr.bf16.mxu0 %v4749
      %5734 = vmatmul.mubr.bf16.gmra.mrb[0].mxu0 %v4748
      %v5735 = vpop.f32.mrb[0].mxu0
      %v5736 = vadd.f32 %v5623, %v5735
      %v5737 = vpop.f32.mrb[0].mxu0
      %v5738 = vadd.f32 %v5625, %v5737
      %v5739 = vpop.f32.mrb[0].mxu0
      %v5740 = vadd.f32 %v5627, %v5739
      %v5741 = vpop.f32.mrb[0].mxu0
      %v5742 = vadd.f32 %v5629, %v5741
      %5743 = vdwg.mxu0
      %5744 = vmatprep.subr.bf16.mxu0 %v5265
      %5745 = vmatpush1.bf16.msra.mxu0 %v5264
      %5746 = vmatprep.subr.bf16.mxu0 %v5269
      %5747 = vmatpush1.bf16.msra.mxu0 %v5268
      %5748 = vmatprep.subr.bf16.mxu0 %v5273
      %5749 = vmatpush1.bf16.msra.mxu0 %v5272
      %5750 = vmatprep.subr.bf16.mxu0 %v5277
      %5751 = vmatpush1.bf16.msra.mxu0 %v5276
      %5752 = vmatprep.subr.bf16.mxu0 %v5281
      %5753 = vmatpush1.bf16.msra.mxu0 %v5280
      %5754 = vmatprep.subr.bf16.mxu0 %v5285
      %5755 = vmatpush1.bf16.msra.mxu0 %v5284
      %5756 = vmatprep.subr.bf16.mxu0 %v5289
      %5757 = vmatpush1.bf16.msra.mxu0 %v5288
      %5758 = vmatprep.subr.bf16.mxu0 %v5293
      %5759 = vmatpush1.bf16.msra.mxu0 %v5292
      %5760 = vmatprep.subr.bf16.mxu0 %v5297
      %5761 = vmatpush1.bf16.msra.mxu0 %v5296
      %5762 = vmatprep.subr.bf16.mxu0 %v5301
      %5763 = vmatpush1.bf16.msra.mxu0 %v5300
      %5764 = vmatprep.subr.bf16.mxu0 %v5305
      %5765 = vmatpush1.bf16.msra.mxu0 %v5304
      %5766 = vmatprep.subr.bf16.mxu0 %v5309
      %5767 = vmatpush1.bf16.msra.mxu0 %v5308
      %5768 = vmatprep.subr.bf16.mxu0 %v5313
      %5769 = vmatpush1.bf16.msra.mxu0 %v5312
      %5770 = vmatprep.subr.bf16.mxu0 %v5317
      %5771 = vmatpush1.bf16.msra.mxu0 %v5316
      %5772 = vmatprep.subr.bf16.mxu0 %v5321
      %5773 = vmatpush1.bf16.msra.mxu0 %v5320
      %5774 = vmatprep.subr.bf16.mxu0 %v5325
      %5775 = vmatpush1.bf16.msra.mxu0 %v5324
      %5776 = vmatprep.mubr.bf16.mxu0 %v4719
      %5777 = vmatmul.mubr.bf16.gmra.mrb[0].mxu0 %v4718
      %v5778 = vpop.f32.mrb[0].mxu0
      %v5779 = vadd.f32 0.0, %v5778
      %v5780 = vpop.f32.mrb[0].mxu0
      %v5781 = vadd.f32 0.0, %v5780
      %v5782 = vpop.f32.mrb[0].mxu0
      %v5783 = vadd.f32 0.0, %v5782
      %v5784 = vpop.f32.mrb[0].mxu0
      %v5785 = vadd.f32 0.0, %v5784
      %5786 = vmatprep.mubr.bf16.mxu0 %v4723
      %5787 = vmatmul.mubr.bf16.gmra.mrb[0].mxu0 %v4722
      %v5788 = vpop.f32.mrb[0].mxu0
      %v5789 = vadd.f32 0.0, %v5788
      %v5790 = vpop.f32.mrb[0].mxu0
      %v5791 = vadd.f32 0.0, %v5790
      %v5792 = vpop.f32.mrb[0].mxu0
      %v5793 = vadd.f32 0.0, %v5792
      %v5794 = vpop.f32.mrb[0].mxu0
      %v5795 = vadd.f32 0.0, %v5794
      %5796 = vmatprep.mubr.bf16.mxu0 %v4727
      %5797 = vmatmul.mubr.bf16.gmra.mrb[0].mxu0 %v4726
      %v5798 = vpop.f32.mrb[0].mxu0
      %v5799 = vadd.f32 0.0, %v5798
      %v5800 = vpop.f32.mrb[0].mxu0
      %v5801 = vadd.f32 0.0, %v5800
      %v5802 = vpop.f32.mrb[0].mxu0
      %v5803 = vadd.f32 0.0, %v5802
      %v5804 = vpop.f32.mrb[0].mxu0
      %v5805 = vadd.f32 0.0, %v5804
      %5806 = vmatprep.mubr.bf16.mxu0 %v4731
      %5807 = vmatmul.mubr.bf16.gmra.mrb[0].mxu0 %v4730
      %v5808 = vpop.f32.mrb[0].mxu0
      %v5809 = vadd.f32 0.0, %v5808
      %v5810 = vpop.f32.mrb[0].mxu0
      %v5811 = vadd.f32 0.0, %v5810
      %v5812 = vpop.f32.mrb[0].mxu0
      %v5813 = vadd.f32 0.0, %v5812
      %v5814 = vpop.f32.mrb[0].mxu0
      %v5815 = vadd.f32 0.0, %v5814
      %5816 = vmatprep.mubr.bf16.mxu0 %v4735
      %5817 = vmatmul.mubr.bf16.gmra.mrb[0].mxu0 %v4734
      %v5818 = vpop.f32.mrb[0].mxu0
      %v5819 = vadd.f32 0.0, %v5818
      %v5820 = vpop.f32.mrb[0].mxu0
      %v5821 = vadd.f32 0.0, %v5820
      %v5822 = vpop.f32.mrb[0].mxu0
      %v5823 = vadd.f32 0.0, %v5822
      %v5824 = vpop.f32.mrb[0].mxu0
      %v5825 = vadd.f32 0.0, %v5824
      %5826 = vmatprep.mubr.bf16.mxu0 %v4739
      %5827 = vmatmul.mubr.bf16.gmra.mrb[0].mxu0 %v4738
      %v5828 = vpop.f32.mrb[0].mxu0
      %v5829 = vadd.f32 0.0, %v5828
      %v5830 = vpop.f32.mrb[0].mxu0
      %v5831 = vadd.f32 0.0, %v5830
      %v5832 = vpop.f32.mrb[0].mxu0
      %v5833 = vadd.f32 0.0, %v5832
      %v5834 = vpop.f32.mrb[0].mxu0
      %v5835 = vadd.f32 0.0, %v5834
      %5836 = vmatprep.mubr.bf16.mxu0 %v4743
      %5837 = vmatmul.mubr.bf16.gmra.mrb[0].mxu0 %v4742
      %v5838 = vpop.f32.mrb[0].mxu0
      %v5839 = vadd.f32 0.0, %v5838
      %v5840 = vpop.f32.mrb[0].mxu0
      %v5841 = vadd.f32 0.0, %v5840
      %v5842 = vpop.f32.mrb[0].mxu0
      %v5843 = vadd.f32 0.0, %v5842
      %v5844 = vpop.f32.mrb[0].mxu0
      %v5845 = vadd.f32 0.0, %v5844
      %5846 = vmatprep.mubr.bf16.mxu0 %v4747
      %5847 = vmatmul.mubr.bf16.gmra.mrb[0].mxu0 %v4746
      %v5848 = vpop.f32.mrb[0].mxu0
      %v5849 = vadd.f32 0.0, %v5848
      %v5850 = vpop.f32.mrb[0].mxu0
      %v5851 = vadd.f32 0.0, %v5850
      %v5852 = vpop.f32.mrb[0].mxu0
      %v5853 = vadd.f32 0.0, %v5852
      %v5854 = vpop.f32.mrb[0].mxu0
      %v5855 = vadd.f32 0.0, %v5854
      %5856 = vdwg.mxu0
      %5857 = vmatprep.subr.bf16.mxu0 %v5329
      %5858 = vmatpush1.bf16.msra.mxu0 %v5328
      %5859 = vmatprep.subr.bf16.mxu0 %v5333
      %5860 = vmatpush1.bf16.msra.mxu0 %v5332
      %5861 = vmatprep.subr.bf16.mxu0 %v5337
      %5862 = vmatpush1.bf16.msra.mxu0 %v5336
      %5863 = vmatprep.subr.bf16.mxu0 %v5341
      %5864 = vmatpush1.bf16.msra.mxu0 %v5340
      %5865 = vmatprep.subr.bf16.mxu0 %v5345
      %5866 = vmatpush1.bf16.msra.mxu0 %v5344
      %5867 = vmatprep.subr.bf16.mxu0 %v5349
      %5868 = vmatpush1.bf16.msra.mxu0 %v5348
      %5869 = vmatprep.subr.bf16.mxu0 %v5353
      %5870 = vmatpush1.bf16.msra.mxu0 %v5352
      %5871 = vmatprep.subr.bf16.mxu0 %v5357
      %5872 = vmatpush1.bf16.msra.mxu0 %v5356
      %5873 = vmatprep.subr.bf16.mxu0 %v5361
      %5874 = vmatpush1.bf16.msra.mxu0 %v5360
      %5875 = vmatprep.subr.bf16.mxu0 %v5365
      %5876 = vmatpush1.bf16.msra.mxu0 %v5364
      %5877 = vmatprep.subr.bf16.mxu0 %v5369
      %5878 = vmatpush1.bf16.msra.mxu0 %v5368
      %5879 = vmatprep.subr.bf16.mxu0 %v5373
      %5880 = vmatpush1.bf16.msra.mxu0 %v5372
      %5881 = vmatprep.subr.bf16.mxu0 %v5377
      %5882 = vmatpush1.bf16.msra.mxu0 %v5376
      %5883 = vmatprep.subr.bf16.mxu0 %v5381
      %5884 = vmatpush1.bf16.msra.mxu0 %v5380
      %5885 = vmatprep.subr.bf16.mxu0 %v5385
      %5886 = vmatpush1.bf16.msra.mxu0 %v5384
      %5887 = vmatprep.subr.bf16.mxu0 %v5389
      %5888 = vmatpush1.bf16.msra.mxu0 %v5388
      %5889 = vmatprep.mubr.bf16.mxu0 %v4721
      %5890 = vmatmul.mubr.bf16.gmra.mrb[0].mxu0 %v4720
      %v5891 = vpop.f32.mrb[0].mxu0
      %v5892 = vadd.f32 %v5779, %v5891
      %v5893 = vpop.f32.mrb[0].mxu0
      %v5894 = vadd.f32 %v5781, %v5893
      %v5895 = vpop.f32.mrb[0].mxu0
      %v5896 = vadd.f32 %v5783, %v5895
      %v5897 = vpop.f32.mrb[0].mxu0
      %v5898 = vadd.f32 %v5785, %v5897
      %5899 = vmatprep.mubr.bf16.mxu0 %v4725
      %5900 = vmatmul.mubr.bf16.gmra.mrb[0].mxu0 %v4724
      %v5901 = vpop.f32.mrb[0].mxu0
      %v5902 = vadd.f32 %v5789, %v5901
      %v5903 = vpop.f32.mrb[0].mxu0
      %v5904 = vadd.f32 %v5791, %v5903
      %v5905 = vpop.f32.mrb[0].mxu0
      %v5906 = vadd.f32 %v5793, %v5905
      %v5907 = vpop.f32.mrb[0].mxu0
      %v5908 = vadd.f32 %v5795, %v5907
      %5909 = vmatprep.mubr.bf16.mxu0 %v4729
      %5910 = vmatmul.mubr.bf16.gmra.mrb[0].mxu0 %v4728
      %v5911 = vpop.f32.mrb[0].mxu0
      %v5912 = vadd.f32 %v5799, %v5911
      %v5913 = vpop.f32.mrb[0].mxu0
      %v5914 = vadd.f32 %v5801, %v5913
      %v5915 = vpop.f32.mrb[0].mxu0
      %v5916 = vadd.f32 %v5803, %v5915
      %v5917 = vpop.f32.mrb[0].mxu0
      %v5918 = vadd.f32 %v5805, %v5917
      %5919 = vmatprep.mubr.bf16.mxu0 %v4733
      %5920 = vmatmul.mubr.bf16.gmra.mrb[0].mxu0 %v4732
      %v5921 = vpop.f32.mrb[0].mxu0
      %v5922 = vadd.f32 %v5809, %v5921
      %v5923 = vpop.f32.mrb[0].mxu0
      %v5924 = vadd.f32 %v5811, %v5923
      %v5925 = vpop.f32.mrb[0].mxu0
      %v5926 = vadd.f32 %v5813, %v5925
      %v5927 = vpop.f32.mrb[0].mxu0
      %v5928 = vadd.f32 %v5815, %v5927
      %5929 = vmatprep.mubr.bf16.mxu0 %v4737
      %5930 = vmatmul.mubr.bf16.gmra.mrb[0].mxu0 %v4736
      %v5931 = vpop.f32.mrb[0].mxu0
      %v5932 = vadd.f32 %v5819, %v5931
      %v5933 = vpop.f32.mrb[0].mxu0
      %v5934 = vadd.f32 %v5821, %v5933
      %v5935 = vpop.f32.mrb[0].mxu0
      %v5936 = vadd.f32 %v5823, %v5935
      %v5937 = vpop.f32.mrb[0].mxu0
      %v5938 = vadd.f32 %v5825, %v5937
      %5939 = vmatprep.mubr.bf16.mxu0 %v4741
      %5940 = vmatmul.mubr.bf16.gmra.mrb[0].mxu0 %v4740
      %v5941 = vpop.f32.mrb[0].mxu0
      %v5942 = vadd.f32 %v5829, %v5941
      %v5943 = vpop.f32.mrb[0].mxu0
      %v5944 = vadd.f32 %v5831, %v5943
      %v5945 = vpop.f32.mrb[0].mxu0
      %v5946 = vadd.f32 %v5833, %v5945
      %v5947 = vpop.f32.mrb[0].mxu0
      %v5948 = vadd.f32 %v5835, %v5947
      %5949 = vmatprep.mubr.bf16.mxu0 %v4745
      %5950 = vmatmul.mubr.bf16.gmra.mrb[0].mxu0 %v4744
      %v5951 = vpop.f32.mrb[0].mxu0
      %v5952 = vadd.f32 %v5839, %v5951
      %v5953 = vpop.f32.mrb[0].mxu0
      %v5954 = vadd.f32 %v5841, %v5953
      %v5955 = vpop.f32.mrb[0].mxu0
      %v5956 = vadd.f32 %v5843, %v5955
      %v5957 = vpop.f32.mrb[0].mxu0
      %v5958 = vadd.f32 %v5845, %v5957
      %5959 = vmatprep.mubr.bf16.mxu0 %v4749
      %5960 = vmatmul.mubr.bf16.gmra.mrb[0].mxu0 %v4748
      %v5961 = vpop.f32.mrb[0].mxu0
      %v5962 = vadd.f32 %v5849, %v5961
      %v5963 = vpop.f32.mrb[0].mxu0
      %v5964 = vadd.f32 %v5851, %v5963
      %v5965 = vpop.f32.mrb[0].mxu0
      %v5966 = vadd.f32 %v5853, %v5965
      %v5967 = vpop.f32.mrb[0].mxu0
      %v5968 = vadd.f32 %v5855, %v5967
      %5969 = vdwg.mxu0
      %v5970 = vlaneseq
      %v5971 = vshrl.u32 %v5970, 7
      %v5972 = vsub.s32 4, %v5971
      %v5973 = vrot.slane %v286, %v5972
      %v5974 = vlaneseq
      %v5975 = vshrl.u32 %v5974, 7
      %v5976 = vsub.s32 4, %v5975
      %v5977 = vrot.slane %v287, %v5976
      %v5978 = vlaneseq
      %v5979 = vshrl.u32 %v5978, 7
      %v5980 = vsub.s32 4, %v5979
      %v5981 = vrot.slane %v288, %v5980
      %v5982 = vlaneseq
      %v5983 = vshrl.u32 %v5982, 7
      %v5984 = vsub.s32 4, %v5983
      %v5985 = vrot.slane %v289, %v5984
      %v5986 = vmul.f32 %v5666, %v5973
      %v5987 = vmul.f32 %v5668, %v5977
      %v5988 = vmul.f32 %v5892, %v5981
      %v5989 = vmul.f32 %v5894, %v5985
      %v5990 = vmul.f32 %v5670, %v5973
      %v5991 = vmul.f32 %v5672, %v5977
      %v5992 = vmul.f32 %v5896, %v5981
      %v5993 = vmul.f32 %v5898, %v5985
      %v5994 = vmul.f32 %v5676, %v5973
      %v5995 = vmul.f32 %v5678, %v5977
      %v5996 = vmul.f32 %v5902, %v5981
      %v5997 = vmul.f32 %v5904, %v5985
      %v5998 = vmul.f32 %v5680, %v5973
      %v5999 = vmul.f32 %v5682, %v5977
      %v6000 = vmul.f32 %v5906, %v5981
      %v6001 = vmul.f32 %v5908, %v5985
      %v6002 = vmul.f32 %v5686, %v5973
      %v6003 = vmul.f32 %v5688, %v5977
      %v6004 = vmul.f32 %v5912, %v5981
      %v6005 = vmul.f32 %v5914, %v5985
      %v6006 = vmul.f32 %v5690, %v5973
      %v6007 = vmul.f32 %v5692, %v5977
      %v6008 = vmul.f32 %v5916, %v5981
      %v6009 = vmul.f32 %v5918, %v5985
      %v6010 = vmul.f32 %v5696, %v5973
      %v6011 = vmul.f32 %v5698, %v5977
      %v6012 = vmul.f32 %v5922, %v5981
      %v6013 = vmul.f32 %v5924, %v5985
      %v6014 = vmul.f32 %v5700, %v5973
      %v6015 = vmul.f32 %v5702, %v5977
      %v6016 = vmul.f32 %v5926, %v5981
      %v6017 = vmul.f32 %v5928, %v5985
      %v6018 = vmul.f32 %v5706, %v5973
      %v6019 = vmul.f32 %v5708, %v5977
      %v6020 = vmul.f32 %v5932, %v5981
      %v6021 = vmul.f32 %v5934, %v5985
      %v6022 = vmul.f32 %v5710, %v5973
      %v6023 = vmul.f32 %v5712, %v5977
      %v6024 = vmul.f32 %v5936, %v5981
      %v6025 = vmul.f32 %v5938, %v5985
      %v6026 = vmul.f32 %v5716, %v5973
      %v6027 = vmul.f32 %v5718, %v5977
      %v6028 = vmul.f32 %v5942, %v5981
      %v6029 = vmul.f32 %v5944, %v5985
      %v6030 = vmul.f32 %v5720, %v5973
      %v6031 = vmul.f32 %v5722, %v5977
      %v6032 = vmul.f32 %v5946, %v5981
      %v6033 = vmul.f32 %v5948, %v5985
      %v6034 = vmul.f32 %v5726, %v5973
      %v6035 = vmul.f32 %v5728, %v5977
      %v6036 = vmul.f32 %v5952, %v5981
      %v6037 = vmul.f32 %v5954, %v5985
      %v6038 = vmul.f32 %v5730, %v5973
      %v6039 = vmul.f32 %v5732, %v5977
      %v6040 = vmul.f32 %v5956, %v5981
      %v6041 = vmul.f32 %v5958, %v5985
      %v6042 = vmul.f32 %v5736, %v5973
      %v6043 = vmul.f32 %v5738, %v5977
      %v6044 = vmul.f32 %v5962, %v5981
      %v6045 = vmul.f32 %v5964, %v5985
      %v6046 = vmul.f32 %v5740, %v5973
      %v6047 = vmul.f32 %v5742, %v5977
      %v6048 = vmul.f32 %v5966, %v5981
      %v6049 = vmul.f32 %v5968, %v5985
      %v6050 = vlaneseq
      %v6051 = vshrl.u32 %v6050, 7
      %v6052 = vsub.s32 5, %v6051
      %v6053 = vrot.slane %v286, %v6052
      %v6054 = vlaneseq
      %v6055 = vshrl.u32 %v6054, 7
      %v6056 = vsub.s32 5, %v6055
      %v6057 = vrot.slane %v287, %v6056
      %v6058 = vlaneseq
      %v6059 = vshrl.u32 %v6058, 7
      %v6060 = vsub.s32 5, %v6059
      %v6061 = vrot.slane %v288, %v6060
      %v6062 = vlaneseq
      %v6063 = vshrl.u32 %v6062, 7
      %v6064 = vsub.s32 5, %v6063
      %v6065 = vrot.slane %v289, %v6064
      %v6066 = vadd.f32 %v5986, %v6053
      %v6067 = vadd.f32 %v5987, %v6057
      %v6068 = vadd.f32 %v5988, %v6061
      %v6069 = vadd.f32 %v5989, %v6065
      %v6070 = vadd.f32 %v5990, %v6053
      %v6071 = vadd.f32 %v5991, %v6057
      %v6072 = vadd.f32 %v5992, %v6061
      %v6073 = vadd.f32 %v5993, %v6065
      %v6074 = vadd.f32 %v5994, %v6053
      %v6075 = vadd.f32 %v5995, %v6057
      %v6076 = vadd.f32 %v5996, %v6061
      %v6077 = vadd.f32 %v5997, %v6065
      %v6078 = vadd.f32 %v5998, %v6053
      %v6079 = vadd.f32 %v5999, %v6057
      %v6080 = vadd.f32 %v6000, %v6061
      %v6081 = vadd.f32 %v6001, %v6065
      %v6082 = vadd.f32 %v6002, %v6053
      %v6083 = vadd.f32 %v6003, %v6057
      %v6084 = vadd.f32 %v6004, %v6061
      %v6085 = vadd.f32 %v6005, %v6065
      %v6086 = vadd.f32 %v6006, %v6053
      %v6087 = vadd.f32 %v6007, %v6057
      %v6088 = vadd.f32 %v6008, %v6061
      %v6089 = vadd.f32 %v6009, %v6065
      %v6090 = vadd.f32 %v6010, %v6053
      %v6091 = vadd.f32 %v6011, %v6057
      %v6092 = vadd.f32 %v6012, %v6061
      %v6093 = vadd.f32 %v6013, %v6065
      %v6094 = vadd.f32 %v6014, %v6053
      %v6095 = vadd.f32 %v6015, %v6057
      %v6096 = vadd.f32 %v6016, %v6061
      %v6097 = vadd.f32 %v6017, %v6065
      %v6098 = vadd.f32 %v6018, %v6053
      %v6099 = vadd.f32 %v6019, %v6057
      %v6100 = vadd.f32 %v6020, %v6061
      %v6101 = vadd.f32 %v6021, %v6065
      %v6102 = vadd.f32 %v6022, %v6053
      %v6103 = vadd.f32 %v6023, %v6057
      %v6104 = vadd.f32 %v6024, %v6061
      %v6105 = vadd.f32 %v6025, %v6065
      %v6106 = vadd.f32 %v6026, %v6053
      %v6107 = vadd.f32 %v6027, %v6057
      %v6108 = vadd.f32 %v6028, %v6061
      %v6109 = vadd.f32 %v6029, %v6065
      %v6110 = vadd.f32 %v6030, %v6053
      %v6111 = vadd.f32 %v6031, %v6057
      %v6112 = vadd.f32 %v6032, %v6061
      %v6113 = vadd.f32 %v6033, %v6065
      %v6114 = vadd.f32 %v6034, %v6053
      %v6115 = vadd.f32 %v6035, %v6057
      %v6116 = vadd.f32 %v6036, %v6061
      %v6117 = vadd.f32 %v6037, %v6065
      %v6118 = vadd.f32 %v6038, %v6053
      %v6119 = vadd.f32 %v6039, %v6057
      %v6120 = vadd.f32 %v6040, %v6061
      %v6121 = vadd.f32 %v6041, %v6065
      %v6122 = vadd.f32 %v6042, %v6053
      %v6123 = vadd.f32 %v6043, %v6057
      %v6124 = vadd.f32 %v6044, %v6061
      %v6125 = vadd.f32 %v6045, %v6065
      %v6126 = vadd.f32 %v6046, %v6053
      %v6127 = vadd.f32 %v6047, %v6057
      %v6128 = vadd.f32 %v6048, %v6061
      %v6129 = vadd.f32 %v6049, %v6065
      %vm6130 = vcmp.ge.f32.partialorder %v6066, 0.0
      %vm6131 = vcmp.ge.f32.partialorder %v6067, 0.0
      %vm6132 = vcmp.ge.f32.partialorder %v6068, 0.0
      %vm6133 = vcmp.ge.f32.partialorder %v6069, 0.0
      %vm6134 = vcmp.ge.f32.partialorder %v6070, 0.0
      %vm6135 = vcmp.ge.f32.partialorder %v6071, 0.0
      %vm6136 = vcmp.ge.f32.partialorder %v6072, 0.0
      %vm6137 = vcmp.ge.f32.partialorder %v6073, 0.0
      %vm6138 = vcmp.ge.f32.partialorder %v6074, 0.0
      %vm6139 = vcmp.ge.f32.partialorder %v6075, 0.0
      %vm6140 = vcmp.ge.f32.partialorder %v6076, 0.0
      %vm6141 = vcmp.ge.f32.partialorder %v6077, 0.0
      %vm6142 = vcmp.ge.f32.partialorder %v6078, 0.0
      %vm6143 = vcmp.ge.f32.partialorder %v6079, 0.0
      %vm6144 = vcmp.ge.f32.partialorder %v6080, 0.0
      %vm6145 = vcmp.ge.f32.partialorder %v6081, 0.0
      %vm6146 = vcmp.ge.f32.partialorder %v6082, 0.0
      %vm6147 = vcmp.ge.f32.partialorder %v6083, 0.0
      %vm6148 = vcmp.ge.f32.partialorder %v6084, 0.0
      %vm6149 = vcmp.ge.f32.partialorder %v6085, 0.0
      %vm6150 = vcmp.ge.f32.partialorder %v6086, 0.0
      %vm6151 = vcmp.ge.f32.partialorder %v6087, 0.0
      %vm6152 = vcmp.ge.f32.partialorder %v6088, 0.0
      %vm6153 = vcmp.ge.f32.partialorder %v6089, 0.0
      %vm6154 = vcmp.ge.f32.partialorder %v6090, 0.0
      %vm6155 = vcmp.ge.f32.partialorder %v6091, 0.0
      %vm6156 = vcmp.ge.f32.partialorder %v6092, 0.0
      %vm6157 = vcmp.ge.f32.partialorder %v6093, 0.0
      %vm6158 = vcmp.ge.f32.partialorder %v6094, 0.0
      %vm6159 = vcmp.ge.f32.partialorder %v6095, 0.0
      %vm6160 = vcmp.ge.f32.partialorder %v6096, 0.0
      %vm6161 = vcmp.ge.f32.partialorder %v6097, 0.0
      %vm6162 = vcmp.ge.f32.partialorder %v6098, 0.0
      %vm6163 = vcmp.ge.f32.partialorder %v6099, 0.0
      %vm6164 = vcmp.ge.f32.partialorder %v6100, 0.0
      %vm6165 = vcmp.ge.f32.partialorder %v6101, 0.0
      %vm6166 = vcmp.ge.f32.partialorder %v6102, 0.0
      %vm6167 = vcmp.ge.f32.partialorder %v6103, 0.0
      %vm6168 = vcmp.ge.f32.partialorder %v6104, 0.0
      %vm6169 = vcmp.ge.f32.partialorder %v6105, 0.0
      %vm6170 = vcmp.ge.f32.partialorder %v6106, 0.0
      %vm6171 = vcmp.ge.f32.partialorder %v6107, 0.0
      %vm6172 = vcmp.ge.f32.partialorder %v6108, 0.0
      %vm6173 = vcmp.ge.f32.partialorder %v6109, 0.0
      %vm6174 = vcmp.ge.f32.partialorder %v6110, 0.0
      %vm6175 = vcmp.ge.f32.partialorder %v6111, 0.0
      %vm6176 = vcmp.ge.f32.partialorder %v6112, 0.0
      %vm6177 = vcmp.ge.f32.partialorder %v6113, 0.0
      %vm6178 = vcmp.ge.f32.partialorder %v6114, 0.0
      %vm6179 = vcmp.ge.f32.partialorder %v6115, 0.0
      %vm6180 = vcmp.ge.f32.partialorder %v6116, 0.0
      %vm6181 = vcmp.ge.f32.partialorder %v6117, 0.0
      %vm6182 = vcmp.ge.f32.partialorder %v6118, 0.0
      %vm6183 = vcmp.ge.f32.partialorder %v6119, 0.0
      %vm6184 = vcmp.ge.f32.partialorder %v6120, 0.0
      %vm6185 = vcmp.ge.f32.partialorder %v6121, 0.0
      %vm6186 = vcmp.ge.f32.partialorder %v6122, 0.0
      %vm6187 = vcmp.ge.f32.partialorder %v6123, 0.0
      %vm6188 = vcmp.ge.f32.partialorder %v6124, 0.0
      %vm6189 = vcmp.ge.f32.partialorder %v6125, 0.0
      %vm6190 = vcmp.ge.f32.partialorder %v6126, 0.0
      %vm6191 = vcmp.ge.f32.partialorder %v6127, 0.0
      %vm6192 = vcmp.ge.f32.partialorder %v6128, 0.0
      %vm6193 = vcmp.ge.f32.partialorder %v6129, 0.0
      %v6194 = vsel %vm6130, 1.0, -1.0
      %v6195 = vsel %vm6131, 1.0, -1.0
      %v6196 = vsel %vm6132, 1.0, -1.0
      %v6197 = vsel %vm6133, 1.0, -1.0
      %v6198 = vsel %vm6134, 1.0, -1.0
      %v6199 = vsel %vm6135, 1.0, -1.0
      %v6200 = vsel %vm6136, 1.0, -1.0
      %v6201 = vsel %vm6137, 1.0, -1.0
      %v6202 = vsel %vm6138, 1.0, -1.0
      %v6203 = vsel %vm6139, 1.0, -1.0
      %v6204 = vsel %vm6140, 1.0, -1.0
      %v6205 = vsel %vm6141, 1.0, -1.0
      %v6206 = vsel %vm6142, 1.0, -1.0
      %v6207 = vsel %vm6143, 1.0, -1.0
      %v6208 = vsel %vm6144, 1.0, -1.0
      %v6209 = vsel %vm6145, 1.0, -1.0
      %v6210 = vsel %vm6146, 1.0, -1.0
      %v6211 = vsel %vm6147, 1.0, -1.0
      %v6212 = vsel %vm6148, 1.0, -1.0
      %v6213 = vsel %vm6149, 1.0, -1.0
      %v6214 = vsel %vm6150, 1.0, -1.0
      %v6215 = vsel %vm6151, 1.0, -1.0
      %v6216 = vsel %vm6152, 1.0, -1.0
      %v6217 = vsel %vm6153, 1.0, -1.0
      %v6218 = vsel %vm6154, 1.0, -1.0
      %v6219 = vsel %vm6155, 1.0, -1.0
      %v6220 = vsel %vm6156, 1.0, -1.0
      %v6221 = vsel %vm6157, 1.0, -1.0
      %v6222 = vsel %vm6158, 1.0, -1.0
      %v6223 = vsel %vm6159, 1.0, -1.0
      %v6224 = vsel %vm6160, 1.0, -1.0
      %v6225 = vsel %vm6161, 1.0, -1.0
      %v6226 = vsel %vm6162, 1.0, -1.0
      %v6227 = vsel %vm6163, 1.0, -1.0
      %v6228 = vsel %vm6164, 1.0, -1.0
      %v6229 = vsel %vm6165, 1.0, -1.0
      %v6230 = vsel %vm6166, 1.0, -1.0
      %v6231 = vsel %vm6167, 1.0, -1.0
      %v6232 = vsel %vm6168, 1.0, -1.0
      %v6233 = vsel %vm6169, 1.0, -1.0
      %v6234 = vsel %vm6170, 1.0, -1.0
      %v6235 = vsel %vm6171, 1.0, -1.0
      %v6236 = vsel %vm6172, 1.0, -1.0
      %v6237 = vsel %vm6173, 1.0, -1.0
      %v6238 = vsel %vm6174, 1.0, -1.0
      %v6239 = vsel %vm6175, 1.0, -1.0
      %v6240 = vsel %vm6176, 1.0, -1.0
      %v6241 = vsel %vm6177, 1.0, -1.0
      %v6242 = vsel %vm6178, 1.0, -1.0
      %v6243 = vsel %vm6179, 1.0, -1.0
      %v6244 = vsel %vm6180, 1.0, -1.0
      %v6245 = vsel %vm6181, 1.0, -1.0
      %v6246 = vsel %vm6182, 1.0, -1.0
      %v6247 = vsel %vm6183, 1.0, -1.0
      %v6248 = vsel %vm6184, 1.0, -1.0
      %v6249 = vsel %vm6185, 1.0, -1.0
      %v6250 = vsel %vm6186, 1.0, -1.0
      %v6251 = vsel %vm6187, 1.0, -1.0
      %v6252 = vsel %vm6188, 1.0, -1.0
      %v6253 = vsel %vm6189, 1.0, -1.0
      %v6254 = vsel %vm6190, 1.0, -1.0
      %v6255 = vsel %vm6191, 1.0, -1.0
      %v6256 = vsel %vm6192, 1.0, -1.0
      %v6257 = vsel %vm6193, 1.0, -1.0
      %v6258 = vpack.c.bf16 %v6198, %v6194
      %v6259 = vpack.c.bf16 %v6199, %v6195
      %v6260 = vpack.c.bf16 %v6200, %v6196
      %v6261 = vpack.c.bf16 %v6201, %v6197
      %v6262 = vpack.c.bf16 %v6206, %v6202
      %v6263 = vpack.c.bf16 %v6207, %v6203
      %v6264 = vpack.c.bf16 %v6208, %v6204
      %v6265 = vpack.c.bf16 %v6209, %v6205
      %v6266 = vpack.c.bf16 %v6214, %v6210
      %v6267 = vpack.c.bf16 %v6215, %v6211
      %v6268 = vpack.c.bf16 %v6216, %v6212
      %v6269 = vpack.c.bf16 %v6217, %v6213
      %v6270 = vpack.c.bf16 %v6222, %v6218
      %v6271 = vpack.c.bf16 %v6223, %v6219
      %v6272 = vpack.c.bf16 %v6224, %v6220
      %v6273 = vpack.c.bf16 %v6225, %v6221
      %v6274 = vpack.c.bf16 %v6230, %v6226
      %v6275 = vpack.c.bf16 %v6231, %v6227
      %v6276 = vpack.c.bf16 %v6232, %v6228
      %v6277 = vpack.c.bf16 %v6233, %v6229
      %v6278 = vpack.c.bf16 %v6238, %v6234
      %v6279 = vpack.c.bf16 %v6239, %v6235
      %v6280 = vpack.c.bf16 %v6240, %v6236
      %v6281 = vpack.c.bf16 %v6241, %v6237
      %v6282 = vpack.c.bf16 %v6246, %v6242
      %v6283 = vpack.c.bf16 %v6247, %v6243
      %v6284 = vpack.c.bf16 %v6248, %v6244
      %v6285 = vpack.c.bf16 %v6249, %v6245
      %v6286 = vpack.c.bf16 %v6254, %v6250
      %v6287 = vpack.c.bf16 %v6255, %v6251
      %v6288 = vpack.c.bf16 %v6256, %v6252
      %v6289 = vpack.c.bf16 %v6257, %v6253
      %v6290 = vld [vmem:[%s4] sm:$0xf]
      %v6291 = vld [vmem:[%s4 + $0x4] sm:$0xf]
      %v6292 = vld [vmem:[%s4 + $0x8] sm:$0xf]
      %v6293 = vld [vmem:[%s4 + $0xc] sm:$0xf]
      %v6294 = vld [vmem:[%s4 + $0x10] sm:$0xf]
      %v6295 = vld [vmem:[%s4 + $0x14] sm:$0xf]
      %v6296 = vld [vmem:[%s4 + $0x18] sm:$0xf]
      %v6297 = vld [vmem:[%s4 + $0x1c] sm:$0xf]
      %v6298 = vld [vmem:[%s4 + $0x20] sm:$0xf]
      %v6299 = vld [vmem:[%s4 + $0x24] sm:$0xf]
      %v6300 = vld [vmem:[%s4 + $0x28] sm:$0xf]
      %v6301 = vld [vmem:[%s4 + $0x2c] sm:$0xf]
      %v6302 = vld [vmem:[%s4 + $0x30] sm:$0xf]
      %v6303 = vld [vmem:[%s4 + $0x34] sm:$0xf]
      %v6304 = vld [vmem:[%s4 + $0x38] sm:$0xf]
      %v6305 = vld [vmem:[%s4 + $0x3c] sm:$0xf]
      %v6306 = vld [vmem:[%s4 + $0x40] sm:$0xf]
      %v6307 = vld [vmem:[%s4 + $0x44] sm:$0xf]
      %v6308 = vld [vmem:[%s4 + $0x48] sm:$0xf]
      %v6309 = vld [vmem:[%s4 + $0x4c] sm:$0xf]
      %v6310 = vld [vmem:[%s4 + $0x50] sm:$0xf]
      %v6311 = vld [vmem:[%s4 + $0x54] sm:$0xf]
      %v6312 = vld [vmem:[%s4 + $0x58] sm:$0xf]
      %v6313 = vld [vmem:[%s4 + $0x5c] sm:$0xf]
      %v6314 = vld [vmem:[%s4 + $0x60] sm:$0xf]
      %v6315 = vld [vmem:[%s4 + $0x64] sm:$0xf]
      %v6316 = vld [vmem:[%s4 + $0x68] sm:$0xf]
      %v6317 = vld [vmem:[%s4 + $0x6c] sm:$0xf]
      %v6318 = vld [vmem:[%s4 + $0x70] sm:$0xf]
      %v6319 = vld [vmem:[%s4 + $0x74] sm:$0xf]
      %v6320 = vld [vmem:[%s4 + $0x78] sm:$0xf]
      %v6321 = vld [vmem:[%s4 + $0x7c] sm:$0xf]
      %v6322 = vld [vmem:[%s4 + $0x80] sm:$0xf]
      %v6323 = vld [vmem:[%s4 + $0x84] sm:$0xf]
      %v6324 = vld [vmem:[%s4 + $0x88] sm:$0xf]
      %v6325 = vld [vmem:[%s4 + $0x8c] sm:$0xf]
      %v6326 = vld [vmem:[%s4 + $0x90] sm:$0xf]
      %v6327 = vld [vmem:[%s4 + $0x94] sm:$0xf]
      %v6328 = vld [vmem:[%s4 + $0x98] sm:$0xf]
      %v6329 = vld [vmem:[%s4 + $0x9c] sm:$0xf]
      %v6330 = vld [vmem:[%s4 + $0xa0] sm:$0xf]
      %v6331 = vld [vmem:[%s4 + $0xa4] sm:$0xf]
      %v6332 = vld [vmem:[%s4 + $0xa8] sm:$0xf]
      %v6333 = vld [vmem:[%s4 + $0xac] sm:$0xf]
      %v6334 = vld [vmem:[%s4 + $0xb0] sm:$0xf]
      %v6335 = vld [vmem:[%s4 + $0xb4] sm:$0xf]
      %v6336 = vld [vmem:[%s4 + $0xb8] sm:$0xf]
      %v6337 = vld [vmem:[%s4 + $0xbc] sm:$0xf]
      %v6338 = vld [vmem:[%s4 + $0xc0] sm:$0xf]
      %v6339 = vld [vmem:[%s4 + $0xc4] sm:$0xf]
      %v6340 = vld [vmem:[%s4 + $0xc8] sm:$0xf]
      %v6341 = vld [vmem:[%s4 + $0xcc] sm:$0xf]
      %v6342 = vld [vmem:[%s4 + $0xd0] sm:$0xf]
      %v6343 = vld [vmem:[%s4 + $0xd4] sm:$0xf]
      %v6344 = vld [vmem:[%s4 + $0xd8] sm:$0xf]
      %v6345 = vld [vmem:[%s4 + $0xdc] sm:$0xf]
      %v6346 = vld [vmem:[%s4 + $0xe0] sm:$0xf]
      %v6347 = vld [vmem:[%s4 + $0xe4] sm:$0xf]
      %v6348 = vld [vmem:[%s4 + $0xe8] sm:$0xf]
      %v6349 = vld [vmem:[%s4 + $0xec] sm:$0xf]
      %v6350 = vld [vmem:[%s4 + $0xf0] sm:$0xf]
      %v6351 = vld [vmem:[%s4 + $0xf4] sm:$0xf]
      %v6352 = vld [vmem:[%s4 + $0xf8] sm:$0xf]
      %v6353 = vld [vmem:[%s4 + $0xfc] sm:$0xf]
      %v6354 = vld [vmem:[%s6] sm:$0x1]
      %v6356 = vlaneseq
      %v6357 = vshrl.u32 %v6356, 7
      %v6358 = vsub.s32 0, %v6357
      %v6359 = vrot.slane %v6354, %v6358
      %v6425 = vunpack.c.l.b16 %v6290
      %v6426 = vunpack.c.l.b16 %v6291
      %v6427 = vunpack.c.l.b16 %v6292
      %v6428 = vunpack.c.l.b16 %v6293
      %v6429 = vunpack.c.l.b16 %v6294
      %v6430 = vunpack.c.l.b16 %v6295
      %v6431 = vunpack.c.l.b16 %v6296
      %v6432 = vunpack.c.l.b16 %v6297
      %v6433 = vunpack.c.l.b16 %v6298
      %v6434 = vunpack.c.l.b16 %v6299
      %v6435 = vunpack.c.l.b16 %v6300
      %v6436 = vunpack.c.l.b16 %v6301
      %v6437 = vunpack.c.l.b16 %v6302
      %v6438 = vunpack.c.l.b16 %v6303
      %v6439 = vunpack.c.l.b16 %v6304
      %v6440 = vunpack.c.l.b16 %v6305
      %v6441 = vunpack.c.l.b16 %v6306
      %v6442 = vunpack.c.l.b16 %v6307
      %v6443 = vunpack.c.l.b16 %v6308
      %v6444 = vunpack.c.l.b16 %v6309
      %v6445 = vunpack.c.l.b16 %v6310
      %v6446 = vunpack.c.l.b16 %v6311
      %v6447 = vunpack.c.l.b16 %v6312
      %v6448 = vunpack.c.l.b16 %v6313
      %v6449 = vunpack.c.l.b16 %v6314
      %v6450 = vunpack.c.l.b16 %v6315
      %v6451 = vunpack.c.l.b16 %v6316
      %v6452 = vunpack.c.l.b16 %v6317
      %v6453 = vunpack.c.l.b16 %v6318
      %v6454 = vunpack.c.l.b16 %v6319
      %v6455 = vunpack.c.l.b16 %v6320
      %v6456 = vunpack.c.l.b16 %v6321
      %v6457 = vunpack.c.l.b16 %v6322
      %v6458 = vunpack.c.l.b16 %v6323
      %v6459 = vunpack.c.l.b16 %v6324
      %v6460 = vunpack.c.l.b16 %v6325
      %v6461 = vunpack.c.l.b16 %v6326
      %v6462 = vunpack.c.l.b16 %v6327
      %v6463 = vunpack.c.l.b16 %v6328
      %v6464 = vunpack.c.l.b16 %v6329
      %v6465 = vunpack.c.l.b16 %v6330
      %v6466 = vunpack.c.l.b16 %v6331
      %v6467 = vunpack.c.l.b16 %v6332
      %v6468 = vunpack.c.l.b16 %v6333
      %v6469 = vunpack.c.l.b16 %v6334
      %v6470 = vunpack.c.l.b16 %v6335
      %v6471 = vunpack.c.l.b16 %v6336
      %v6472 = vunpack.c.l.b16 %v6337
      %v6473 = vunpack.c.l.b16 %v6338
      %v6474 = vunpack.c.l.b16 %v6339
      %v6475 = vunpack.c.l.b16 %v6340
      %v6476 = vunpack.c.l.b16 %v6341
      %v6477 = vunpack.c.l.b16 %v6342
      %v6478 = vunpack.c.l.b16 %v6343
      %v6479 = vunpack.c.l.b16 %v6344
      %v6480 = vunpack.c.l.b16 %v6345
      %v6481 = vunpack.c.l.b16 %v6346
      %v6482 = vunpack.c.l.b16 %v6347
      %v6483 = vunpack.c.l.b16 %v6348
      %v6484 = vunpack.c.l.b16 %v6349
      %v6485 = vunpack.c.l.b16 %v6350
      %v6486 = vunpack.c.l.b16 %v6351
      %v6487 = vunpack.c.l.b16 %v6352
      %v6488 = vunpack.c.l.b16 %v6353
      %v6489 = vpack.c.b16 %v6426, %v6425
      %v6490 = vpack.c.b16 %v6428, %v6427
      %v6491 = vpack.c.b16 %v6430, %v6429
      %v6492 = vpack.c.b16 %v6432, %v6431
      %v6493 = vpack.c.b16 %v6434, %v6433
      %v6494 = vpack.c.b16 %v6436, %v6435
      %v6495 = vpack.c.b16 %v6438, %v6437
      %v6496 = vpack.c.b16 %v6440, %v6439
      %v6497 = vpack.c.b16 %v6442, %v6441
      %v6498 = vpack.c.b16 %v6444, %v6443
      %v6499 = vpack.c.b16 %v6446, %v6445
      %v6500 = vpack.c.b16 %v6448, %v6447
      %v6501 = vpack.c.b16 %v6450, %v6449
      %v6502 = vpack.c.b16 %v6452, %v6451
      %v6503 = vpack.c.b16 %v6454, %v6453
      %v6504 = vpack.c.b16 %v6456, %v6455
      %v6505 = vpack.c.b16 %v6458, %v6457
      %v6506 = vpack.c.b16 %v6460, %v6459
      %v6507 = vpack.c.b16 %v6462, %v6461
      %v6508 = vpack.c.b16 %v6464, %v6463
      %v6509 = vpack.c.b16 %v6466, %v6465
      %v6510 = vpack.c.b16 %v6468, %v6467
      %v6511 = vpack.c.b16 %v6470, %v6469
      %v6512 = vpack.c.b16 %v6472, %v6471
      %v6513 = vpack.c.b16 %v6474, %v6473
      %v6514 = vpack.c.b16 %v6476, %v6475
      %v6515 = vpack.c.b16 %v6478, %v6477
      %v6516 = vpack.c.b16 %v6480, %v6479
      %v6517 = vpack.c.b16 %v6482, %v6481
      %v6518 = vpack.c.b16 %v6484, %v6483
      %v6519 = vpack.c.b16 %v6486, %v6485
      %v6520 = vpack.c.b16 %v6488, %v6487
      %6553 = vmatprep.subr.bf16.mxu0 0
      %6554 = vmatpush1.bf16.msra.mxu0 %v6489
      %6555 = vmatprep.subr.bf16.mxu0 0
      %6556 = vmatpush1.bf16.msra.mxu0 %v6490
      %6557 = vmatprep.subr.bf16.mxu0 0
      %6558 = vmatpush1.bf16.msra.mxu0 %v6491
      %6559 = vmatprep.subr.bf16.mxu0 0
      %6560 = vmatpush1.bf16.msra.mxu0 %v6492
      %6561 = vmatprep.subr.bf16.mxu0 0
      %6562 = vmatpush1.bf16.msra.mxu0 %v6493
      %6563 = vmatprep.subr.bf16.mxu0 0
      %6564 = vmatpush1.bf16.msra.mxu0 %v6494
      %6565 = vmatprep.subr.bf16.mxu0 0
      %6566 = vmatpush1.bf16.msra.mxu0 %v6495
      %6567 = vmatprep.subr.bf16.mxu0 0
      %6568 = vmatpush1.bf16.msra.mxu0 %v6496
      %6569 = vmatprep.subr.bf16.mxu0 0
      %6570 = vmatpush1.bf16.msra.mxu0 %v6497
      %6571 = vmatprep.subr.bf16.mxu0 0
      %6572 = vmatpush1.bf16.msra.mxu0 %v6498
      %6573 = vmatprep.subr.bf16.mxu0 0
      %6574 = vmatpush1.bf16.msra.mxu0 %v6499
      %6575 = vmatprep.subr.bf16.mxu0 0
      %6576 = vmatpush1.bf16.msra.mxu0 %v6500
      %6577 = vmatprep.subr.bf16.mxu0 0
      %6578 = vmatpush1.bf16.msra.mxu0 %v6501
      %6579 = vmatprep.subr.bf16.mxu0 0
      %6580 = vmatpush1.bf16.msra.mxu0 %v6502
      %6581 = vmatprep.subr.bf16.mxu0 0
      %6582 = vmatpush1.bf16.msra.mxu0 %v6503
      %6583 = vmatprep.subr.bf16.mxu0 0
      %6584 = vmatpush1.bf16.msra.mxu0 %v6504
      %6585 = vmatprep.mubr.bf16.mxu0 %v6259
      %6586 = vmatmul.mubr.bf16.gmra.mrb[0].mxu0 %v6258
      %v6587 = vpop.f32.mrb[0].mxu0
      %v6588 = vadd.f32 %v6359, %v6587
      %v6589 = vpop.f32.mrb[0].mxu0
      %v6590 = vpop.f32.mrb[0].mxu0
      %v6591 = vadd.f32 %v6359, %v6590
      %v6592 = vpop.f32.mrb[0].mxu0
      %6593 = vmatprep.mubr.bf16.mxu0 %v6263
      %6594 = vmatmul.mubr.bf16.gmra.mrb[0].mxu0 %v6262
      %v6595 = vpop.f32.mrb[0].mxu0
      %v6596 = vadd.f32 %v6359, %v6595
      %v6597 = vpop.f32.mrb[0].mxu0
      %v6598 = vpop.f32.mrb[0].mxu0
      %v6599 = vadd.f32 %v6359, %v6598
      %v6600 = vpop.f32.mrb[0].mxu0
      %6601 = vmatprep.mubr.bf16.mxu0 %v6267
      %6602 = vmatmul.mubr.bf16.gmra.mrb[0].mxu0 %v6266
      %v6603 = vpop.f32.mrb[0].mxu0
      %v6604 = vadd.f32 %v6359, %v6603
      %v6605 = vpop.f32.mrb[0].mxu0
      %v6606 = vpop.f32.mrb[0].mxu0
      %v6607 = vadd.f32 %v6359, %v6606
      %v6608 = vpop.f32.mrb[0].mxu0
      %6609 = vmatprep.mubr.bf16.mxu0 %v6271
      %6610 = vmatmul.mubr.bf16.gmra.mrb[0].mxu0 %v6270
      %v6611 = vpop.f32.mrb[0].mxu0
      %v6612 = vadd.f32 %v6359, %v6611
      %v6613 = vpop.f32.mrb[0].mxu0
      %v6614 = vpop.f32.mrb[0].mxu0
      %v6615 = vadd.f32 %v6359, %v6614
      %v6616 = vpop.f32.mrb[0].mxu0
      %6617 = vmatprep.mubr.bf16.mxu0 %v6275
      %6618 = vmatmul.mubr.bf16.gmra.mrb[0].mxu0 %v6274
      %v6619 = vpop.f32.mrb[0].mxu0
      %v6620 = vadd.f32 %v6359, %v6619
      %v6621 = vpop.f32.mrb[0].mxu0
      %v6622 = vpop.f32.mrb[0].mxu0
      %v6623 = vadd.f32 %v6359, %v6622
      %v6624 = vpop.f32.mrb[0].mxu0
      %6625 = vmatprep.mubr.bf16.mxu0 %v6279
      %6626 = vmatmul.mubr.bf16.gmra.mrb[0].mxu0 %v6278
      %v6627 = vpop.f32.mrb[0].mxu0
      %v6628 = vadd.f32 %v6359, %v6627
      %v6629 = vpop.f32.mrb[0].mxu0
      %v6630 = vpop.f32.mrb[0].mxu0
      %v6631 = vadd.f32 %v6359, %v6630
      %v6632 = vpop.f32.mrb[0].mxu0
      %6633 = vmatprep.mubr.bf16.mxu0 %v6283
      %6634 = vmatmul.mubr.bf16.gmra.mrb[0].mxu0 %v6282
      %v6635 = vpop.f32.mrb[0].mxu0
      %v6636 = vadd.f32 %v6359, %v6635
      %v6637 = vpop.f32.mrb[0].mxu0
      %v6638 = vpop.f32.mrb[0].mxu0
      %v6639 = vadd.f32 %v6359, %v6638
      %v6640 = vpop.f32.mrb[0].mxu0
      %6641 = vmatprep.mubr.bf16.mxu0 %v6287
      %6642 = vmatmul.mubr.bf16.gmra.mrb[0].mxu0 %v6286
      %v6643 = vpop.f32.mrb[0].mxu0
      %v6644 = vadd.f32 %v6359, %v6643
      %v6645 = vpop.f32.mrb[0].mxu0
      %v6646 = vpop.f32.mrb[0].mxu0
      %v6647 = vadd.f32 %v6359, %v6646
      %v6648 = vpop.f32.mrb[0].mxu0
      %6649 = vdwg.mxu0
      %6650 = vmatprep.subr.bf16.mxu0 0
      %6651 = vmatpush1.bf16.msra.mxu0 %v6505
      %6652 = vmatprep.subr.bf16.mxu0 0
      %6653 = vmatpush1.bf16.msra.mxu0 %v6506
      %6654 = vmatprep.subr.bf16.mxu0 0
      %6655 = vmatpush1.bf16.msra.mxu0 %v6507
      %6656 = vmatprep.subr.bf16.mxu0 0
      %6657 = vmatpush1.bf16.msra.mxu0 %v6508
      %6658 = vmatprep.subr.bf16.mxu0 0
      %6659 = vmatpush1.bf16.msra.mxu0 %v6509
      %6660 = vmatprep.subr.bf16.mxu0 0
      %6661 = vmatpush1.bf16.msra.mxu0 %v6510
      %6662 = vmatprep.subr.bf16.mxu0 0
      %6663 = vmatpush1.bf16.msra.mxu0 %v6511
      %6664 = vmatprep.subr.bf16.mxu0 0
      %6665 = vmatpush1.bf16.msra.mxu0 %v6512
      %6666 = vmatprep.subr.bf16.mxu0 0
      %6667 = vmatpush1.bf16.msra.mxu0 %v6513
      %6668 = vmatprep.subr.bf16.mxu0 0
      %6669 = vmatpush1.bf16.msra.mxu0 %v6514
      %6670 = vmatprep.subr.bf16.mxu0 0
      %6671 = vmatpush1.bf16.msra.mxu0 %v6515
      %6672 = vmatprep.subr.bf16.mxu0 0
      %6673 = vmatpush1.bf16.msra.mxu0 %v6516
      %6674 = vmatprep.subr.bf16.mxu0 0
      %6675 = vmatpush1.bf16.msra.mxu0 %v6517
      %6676 = vmatprep.subr.bf16.mxu0 0
      %6677 = vmatpush1.bf16.msra.mxu0 %v6518
      %6678 = vmatprep.subr.bf16.mxu0 0
      %6679 = vmatpush1.bf16.msra.mxu0 %v6519
      %6680 = vmatprep.subr.bf16.mxu0 0
      %6681 = vmatpush1.bf16.msra.mxu0 %v6520
      %6682 = vmatprep.mubr.bf16.mxu0 %v6261
      %6683 = vmatmul.mubr.bf16.gmra.mrb[0].mxu0 %v6260
      %v6684 = vpop.f32.mrb[0].mxu0
      %v6685 = vadd.f32 %v6588, %v6684
      %v6686 = vpop.f32.mrb[0].mxu0
      %v6687 = vpop.f32.mrb[0].mxu0
      %v6688 = vadd.f32 %v6591, %v6687
      %v6689 = vpop.f32.mrb[0].mxu0
      %6690 = vmatprep.mubr.bf16.mxu0 %v6265
      %6691 = vmatmul.mubr.bf16.gmra.mrb[0].mxu0 %v6264
      %v6692 = vpop.f32.mrb[0].mxu0
      %v6693 = vadd.f32 %v6596, %v6692
      %v6694 = vpop.f32.mrb[0].mxu0
      %v6695 = vpop.f32.mrb[0].mxu0
      %v6696 = vadd.f32 %v6599, %v6695
      %v6697 = vpop.f32.mrb[0].mxu0
      %6698 = vmatprep.mubr.bf16.mxu0 %v6269
      %6699 = vmatmul.mubr.bf16.gmra.mrb[0].mxu0 %v6268
      %v6700 = vpop.f32.mrb[0].mxu0
      %v6701 = vadd.f32 %v6604, %v6700
      %v6702 = vpop.f32.mrb[0].mxu0
      %v6703 = vpop.f32.mrb[0].mxu0
      %v6704 = vadd.f32 %v6607, %v6703
      %v6705 = vpop.f32.mrb[0].mxu0
      %6706 = vmatprep.mubr.bf16.mxu0 %v6273
      %6707 = vmatmul.mubr.bf16.gmra.mrb[0].mxu0 %v6272
      %v6708 = vpop.f32.mrb[0].mxu0
      %v6709 = vadd.f32 %v6612, %v6708
      %v6710 = vpop.f32.mrb[0].mxu0
      %v6711 = vpop.f32.mrb[0].mxu0
      %v6712 = vadd.f32 %v6615, %v6711
      %v6713 = vpop.f32.mrb[0].mxu0
      %6714 = vmatprep.mubr.bf16.mxu0 %v6277
      %6715 = vmatmul.mubr.bf16.gmra.mrb[0].mxu0 %v6276
      %v6716 = vpop.f32.mrb[0].mxu0
      %v6717 = vadd.f32 %v6620, %v6716
      %v6718 = vpop.f32.mrb[0].mxu0
      %v6719 = vpop.f32.mrb[0].mxu0
      %v6720 = vadd.f32 %v6623, %v6719
      %v6721 = vpop.f32.mrb[0].mxu0
      %6722 = vmatprep.mubr.bf16.mxu0 %v6281
      %6723 = vmatmul.mubr.bf16.gmra.mrb[0].mxu0 %v6280
      %v6724 = vpop.f32.mrb[0].mxu0
      %v6725 = vadd.f32 %v6628, %v6724
      %v6726 = vpop.f32.mrb[0].mxu0
      %v6727 = vpop.f32.mrb[0].mxu0
      %v6728 = vadd.f32 %v6631, %v6727
      %v6729 = vpop.f32.mrb[0].mxu0
      %6730 = vmatprep.mubr.bf16.mxu0 %v6285
      %6731 = vmatmul.mubr.bf16.gmra.mrb[0].mxu0 %v6284
      %v6732 = vpop.f32.mrb[0].mxu0
      %v6733 = vadd.f32 %v6636, %v6732
      %v6734 = vpop.f32.mrb[0].mxu0
      %v6735 = vpop.f32.mrb[0].mxu0
      %v6736 = vadd.f32 %v6639, %v6735
      %v6737 = vpop.f32.mrb[0].mxu0
      %6738 = vmatprep.mubr.bf16.mxu0 %v6289
      %6739 = vmatmul.mubr.bf16.gmra.mrb[0].mxu0 %v6288
      %v6740 = vpop.f32.mrb[0].mxu0
      %v6741 = vadd.f32 %v6644, %v6740
      %v6742 = vpop.f32.mrb[0].mxu0
      %v6743 = vpop.f32.mrb[0].mxu0
      %v6744 = vadd.f32 %v6647, %v6743
      %v6745 = vpop.f32.mrb[0].mxu0
      %6746 = vdwg.mxu0
      %v6747 = vlaneseq
      %v6748 = vand.u32 %v6747, 127
      %vm6749 = vcmp.lt.s32.totalorder %v6748, 10
      %v6750 = vsel %vm6749, %v6685, -1e+30
      %v6751 = vsel %vm6749, %v6688, -1e+30
      %v6752 = vsel %vm6749, %v6693, -1e+30
      %v6753 = vsel %vm6749, %v6696, -1e+30
      %v6754 = vsel %vm6749, %v6701, -1e+30
      %v6755 = vsel %vm6749, %v6704, -1e+30
      %v6756 = vsel %vm6749, %v6709, -1e+30
      %v6757 = vsel %vm6749, %v6712, -1e+30
      %v6758 = vsel %vm6749, %v6717, -1e+30
      %v6759 = vsel %vm6749, %v6720, -1e+30
      %v6760 = vsel %vm6749, %v6725, -1e+30
      %v6761 = vsel %vm6749, %v6728, -1e+30
      %v6762 = vsel %vm6749, %v6733, -1e+30
      %v6763 = vsel %vm6749, %v6736, -1e+30
      %v6764 = vsel %vm6749, %v6741, -1e+30
      %v6765 = vsel %vm6749, %v6744, -1e+30
      %6766 = vmax.xlane.f32.xlu0 %v6750
      %v6767 = vpop.xlane.xlu0 %6766
      %6768 = vmax.xlane.f32.xlu0 %v6751
      %v6769 = vpop.xlane.xlu0 %6768
      %6770 = vmax.xlane.f32.xlu0 %v6752
      %v6771 = vpop.xlane.xlu0 %6770
      %6772 = vmax.xlane.f32.xlu0 %v6753
      %v6773 = vpop.xlane.xlu0 %6772
      %6774 = vmax.xlane.f32.xlu0 %v6754
      %v6775 = vpop.xlane.xlu0 %6774
      %6776 = vmax.xlane.f32.xlu0 %v6755
      %v6777 = vpop.xlane.xlu0 %6776
      %6778 = vmax.xlane.f32.xlu0 %v6756
      %v6779 = vpop.xlane.xlu0 %6778
      %6780 = vmax.xlane.f32.xlu0 %v6757
      %v6781 = vpop.xlane.xlu0 %6780
      %6782 = vmax.xlane.f32.xlu0 %v6758
      %v6783 = vpop.xlane.xlu0 %6782
      %6784 = vmax.xlane.f32.xlu0 %v6759
      %v6785 = vpop.xlane.xlu0 %6784
      %6786 = vmax.xlane.f32.xlu0 %v6760
      %v6787 = vpop.xlane.xlu0 %6786
      %6788 = vmax.xlane.f32.xlu0 %v6761
      %v6789 = vpop.xlane.xlu0 %6788
      %6790 = vmax.xlane.f32.xlu0 %v6762
      %v6791 = vpop.xlane.xlu0 %6790
      %6792 = vmax.xlane.f32.xlu0 %v6763
      %v6793 = vpop.xlane.xlu0 %6792
      %6794 = vmax.xlane.f32.xlu0 %v6764
      %v6795 = vpop.xlane.xlu0 %6794
      %6796 = vmax.xlane.f32.xlu0 %v6765
      %v6797 = vpop.xlane.xlu0 %6796
      %v6798 = vsub.f32 %v6750, %v6767
      %v6799 = vsub.f32 %v6751, %v6769
      %v6800 = vsub.f32 %v6752, %v6771
      %v6801 = vsub.f32 %v6753, %v6773
      %v6802 = vsub.f32 %v6754, %v6775
      %v6803 = vsub.f32 %v6755, %v6777
      %v6804 = vsub.f32 %v6756, %v6779
      %v6805 = vsub.f32 %v6757, %v6781
      %v6806 = vsub.f32 %v6758, %v6783
      %v6807 = vsub.f32 %v6759, %v6785
      %v6808 = vsub.f32 %v6760, %v6787
      %v6809 = vsub.f32 %v6761, %v6789
      %v6810 = vsub.f32 %v6762, %v6791
      %v6811 = vsub.f32 %v6763, %v6793
      %v6812 = vsub.f32 %v6764, %v6795
      %v6813 = vsub.f32 %v6765, %v6797
      %v6814 = vmul.f32 %v6798, 1.442695
      %v6815 = vpow.pop %v6814
      %v6816 = vmul.f32 %v6799, 1.442695
      %v6817 = vpow.pop %v6816
      %v6818 = vmul.f32 %v6800, 1.442695
      %v6819 = vpow.pop %v6818
      %v6820 = vmul.f32 %v6801, 1.442695
      %v6821 = vpow.pop %v6820
      %v6822 = vmul.f32 %v6802, 1.442695
      %v6823 = vpow.pop %v6822
      %v6824 = vmul.f32 %v6803, 1.442695
      %v6825 = vpow.pop %v6824
      %v6826 = vmul.f32 %v6804, 1.442695
      %v6827 = vpow.pop %v6826
      %v6828 = vmul.f32 %v6805, 1.442695
      %v6829 = vpow.pop %v6828
      %v6830 = vmul.f32 %v6806, 1.442695
      %v6831 = vpow.pop %v6830
      %v6832 = vmul.f32 %v6807, 1.442695
      %v6833 = vpow.pop %v6832
      %v6834 = vmul.f32 %v6808, 1.442695
      %v6835 = vpow.pop %v6834
      %v6836 = vmul.f32 %v6809, 1.442695
      %v6837 = vpow.pop %v6836
      %v6838 = vmul.f32 %v6810, 1.442695
      %v6839 = vpow.pop %v6838
      %v6840 = vmul.f32 %v6811, 1.442695
      %v6841 = vpow.pop %v6840
      %v6842 = vmul.f32 %v6812, 1.442695
      %v6843 = vpow.pop %v6842
      %v6844 = vmul.f32 %v6813, 1.442695
      %v6845 = vpow.pop %v6844
      %v6846 = vsel %vm6749, %v6815, 0.0
      %v6847 = vsel %vm6749, %v6817, 0.0
      %v6848 = vsel %vm6749, %v6819, 0.0
      %v6849 = vsel %vm6749, %v6821, 0.0
      %v6850 = vsel %vm6749, %v6823, 0.0
      %v6851 = vsel %vm6749, %v6825, 0.0
      %v6852 = vsel %vm6749, %v6827, 0.0
      %v6853 = vsel %vm6749, %v6829, 0.0
      %v6854 = vsel %vm6749, %v6831, 0.0
      %v6855 = vsel %vm6749, %v6833, 0.0
      %v6856 = vsel %vm6749, %v6835, 0.0
      %v6857 = vsel %vm6749, %v6837, 0.0
      %v6858 = vsel %vm6749, %v6839, 0.0
      %v6859 = vsel %vm6749, %v6841, 0.0
      %v6860 = vsel %vm6749, %v6843, 0.0
      %v6861 = vsel %vm6749, %v6845, 0.0
      %6862 = vadd.xlane.f32.xlu0 %v6846
      %v6863 = vpop.xlane.xlu0 %6862
      %6864 = vadd.xlane.f32.xlu0 %v6847
      %v6865 = vpop.xlane.xlu0 %6864
      %6866 = vadd.xlane.f32.xlu0 %v6848
      %v6867 = vpop.xlane.xlu0 %6866
      %6868 = vadd.xlane.f32.xlu0 %v6849
      %v6869 = vpop.xlane.xlu0 %6868
      %6870 = vadd.xlane.f32.xlu0 %v6850
      %v6871 = vpop.xlane.xlu0 %6870
      %6872 = vadd.xlane.f32.xlu0 %v6851
      %v6873 = vpop.xlane.xlu0 %6872
      %6874 = vadd.xlane.f32.xlu0 %v6852
      %v6875 = vpop.xlane.xlu0 %6874
      %6876 = vadd.xlane.f32.xlu0 %v6853
      %v6877 = vpop.xlane.xlu0 %6876
      %6878 = vadd.xlane.f32.xlu0 %v6854
      %v6879 = vpop.xlane.xlu0 %6878
      %6880 = vadd.xlane.f32.xlu0 %v6855
      %v6881 = vpop.xlane.xlu0 %6880
      %6882 = vadd.xlane.f32.xlu0 %v6856
      %v6883 = vpop.xlane.xlu0 %6882
      %6884 = vadd.xlane.f32.xlu0 %v6857
      %v6885 = vpop.xlane.xlu0 %6884
      %6886 = vadd.xlane.f32.xlu0 %v6858
      %v6887 = vpop.xlane.xlu0 %6886
      %6888 = vadd.xlane.f32.xlu0 %v6859
      %v6889 = vpop.xlane.xlu0 %6888
      %6890 = vadd.xlane.f32.xlu0 %v6860
      %v6891 = vpop.xlane.xlu0 %6890
      %6892 = vadd.xlane.f32.xlu0 %v6861
      %v6893 = vpop.xlane.xlu0 %6892
      %v6894 = vlog2.pop %v6863
      %v6895 = vmul.f32 %v6894, 0.6931472
      %v6896 = vlog2.pop %v6865
      %v6897 = vmul.f32 %v6896, 0.6931472
      %v6898 = vlog2.pop %v6867
      %v6899 = vmul.f32 %v6898, 0.6931472
      %v6900 = vlog2.pop %v6869
      %v6901 = vmul.f32 %v6900, 0.6931472
      %v6902 = vlog2.pop %v6871
      %v6903 = vmul.f32 %v6902, 0.6931472
      %v6904 = vlog2.pop %v6873
      %v6905 = vmul.f32 %v6904, 0.6931472
      %v6906 = vlog2.pop %v6875
      %v6907 = vmul.f32 %v6906, 0.6931472
      %v6908 = vlog2.pop %v6877
      %v6909 = vmul.f32 %v6908, 0.6931472
      %v6910 = vlog2.pop %v6879
      %v6911 = vmul.f32 %v6910, 0.6931472
      %v6912 = vlog2.pop %v6881
      %v6913 = vmul.f32 %v6912, 0.6931472
      %v6914 = vlog2.pop %v6883
      %v6915 = vmul.f32 %v6914, 0.6931472
      %v6916 = vlog2.pop %v6885
      %v6917 = vmul.f32 %v6916, 0.6931472
      %v6918 = vlog2.pop %v6887
      %v6919 = vmul.f32 %v6918, 0.6931472
      %v6920 = vlog2.pop %v6889
      %v6921 = vmul.f32 %v6920, 0.6931472
      %v6922 = vlog2.pop %v6891
      %v6923 = vmul.f32 %v6922, 0.6931472
      %v6924 = vlog2.pop %v6893
      %v6925 = vmul.f32 %v6924, 0.6931472
      %v6926 = vsub.f32 %v6798, %v6895
      %v6927 = vsub.f32 %v6799, %v6897
      %v6928 = vsub.f32 %v6800, %v6899
      %v6929 = vsub.f32 %v6801, %v6901
      %v6930 = vsub.f32 %v6802, %v6903
      %v6931 = vsub.f32 %v6803, %v6905
      %v6932 = vsub.f32 %v6804, %v6907
      %v6933 = vsub.f32 %v6805, %v6909
      %v6934 = vsub.f32 %v6806, %v6911
      %v6935 = vsub.f32 %v6807, %v6913
      %v6936 = vsub.f32 %v6808, %v6915
      %v6937 = vsub.f32 %v6809, %v6917
      %v6938 = vsub.f32 %v6810, %v6919
      %v6939 = vsub.f32 %v6811, %v6921
      %v6940 = vsub.f32 %v6812, %v6923
      %v6941 = vsub.f32 %v6813, %v6925
      %6942 = vst [vmem:[%s283] sm:$0xff] %v6926
      %6943 = vst [vmem:[%s283 + $0x8] sm:$0xff] %v6927
      %6944 = vst [vmem:[%s283 + $0x10] sm:$0xff] %v6928
      %6945 = vst [vmem:[%s283 + $0x18] sm:$0xff] %v6929
      %6946 = vst [vmem:[%s283 + $0x20] sm:$0xff] %v6930
      %6947 = vst [vmem:[%s283 + $0x28] sm:$0xff] %v6931
      %6948 = vst [vmem:[%s283 + $0x30] sm:$0xff] %v6932
      %6949 = vst [vmem:[%s283 + $0x38] sm:$0xff] %v6933
      %6950 = vst [vmem:[%s283 + $0x40] sm:$0xff] %v6934
      %6951 = vst [vmem:[%s283 + $0x48] sm:$0xff] %v6935
      %6952 = vst [vmem:[%s283 + $0x50] sm:$0xff] %v6936
      %6953 = vst [vmem:[%s283 + $0x58] sm:$0xff] %v6937
      %6954 = vst [vmem:[%s283 + $0x60] sm:$0xff] %v6938
      %6955 = vst [vmem:[%s283 + $0x68] sm:$0xff] %v6939
      %6956 = vst [vmem:[%s283 + $0x70] sm:$0xff] %v6940
      %6957 = vst [vmem:[%s283 + $0x78] sm:$0xff] %v6941
      %s6958 = smul.u32 16, %s18
      %p6959 = scmp.lt.s32.totalorder %s6958, 31
      %s6960 = scalar_select %p6959, %s6958, 31
      %s6961 = smul.addr %s6960, 8
      %s6962 = scalar_lea.vmem %s7, %s6961
      // Predicated region
      $region49: #{net_forward.1} parent=47 // pred_check
        %p6963 = pneg %p188
      $region50: #{net_forward.1} parent=47 // pred_check_branch
        %6965 = sbr.rel (%p6963) target = $region52
      $region51: #{net_forward.1} parent=47 // pred_region
        %s6966 = smul.u32 16, %s18
      $region52: #{net_forward.1} parent=47 // pred_fallthru
        _
    $region48: #{net_forward.1} parent=5 // pred_fallthru
      _
    %p6967 = scmp.le.s32.totalorder 2, %s13
    // Predicated region
    $region53: #{net_forward.1} parent=5 // pred_check
      %p6968 = pneg %p6967
    $region54: #{net_forward.1} parent=5 // pred_check_branch
      %6970 = sbr.rel (%p6968) target = $region56
    $region55: #{net_forward.1} parent=5 // pred_region
      %s6971 = ssub.s32 %s13, 2
      // Predicated region
      $region57: #{net_forward.1} parent=55 // pred_check
        %p6972 = pneg %p194
      $region58: #{net_forward.1} parent=55 // pred_check_branch
        %6974 = sbr.rel (%p6972) target = $region60
      $region59: #{net_forward.1} parent=55 // pred_region
        %s6975 = smul.u32 16, %s19
        %p6976 = scmp.lt.s32.totalorder %s6975, 31
        %s6977 = scalar_select %p6976, %s6975, 31
        %s6978 = smul.addr %s6977, 8
        %s6979 = scalar_lea.vmem %s7, %s6978
      $region60: #{net_forward.1} parent=55 // pred_fallthru
        _
    $region56: #{net_forward.1} parent=5 // pred_fallthru
      _
  $region6: #{net_forward.1} parent=0 // loop_footer
    %s17 = sadd.s32 1, %s13
  $region7: #{net_forward.1} parent=0 // loop_footer_branch
    %12 = sbr.rel target = $region3
  $region8: #{net_forward.1} parent=0 // loop_exit
    _

</llo_original>
